<compile_context>
chip_gen: v6e
topology: v6e:2x2x1
jax: 0.10.0
libtpu: 0.0.40
codegen_flags: <defaults>
</compile_context>

<pallas_src>
import functools

import jax
import jax.numpy as jnp
from jax import lax
from jax.experimental import pallas as pl
from jax.experimental.pallas import tpu as pltpu


def _mhsa_kernel(x_ref, xt_ref, wqv_ref, wk_ref, wp_ref, bp_ref,
                 o_ref, qv_ref, kt_ref, ctx_ref, *,
                 num_heads, tq, chunk, n_actual, heads_per_group, approx_recip):
    """Grid = (B, num_query_tiles).

    Axis 0 (batch) is parallel.  Axis 1 (query tile) is "arbitrary": at qi==0
    the fused Q/V projection and the K^T projection for the whole (padded)
    sequence are computed once and cached in VMEM scratches, then reused by all
    query tiles of that batch.
    """
    qi = pl.program_id(1)
    C = wp_ref.shape[0]
    hd = C // num_heads
    n_pad = kt_ref.shape[1]

    # ---- once per batch: fused Q/V projection + K^T, chunked over N ---------
    @pl.when(qi == 0)
    def _():
        # Q (scale pre-folded into the weights) and V, row chunks of <=128.
        for ci in range(n_pad // chunk):
            lo = ci * chunk
            xc = x_ref[0, lo:lo + chunk, :]                       # (chunk, C)
            qv = jnp.dot(xc, wqv_ref[...], preferred_element_type=jnp.float32)
            qv_ref[lo:lo + chunk, :] = qv.astype(qv_ref.dtype)    # (chunk, 2C)
        # K^T = Wk @ x^T, lane chunks of <=128 (lane-dense stores, no XLU).
        for ci in range(n_pad // chunk):
            lo = ci * chunk
            xtc = xt_ref[0, :, lo:lo + chunk]                     # (C, chunk)
            kt = jnp.dot(wk_ref[...], xtc, preferred_element_type=jnp.float32)
            kt_ref[:, lo:lo + chunk] = kt.astype(kt_ref.dtype)

    # ---- per-query-tile attention -------------------------------------------
    q_start = pl.multiple_of(qi * tq, tq)

    if n_actual < n_pad:   # static: additive -inf bias for padded key columns
        col = lax.broadcasted_iota(jnp.int32, (tq, n_pad), 1)
        key_bias = jnp.where(col < n_actual, 0.0, -1e30).astype(jnp.float32)
    else:
        key_bias = None

    group_w = heads_per_group * hd
    for g in range(num_heads // heads_per_group):
        parts = []
        for j in range(heads_per_group):
            h = g * heads_per_group + j
            lo = h * hd
            # Slice the Refs directly (only the (tq,hd)/(hd,N)/(N,hd) slabs).
            qh = qv_ref[pl.ds(q_start, tq), lo:lo + hd]           # (tq, hd)
            kth = kt_ref[lo:lo + hd, :]                           # (hd, n_pad)

            # scores (scale already folded into Wq): plain matmul, no transpose
            s = jnp.dot(qh, kth, preferred_element_type=jnp.float32)
            if key_bias is not None:
                s = s + key_bias
            m = jnp.max(s, axis=-1, keepdims=True)
            p = jnp.exp(s - m)
            denom = jnp.sum(p, axis=-1, keepdims=True)

            vh = qv_ref[:, C + lo:C + lo + hd]                    # (n_pad, hd)
            ctx_h = jnp.dot(p.astype(vh.dtype), vh,
                            preferred_element_type=jnp.float32)   # (tq, hd)
            # normalize AFTER the PV matmul: tq*hd multiplies instead of tq*N
            ctx_h = ctx_h * pl.reciprocal(denom, approx=approx_recip)
            parts.append(ctx_h.astype(ctx_ref.dtype))
        glo = g * group_w
        # one lane-dense (>=128-wide when possible) store per head group
        ctx_ref[:, glo:glo + group_w] = (
            parts[0] if heads_per_group == 1 else jnp.concatenate(parts, axis=-1))

    # ---- single dense output projection (heads folded into lanes) -----------
    out = jnp.dot(ctx_ref[...], wp_ref[...], preferred_element_type=jnp.float32)
    o_ref[0] = (out + bp_ref[...]).astype(o_ref.dtype)


def _vmem_limit_bytes():
    """Chip-aware VMEM budget: leave headroom on v7x (64 MiB), use v5e/v6e's 128 MiB."""
    try:
        cap = int(getattr(pltpu.get_tpu_info(), "vmem_capacity_bytes",
                          128 * 1024 * 1024))
    except Exception:
        cap = 128 * 1024 * 1024
    return max(32 * 1024 * 1024, min(cap - 16 * 1024 * 1024, 100 * 1024 * 1024))


def mhsa_forward(x, w_qkv, w_proj, b_proj, num_heads, *,
                 compute_dtype=jnp.bfloat16, tq_target=256):
    """x: (B, N, C); w_qkv: (3C, C) PyTorch layout; w_proj: (C, C); b_proj: (C,)."""
    B, N, C = x.shape
    H = num_heads
    assert C % H == 0, "embedding dim must be divisible by num_heads"
    hd = C // H
    scale = 1.0 / hd  # qk_scale=None -> 1/head_dim (as in the PyTorch MHSA)

    # ---- query tiling + ragged-N padding -------------------------------------
    if N <= tq_target:
        tq = N
        n_pad = N
    else:
        tq = tq_target
        n_pad = ((N + tq - 1) // tq) * tq   # pad and mask instead of tq=N blowup
    nq = n_pad // tq
    chunk = n_pad if n_pad <= 128 else 128  # divides n_pad (n_pad multiple of 256)

    # head grouping so ctx stores are >=128 lanes wide when hd < 128
    if hd >= 128:
        hpg = 1
    else:
        hpg = min(H, max(1, 128 // hd))
        while H % hpg != 0:
            hpg -= 1

    # ---- plain-JAX glue: parameter layout -------------------------------------
    wq, wk, wv = w_qkv[:C], w_qkv[C:2 * C], w_qkv[2 * C:]
    # Fold the attention scale into the Q columns (exact for power-of-two hd;
    # otherwise a negligible systematic rounding vs. scaling the scores).
    wqv_t = jnp.concatenate([wq.T * scale, wv.T], axis=1)          # (C, 2C)
    wp = w_proj.T                                                  # (C, C)
    bp = b_proj.reshape(1, C).astype(jnp.float32)

    x_p = x if n_pad == N else jnp.pad(x, ((0, 0), (0, n_pad - N), (0, 0)))
    x_c = x_p.astype(compute_dtype)
    xt_c = jnp.swapaxes(x_c, 1, 2)                                 # (B, C, n_pad)
    wqv_c = wqv_t.astype(compute_dtype)
    wk_c = wk.astype(compute_dtype)      # PyTorch layout: K^T = wk @ x^T
    wp_c = wp.astype(compute_dtype)

    approx_recip = compute_dtype != jnp.float32
    kernel = functools.partial(
        _mhsa_kernel, num_heads=H, tq=tq, chunk=chunk, n_actual=N,
        heads_per_group=hpg, approx_recip=approx_recip)

    def _call(single_buffer_weights):
        def w_spec(shape):
            if single_buffer_weights:
                # constant-index weights: no point double-buffering them
                return pl.BlockSpec(shape, lambda b, q: (0, 0),
                                    pipeline_mode=pl.Buffered(1))
            return pl.BlockSpec(shape, lambda b, q: (0, 0))

        return pl.pallas_call(
            kernel,
            out_shape=jax.ShapeDtypeStruct((B, n_pad, C), x.dtype),
            grid_spec=pltpu.PrefetchScalarGridSpec(
                num_scalar_prefetch=0,
                grid=(B, nq),
                in_specs=[
                    pl.BlockSpec((1, n_pad, C), lambda b, q: (b, 0, 0)),   # x
                    pl.BlockSpec((1, C, n_pad), lambda b, q: (b, 0, 0)),   # x^T
                    w_spec((C, 2 * C)),                                    # [Wq*s | Wv]^T
                    w_spec((C, C)),                                        # Wk (for K^T)
                    w_spec((C, C)),                                        # Wproj^T
                    w_spec((1, C)),                                        # proj bias
                ],
                out_specs=pl.BlockSpec((1, tq, C), lambda b, q: (b, q, 0)),
                scratch_shapes=[
                    pltpu.VMEM((n_pad, 2 * C), compute_dtype),   # cached [Q*s | V]
                    pltpu.VMEM((C, n_pad), compute_dtype),       # cached K^T
                    pltpu.VMEM((tq, C), compute_dtype),          # per-tile context
                ],
            ),
            compiler_params=pltpu.CompilerParams(
                dimension_semantics=("parallel", "arbitrary"),
                vmem_limit_bytes=_vmem_limit_bytes(),
            ),
        )(x_c, xt_c, wqv_c, wk_c, wp_c, bp)

    try:
        out = _call(True)
    except Exception:
        # Fall back to default double-buffered weights if Buffered(1) is not
        # supported by this Pallas/Mosaic version.
        out = _call(False)

    return out if n_pad == N else out[:, :N, :]


def mhsa_reference(x, w_qkv, w_proj, b_proj, num_heads):
    """Pure-JAX reference mirroring the PyTorch MHSA.forward exactly (f32)."""
    B, N, C = x.shape
    H = num_heads
    hd = C // H
    scale = 1.0 / hd
    qkv = x @ w_qkv.T                                             # (B, N, 3C)
    qkv = qkv.reshape(B, N, 3, H, hd).transpose(2, 0, 3, 1, 4)    # (3, B, H, N, hd)
    q, k, v = qkv[0], qkv[1], qkv[2]
    attn = jnp.einsum('bhnd,bhmd->bhnm', q, k) * scale
    attn = jax.nn.softmax(attn, axis=-1)
    ctx = jnp.einsum('bhnm,bhmd->bhnd', attn, v)
    ctx = ctx.transpose(0, 2, 1, 3).reshape(B, N, C)
    return ctx @ w_proj.T + b_proj


def _make_params(key, C):
    kqkv, kproj = jax.random.split(key, 2)
    w_qkv = 0.02 * jax.random.truncated_normal(kqkv, -2.0, 2.0, (3 * C, C),
                                               dtype=jnp.float32)
    w_proj = 0.02 * jax.random.truncated_normal(kproj, -2.0, 2.0, (C, C),
                                                dtype=jnp.float32)
    b_proj = jnp.zeros((C,), dtype=jnp.float32)
    return w_qkv, w_proj, b_proj


if __name__ == "__main__":
    root = jax.random.PRNGKey(0)
    k1, k2 = jax.random.split(root, 2)

    # ---- Test 1: tiny shapes (batch=2, seq=8, dim=32, 8 heads) ---------------
    B, N, C, H = 2, 8, 32, 8
    kx, kp = jax.random.split(k1, 2)
    x = jax.random.normal(kx, (B, N, C), dtype=jnp.float32)
    w_qkv, w_proj, b_proj = _make_params(kp, C)
    ref = mhsa_reference(x, w_qkv, w_proj, b_proj, H)

    out_f32 = jax.block_until_ready(
        mhsa_forward(x, w_qkv, w_proj, b_proj, H, compute_dtype=jnp.float32))
    assert out_f32.shape == (B, N, C)
    assert jnp.allclose(out_f32, ref, atol=1e-5, rtol=1e-5), (
        f"f32 max abs err = {jnp.max(jnp.abs(out_f32 - ref))}")

    out_bf16 = jax.block_until_ready(
        mhsa_forward(x, w_qkv, w_proj, b_proj, H, compute_dtype=jnp.bfloat16))
    assert out_bf16.shape == (B, N, C)
    assert jnp.allclose(out_bf16, ref, atol=5e-3, rtol=5e-2), (
        f"bf16 max abs err = {jnp.max(jnp.abs(out_bf16 - ref))}")

    # ---- Test 2: multi-tile + ragged-N padding + head-pair store path --------
    B2, N2, C2, H2 = 1, 160, 128, 2   # hd=64 -> 2 heads per lane-dense group
    kx2, kp2 = jax.random.split(k2, 2)
    x2 = jax.random.normal(kx2, (B2, N2, C2), dtype=jnp.float32)
    w_qkv2, w_proj2, b_proj2 = _make_params(kp2, C2)
    ref2 = mhsa_reference(x2, w_qkv2, w_proj2, b_proj2, H2)

    out2 = jax.block_until_ready(
        mhsa_forward(x2, w_qkv2, w_proj2, b_proj2, H2,
                     compute_dtype=jnp.float32, tq_target=128))
    assert out2.shape == (B2, N2, C2)
    assert jnp.allclose(out2, ref2, atol=2e-5, rtol=1e-4), (
        f"padded-path max abs err = {jnp.max(jnp.abs(out2 - ref2))}")

    print("KERNEL_OK")
</pallas_src>

<mosaic_0001>
module attributes {stable_mosaic.version = 11 : i64} {
  func.func @_mhsa_kernel(%arg0: i32, %arg1: i32, %arg2: memref<1x8x32xf32, #tpu.memory_space<vmem>>, %arg3: memref<1x32x8xf32, #tpu.memory_space<vmem>>, %arg4: memref<32x64xf32, #tpu.memory_space<vmem>>, %arg5: memref<32x32xf32, #tpu.memory_space<vmem>>, %arg6: memref<32x32xf32, #tpu.memory_space<vmem>>, %arg7: memref<1x32xf32, #tpu.memory_space<vmem>>, %arg8: memref<1x8x32xf32, #tpu.memory_space<vmem>>, %arg9: memref<8x64xf32, #tpu.memory_space<vmem>>, %arg10: memref<32x8xf32, #tpu.memory_space<vmem>>, %arg11: memref<8x32xf32, #tpu.memory_space<vmem>>) attributes {dimension_semantics = [#tpu.dimension_semantics<parallel>, #tpu.dimension_semantics<arbitrary>], iteration_bounds = array<i64: 2, 1>, scalar_prefetch = 0 : i64, scratch_operands = 3 : i64, tpu.core_type = #tpu.core_type<tc>, window_params = [{transform_indices = @transform_0, window_bounds = array<i64: 1, 8, 32>}, {transform_indices = @transform_1, window_bounds = array<i64: 1, 32, 8>}, {pipeline_mode = #tpu.pipeline_mode<synchronous>, transform_indices = @transform_2, window_bounds = array<i64: 32, 64>}, {pipeline_mode = #tpu.pipeline_mode<synchronous>, transform_indices = @transform_3, window_bounds = array<i64: 32, 32>}, {pipeline_mode = #tpu.pipeline_mode<synchronous>, transform_indices = @transform_4, window_bounds = array<i64: 32, 32>}, {pipeline_mode = #tpu.pipeline_mode<synchronous>, transform_indices = @transform_5, window_bounds = array<i64: 1, 32>}, {transform_indices = @transform_6, window_bounds = array<i64: 1, 8, 32>}]} {
    %c0_i32 = arith.constant 0 : i32
    %0 = arith.cmpi eq, %arg1, %c0_i32 : i32
    %1 = arith.extui %0 : i1 to i32
    %c0_i32_0 = arith.constant 0 : i32
    %2 = arith.cmpi ne, %1, %c0_i32_0 : i32
    scf.if %2 {
      %c0_68 = arith.constant 0 : index
      %c0_69 = arith.constant 0 : index
      %c0_70 = arith.constant 0 : index
      %144 = vector.load %arg2[%c0_68, %c0_69, %c0_70] : memref<1x8x32xf32, #tpu.memory_space<vmem>>, vector<1x8x32xf32>
      %145 = vector.shape_cast %144 : vector<1x8x32xf32> to vector<8x32xf32>
      %c0_71 = arith.constant 0 : index
      %c0_72 = arith.constant 0 : index
      %146 = vector.load %arg4[%c0_71, %c0_72] : memref<32x64xf32, #tpu.memory_space<vmem>>, vector<32x64xf32>
      %cst_73 = arith.constant dense<0.000000e+00> : vector<8x64xf32>
      %147 = tpu.matmul %145, %146, %cst_73 {dimension_numbers = #tpu.dot_dimension_numbers<[1], [0], [0], [1], [0, 0, 1, 1], [], []>} : vector<8x32xf32>, vector<32x64xf32>, vector<8x64xf32> -> vector<8x64xf32>
      %c0_74 = arith.constant 0 : index
      %c0_75 = arith.constant 0 : index
      %148 = vector.load %arg9[%c0_74, %c0_75] : memref<8x64xf32, #tpu.memory_space<vmem>>, vector<8x64xf32>
      tpu.vector_store %arg9[%c0_74, %c0_75], %147 {strides = array<i32>} : memref<8x64xf32, #tpu.memory_space<vmem>>, vector<8x64xf32>,
      %c0_76 = arith.constant 0 : index
      %c0_77 = arith.constant 0 : index
      %c0_78 = arith.constant 0 : index
      %149 = vector.load %arg3[%c0_76, %c0_77, %c0_78] : memref<1x32x8xf32, #tpu.memory_space<vmem>>, vector<1x32x8xf32>
      %150 = vector.shape_cast %149 : vector<1x32x8xf32> to vector<32x8xf32>
      %c0_79 = arith.constant 0 : index
      %c0_80 = arith.constant 0 : index
      %151 = vector.load %arg5[%c0_79, %c0_80] : memref<32x32xf32, #tpu.memory_space<vmem>>, vector<32x32xf32>
      %cst_81 = arith.constant dense<0.000000e+00> : vector<32x8xf32>
      %152 = tpu.matmul %151, %150, %cst_81 {dimension_numbers = #tpu.dot_dimension_numbers<[1], [0], [0], [1], [0, 0, 1, 1], [], []>} : vector<32x32xf32>, vector<32x8xf32>, vector<32x8xf32> -> vector<32x8xf32>
      %c0_82 = arith.constant 0 : index
      %c0_83 = arith.constant 0 : index
      %153 = vector.load %arg10[%c0_82, %c0_83] : memref<32x8xf32, #tpu.memory_space<vmem>>, vector<32x8xf32>
      tpu.vector_store %arg10[%c0_82, %c0_83], %152 {strides = array<i32>} : memref<32x8xf32, #tpu.memory_space<vmem>>, vector<32x8xf32>,
    } else {
    }
    %c8_i32 = arith.constant 8 : i32
    %3 = arith.muli %arg1, %c8_i32 : i32
    %4 = tpu.assume_multiple %3, 8 : i32
    %5 = arith.index_cast %4 : i32 to index
    %c0 = arith.constant 0 : index
    %6 = vector.load %arg9[%5, %c0] : memref<8x64xf32, #tpu.memory_space<vmem>>, vector<8x4xf32>
    %c0_1 = arith.constant 0 : index
    %c0_2 = arith.constant 0 : index
    %7 = vector.load %arg10[%c0_1, %c0_2] : memref<32x8xf32, #tpu.memory_space<vmem>>, vector<4x8xf32>
    %cst = arith.constant dense<0.000000e+00> : vector<8x8xf32>
    %8 = tpu.matmul %6, %7, %cst {dimension_numbers = #tpu.dot_dimension_numbers<[1], [0], [0], [1], [0, 0, 1, 1], [], []>} : vector<8x4xf32>, vector<4x8xf32>, vector<8x8xf32> -> vector<8x8xf32>
    %cst_3 = arith.constant dense<0xFF800000> : vector<8xf32>
    %9 = vector.multi_reduction <maximumf>, %8, %cst_3 [1] : vector<8x8xf32> to vector<8xf32>
    %10 = vector.shape_cast %9 : vector<8xf32> to vector<8x1xf32>
    %11 = vector.broadcast %10 : vector<8x1xf32> to vector<8x8xf32>
    %12 = arith.subf %8, %11 : vector<8x8xf32>
    %13 = math.exp %12 : vector<8x8xf32>
    %cst_4 = arith.constant dense<0.000000e+00> : vector<8xf32>
    %14 = vector.multi_reduction <add>, %13, %cst_4 [1] : vector<8x8xf32> to vector<8xf32>
    %15 = vector.shape_cast %14 : vector<8xf32> to vector<8x1xf32>
    %c0_5 = arith.constant 0 : index
    %c32 = arith.constant 32 : index
    %16 = vector.load %arg9[%c0_5, %c32] : memref<8x64xf32, #tpu.memory_space<vmem>>, vector<8x4xf32>
    %cst_6 = arith.constant dense<0.000000e+00> : vector<8x4xf32>
    %17 = tpu.matmul %13, %16, %cst_6 {dimension_numbers = #tpu.dot_dimension_numbers<[1], [0], [0], [1], [0, 0, 1, 1], [], []>} : vector<8x8xf32>, vector<8x4xf32>, vector<8x4xf32> -> vector<8x4xf32>
    %18 = tpu.reciprocal %15 : vector<8x1xf32> -> vector<8x1xf32>
    %19 = vector.broadcast %18 : vector<8x1xf32> to vector<8x4xf32>
    %20 = arith.mulf %17, %19 : vector<8x4xf32>
    %21 = arith.index_cast %4 : i32 to index
    %c4 = arith.constant 4 : index
    %22 = vector.load %arg9[%21, %c4] : memref<8x64xf32, #tpu.memory_space<vmem>>, vector<8x4xf32>
    %c4_7 = arith.constant 4 : index
    %c0_8 = arith.constant 0 : index
    %23 = vector.load %arg10[%c4_7, %c0_8] : memref<32x8xf32, #tpu.memory_space<vmem>>, vector<4x8xf32>
    %cst_9 = arith.constant dense<0.000000e+00> : vector<8x8xf32>
    %24 = tpu.matmul %22, %23, %cst_9 {dimension_numbers = #tpu.dot_dimension_numbers<[1], [0], [0], [1], [0, 0, 1, 1], [], []>} : vector<8x4xf32>, vector<4x8xf32>, vector<8x8xf32> -> vector<8x8xf32>
    %cst_10 = arith.constant dense<0xFF800000> : vector<8xf32>
    %25 = vector.multi_reduction <maximumf>, %24, %cst_10 [1] : vector<8x8xf32> to vector<8xf32>
    %26 = vector.shape_cast %25 : vector<8xf32> to vector<8x1xf32>
    %27 = vector.broadcast %26 : vector<8x1xf32> to vector<8x8xf32>
    %28 = arith.subf %24, %27 : vector<8x8xf32>
    %29 = math.exp %28 : vector<8x8xf32>
    %cst_11 = arith.constant dense<0.000000e+00> : vector<8xf32>
    %30 = vector.multi_reduction <add>, %29, %cst_11 [1] : vector<8x8xf32> to vector<8xf32>
    %31 = vector.shape_cast %30 : vector<8xf32> to vector<8x1xf32>
    %c0_12 = arith.constant 0 : index
    %c36 = arith.constant 36 : index
    %32 = vector.load %arg9[%c0_12, %c36] : memref<8x64xf32, #tpu.memory_space<vmem>>, vector<8x4xf32>
    %cst_13 = arith.constant dense<0.000000e+00> : vector<8x4xf32>
    %33 = tpu.matmul %29, %32, %cst_13 {dimension_numbers = #tpu.dot_dimension_numbers<[1], [0], [0], [1], [0, 0, 1, 1], [], []>} : vector<8x8xf32>, vector<8x4xf32>, vector<8x4xf32> -> vector<8x4xf32>
    %34 = tpu.reciprocal %31 : vector<8x1xf32> -> vector<8x1xf32>
    %35 = vector.broadcast %34 : vector<8x1xf32> to vector<8x4xf32>
    %36 = arith.mulf %33, %35 : vector<8x4xf32>
    %37 = arith.index_cast %4 : i32 to index
    %c8 = arith.constant 8 : index
    %38 = vector.load %arg9[%37, %c8] : memref<8x64xf32, #tpu.memory_space<vmem>>, vector<8x4xf32>
    %c8_14 = arith.constant 8 : index
    %c0_15 = arith.constant 0 : index
    %39 = vector.load %arg10[%c8_14, %c0_15] : memref<32x8xf32, #tpu.memory_space<vmem>>, vector<4x8xf32>
    %cst_16 = arith.constant dense<0.000000e+00> : vector<8x8xf32>
    %40 = tpu.matmul %38, %39, %cst_16 {dimension_numbers = #tpu.dot_dimension_numbers<[1], [0], [0], [1], [0, 0, 1, 1], [], []>} : vector<8x4xf32>, vector<4x8xf32>, vector<8x8xf32> -> vector<8x8xf32>
    %cst_17 = arith.constant dense<0xFF800000> : vector<8xf32>
    %41 = vector.multi_reduction <maximumf>, %40, %cst_17 [1] : vector<8x8xf32> to vector<8xf32>
    %42 = vector.shape_cast %41 : vector<8xf32> to vector<8x1xf32>
    %43 = vector.broadcast %42 : vector<8x1xf32> to vector<8x8xf32>
    %44 = arith.subf %40, %43 : vector<8x8xf32>
    %45 = math.exp %44 : vector<8x8xf32>
    %cst_18 = arith.constant dense<0.000000e+00> : vector<8xf32>
    %46 = vector.multi_reduction <add>, %45, %cst_18 [1] : vector<8x8xf32> to vector<8xf32>
    %47 = vector.shape_cast %46 : vector<8xf32> to vector<8x1xf32>
    %c0_19 = arith.constant 0 : index
    %c40 = arith.constant 40 : index
    %48 = vector.load %arg9[%c0_19, %c40] : memref<8x64xf32, #tpu.memory_space<vmem>>, vector<8x4xf32>
    %cst_20 = arith.constant dense<0.000000e+00> : vector<8x4xf32>
    %49 = tpu.matmul %45, %48, %cst_20 {dimension_numbers = #tpu.dot_dimension_numbers<[1], [0], [0], [1], [0, 0, 1, 1], [], []>} : vector<8x8xf32>, vector<8x4xf32>, vector<8x4xf32> -> vector<8x4xf32>
    %50 = tpu.reciprocal %47 : vector<8x1xf32> -> vector<8x1xf32>
    %51 = vector.broadcast %50 : vector<8x1xf32> to vector<8x4xf32>
    %52 = arith.mulf %49, %51 : vector<8x4xf32>
    %53 = arith.index_cast %4 : i32 to index
    %c12 = arith.constant 12 : index
    %54 = vector.load %arg9[%53, %c12] : memref<8x64xf32, #tpu.memory_space<vmem>>, vector<8x4xf32>
    %c12_21 = arith.constant 12 : index
    %c0_22 = arith.constant 0 : index
    %55 = vector.load %arg10[%c12_21, %c0_22] : memref<32x8xf32, #tpu.memory_space<vmem>>, vector<4x8xf32>
    %cst_23 = arith.constant dense<0.000000e+00> : vector<8x8xf32>
    %56 = tpu.matmul %54, %55, %cst_23 {dimension_numbers = #tpu.dot_dimension_numbers<[1], [0], [0], [1], [0, 0, 1, 1], [], []>} : vector<8x4xf32>, vector<4x8xf32>, vector<8x8xf32> -> vector<8x8xf32>
    %cst_24 = arith.constant dense<0xFF800000> : vector<8xf32>
    %57 = vector.multi_reduction <maximumf>, %56, %cst_24 [1] : vector<8x8xf32> to vector<8xf32>
    %58 = vector.shape_cast %57 : vector<8xf32> to vector<8x1xf32>
    %59 = vector.broadcast %58 : vector<8x1xf32> to vector<8x8xf32>
    %60 = arith.subf %56, %59 : vector<8x8xf32>
    %61 = math.exp %60 : vector<8x8xf32>
    %cst_25 = arith.constant dense<0.000000e+00> : vector<8xf32>
    %62 = vector.multi_reduction <add>, %61, %cst_25 [1] : vector<8x8xf32> to vector<8xf32>
    %63 = vector.shape_cast %62 : vector<8xf32> to vector<8x1xf32>
    %c0_26 = arith.constant 0 : index
    %c44 = arith.constant 44 : index
    %64 = vector.load %arg9[%c0_26, %c44] : memref<8x64xf32, #tpu.memory_space<vmem>>, vector<8x4xf32>
    %cst_27 = arith.constant dense<0.000000e+00> : vector<8x4xf32>
    %65 = tpu.matmul %61, %64, %cst_27 {dimension_numbers = #tpu.dot_dimension_numbers<[1], [0], [0], [1], [0, 0, 1, 1], [], []>} : vector<8x8xf32>, vector<8x4xf32>, vector<8x4xf32> -> vector<8x4xf32>
    %66 = tpu.reciprocal %63 : vector<8x1xf32> -> vector<8x1xf32>
    %67 = vector.broadcast %66 : vector<8x1xf32> to vector<8x4xf32>
    %68 = arith.mulf %65, %67 : vector<8x4xf32>
    %69 = arith.index_cast %4 : i32 to index
    %c16 = arith.constant 16 : index
    %70 = vector.load %arg9[%69, %c16] : memref<8x64xf32, #tpu.memory_space<vmem>>, vector<8x4xf32>
    %c16_28 = arith.constant 16 : index
    %c0_29 = arith.constant 0 : index
    %71 = vector.load %arg10[%c16_28, %c0_29] : memref<32x8xf32, #tpu.memory_space<vmem>>, vector<4x8xf32>
    %cst_30 = arith.constant dense<0.000000e+00> : vector<8x8xf32>
    %72 = tpu.matmul %70, %71, %cst_30 {dimension_numbers = #tpu.dot_dimension_numbers<[1], [0], [0], [1], [0, 0, 1, 1], [], []>} : vector<8x4xf32>, vector<4x8xf32>, vector<8x8xf32> -> vector<8x8xf32>
    %cst_31 = arith.constant dense<0xFF800000> : vector<8xf32>
    %73 = vector.multi_reduction <maximumf>, %72, %cst_31 [1] : vector<8x8xf32> to vector<8xf32>
    %74 = vector.shape_cast %73 : vector<8xf32> to vector<8x1xf32>
    %75 = vector.broadcast %74 : vector<8x1xf32> to vector<8x8xf32>
    %76 = arith.subf %72, %75 : vector<8x8xf32>
    %77 = math.exp %76 : vector<8x8xf32>
    %cst_32 = arith.constant dense<0.000000e+00> : vector<8xf32>
    %78 = vector.multi_reduction <add>, %77, %cst_32 [1] : vector<8x8xf32> to vector<8xf32>
    %79 = vector.shape_cast %78 : vector<8xf32> to vector<8x1xf32>
    %c0_33 = arith.constant 0 : index
    %c48 = arith.constant 48 : index
    %80 = vector.load %arg9[%c0_33, %c48] : memref<8x64xf32, #tpu.memory_space<vmem>>, vector<8x4xf32>
    %cst_34 = arith.constant dense<0.000000e+00> : vector<8x4xf32>
    %81 = tpu.matmul %77, %80, %cst_34 {dimension_numbers = #tpu.dot_dimension_numbers<[1], [0], [0], [1], [0, 0, 1, 1], [], []>} : vector<8x8xf32>, vector<8x4xf32>, vector<8x4xf32> -> vector<8x4xf32>
    %82 = tpu.reciprocal %79 : vector<8x1xf32> -> vector<8x1xf32>
    %83 = vector.broadcast %82 : vector<8x1xf32> to vector<8x4xf32>
    %84 = arith.mulf %81, %83 : vector<8x4xf32>
    %85 = arith.index_cast %4 : i32 to index
    %c20 = arith.constant 20 : index
    %86 = vector.load %arg9[%85, %c20] : memref<8x64xf32, #tpu.memory_space<vmem>>, vector<8x4xf32>
    %c20_35 = arith.constant 20 : index
    %c0_36 = arith.constant 0 : index
    %87 = vector.load %arg10[%c20_35, %c0_36] : memref<32x8xf32, #tpu.memory_space<vmem>>, vector<4x8xf32>
    %cst_37 = arith.constant dense<0.000000e+00> : vector<8x8xf32>
    %88 = tpu.matmul %86, %87, %cst_37 {dimension_numbers = #tpu.dot_dimension_numbers<[1], [0], [0], [1], [0, 0, 1, 1], [], []>} : vector<8x4xf32>, vector<4x8xf32>, vector<8x8xf32> -> vector<8x8xf32>
    %cst_38 = arith.constant dense<0xFF800000> : vector<8xf32>
    %89 = vector.multi_reduction <maximumf>, %88, %cst_38 [1] : vector<8x8xf32> to vector<8xf32>
    %90 = vector.shape_cast %89 : vector<8xf32> to vector<8x1xf32>
    %91 = vector.broadcast %90 : vector<8x1xf32> to vector<8x8xf32>
    %92 = arith.subf %88, %91 : vector<8x8xf32>
    %93 = math.exp %92 : vector<8x8xf32>
    %cst_39 = arith.constant dense<0.000000e+00> : vector<8xf32>
    %94 = vector.multi_reduction <add>, %93, %cst_39 [1] : vector<8x8xf32> to vector<8xf32>
    %95 = vector.shape_cast %94 : vector<8xf32> to vector<8x1xf32>
    %c0_40 = arith.constant 0 : index
    %c52 = arith.constant 52 : index
    %96 = vector.load %arg9[%c0_40, %c52] : memref<8x64xf32, #tpu.memory_space<vmem>>, vector<8x4xf32>
    %cst_41 = arith.constant dense<0.000000e+00> : vector<8x4xf32>
    %97 = tpu.matmul %93, %96, %cst_41 {dimension_numbers = #tpu.dot_dimension_numbers<[1], [0], [0], [1], [0, 0, 1, 1], [], []>} : vector<8x8xf32>, vector<8x4xf32>, vector<8x4xf32> -> vector<8x4xf32>
    %98 = tpu.reciprocal %95 : vector<8x1xf32> -> vector<8x1xf32>
    %99 = vector.broadcast %98 : vector<8x1xf32> to vector<8x4xf32>
    %100 = arith.mulf %97, %99 : vector<8x4xf32>
    %101 = arith.index_cast %4 : i32 to index
    %c24 = arith.constant 24 : index
    %102 = vector.load %arg9[%101, %c24] : memref<8x64xf32, #tpu.memory_space<vmem>>, vector<8x4xf32>
    %c24_42 = arith.constant 24 : index
    %c0_43 = arith.constant 0 : index
    %103 = vector.load %arg10[%c24_42, %c0_43] : memref<32x8xf32, #tpu.memory_space<vmem>>, vector<4x8xf32>
    %cst_44 = arith.constant dense<0.000000e+00> : vector<8x8xf32>
    %104 = tpu.matmul %102, %103, %cst_44 {dimension_numbers = #tpu.dot_dimension_numbers<[1], [0], [0], [1], [0, 0, 1, 1], [], []>} : vector<8x4xf32>, vector<4x8xf32>, vector<8x8xf32> -> vector<8x8xf32>
    %cst_45 = arith.constant dense<0xFF800000> : vector<8xf32>
    %105 = vector.multi_reduction <maximumf>, %104, %cst_45 [1] : vector<8x8xf32> to vector<8xf32>
    %106 = vector.shape_cast %105 : vector<8xf32> to vector<8x1xf32>
    %107 = vector.broadcast %106 : vector<8x1xf32> to vector<8x8xf32>
    %108 = arith.subf %104, %107 : vector<8x8xf32>
    %109 = math.exp %108 : vector<8x8xf32>
    %cst_46 = arith.constant dense<0.000000e+00> : vector<8xf32>
    %110 = vector.multi_reduction <add>, %109, %cst_46 [1] : vector<8x8xf32> to vector<8xf32>
    %111 = vector.shape_cast %110 : vector<8xf32> to vector<8x1xf32>
    %c0_47 = arith.constant 0 : index
    %c56 = arith.constant 56 : index
    %112 = vector.load %arg9[%c0_47, %c56] : memref<8x64xf32, #tpu.memory_space<vmem>>, vector<8x4xf32>
    %cst_48 = arith.constant dense<0.000000e+00> : vector<8x4xf32>
    %113 = tpu.matmul %109, %112, %cst_48 {dimension_numbers = #tpu.dot_dimension_numbers<[1], [0], [0], [1], [0, 0, 1, 1], [], []>} : vector<8x8xf32>, vector<8x4xf32>, vector<8x4xf32> -> vector<8x4xf32>
    %114 = tpu.reciprocal %111 : vector<8x1xf32> -> vector<8x1xf32>
    %115 = vector.broadcast %114 : vector<8x1xf32> to vector<8x4xf32>
    %116 = arith.mulf %113, %115 : vector<8x4xf32>
    %117 = arith.index_cast %4 : i32 to index
    %c28 = arith.constant 28 : index
    %118 = vector.load %arg9[%117, %c28] : memref<8x64xf32, #tpu.memory_space<vmem>>, vector<8x4xf32>
    %c28_49 = arith.constant 28 : index
    %c0_50 = arith.constant 0 : index
    %119 = vector.load %arg10[%c28_49, %c0_50] : memref<32x8xf32, #tpu.memory_space<vmem>>, vector<4x8xf32>
    %cst_51 = arith.constant dense<0.000000e+00> : vector<8x8xf32>
    %120 = tpu.matmul %118, %119, %cst_51 {dimension_numbers = #tpu.dot_dimension_numbers<[1], [0], [0], [1], [0, 0, 1, 1], [], []>} : vector<8x4xf32>, vector<4x8xf32>, vector<8x8xf32> -> vector<8x8xf32>
    %cst_52 = arith.constant dense<0xFF800000> : vector<8xf32>
    %121 = vector.multi_reduction <maximumf>, %120, %cst_52 [1] : vector<8x8xf32> to vector<8xf32>
    %122 = vector.shape_cast %121 : vector<8xf32> to vector<8x1xf32>
    %123 = vector.broadcast %122 : vector<8x1xf32> to vector<8x8xf32>
    %124 = arith.subf %120, %123 : vector<8x8xf32>
    %125 = math.exp %124 : vector<8x8xf32>
    %cst_53 = arith.constant dense<0.000000e+00> : vector<8xf32>
    %126 = vector.multi_reduction <add>, %125, %cst_53 [1] : vector<8x8xf32> to vector<8xf32>
    %127 = vector.shape_cast %126 : vector<8xf32> to vector<8x1xf32>
    %c0_54 = arith.constant 0 : index
    %c60 = arith.constant 60 : index
    %128 = vector.load %arg9[%c0_54, %c60] : memref<8x64xf32, #tpu.memory_space<vmem>>, vector<8x4xf32>
    %cst_55 = arith.constant dense<0.000000e+00> : vector<8x4xf32>
    %129 = tpu.matmul %125, %128, %cst_55 {dimension_numbers = #tpu.dot_dimension_numbers<[1], [0], [0], [1], [0, 0, 1, 1], [], []>} : vector<8x8xf32>, vector<8x4xf32>, vector<8x4xf32> -> vector<8x4xf32>
    %130 = tpu.reciprocal %127 : vector<8x1xf32> -> vector<8x1xf32>
    %131 = vector.broadcast %130 : vector<8x1xf32> to vector<8x4xf32>
    %132 = arith.mulf %129, %131 : vector<8x4xf32>
    %133 = tpu.concatenate %20, %36, %52, %68, %84, %100, %116, %132 in 1 : vector<8x4xf32>, vector<8x4xf32>, vector<8x4xf32>, vector<8x4xf32>, vector<8x4xf32>, vector<8x4xf32>, vector<8x4xf32>, vector<8x4xf32> -> vector<8x32xf32>
    %c0_56 = arith.constant 0 : index
    %c0_57 = arith.constant 0 : index
    %134 = vector.load %arg11[%c0_56, %c0_57] : memref<8x32xf32, #tpu.memory_space<vmem>>, vector<8x32xf32>
    tpu.vector_store %arg11[%c0_56, %c0_57], %133 {strides = array<i32>} : memref<8x32xf32, #tpu.memory_space<vmem>>, vector<8x32xf32>,
    %c0_58 = arith.constant 0 : index
    %c0_59 = arith.constant 0 : index
    %135 = vector.load %arg11[%c0_58, %c0_59] : memref<8x32xf32, #tpu.memory_space<vmem>>, vector<8x32xf32>
    %c0_60 = arith.constant 0 : index
    %c0_61 = arith.constant 0 : index
    %136 = vector.load %arg6[%c0_60, %c0_61] : memref<32x32xf32, #tpu.memory_space<vmem>>, vector<32x32xf32>
    %cst_62 = arith.constant dense<0.000000e+00> : vector<8x32xf32>
    %137 = tpu.matmul %135, %136, %cst_62 {dimension_numbers = #tpu.dot_dimension_numbers<[1], [0], [0], [1], [0, 0, 1, 1], [], []>} : vector<8x32xf32>, vector<32x32xf32>, vector<8x32xf32> -> vector<8x32xf32>
    %c0_63 = arith.constant 0 : index
    %c0_64 = arith.constant 0 : index
    %138 = vector.load %arg7[%c0_63, %c0_64] : memref<1x32xf32, #tpu.memory_space<vmem>>, vector<1x32xf32>
    %139 = vector.broadcast %138 : vector<1x32xf32> to vector<8x32xf32>
    %140 = arith.addf %137, %139 : vector<8x32xf32>
    %c0_65 = arith.constant 0 : index
    %c0_66 = arith.constant 0 : index
    %c0_67 = arith.constant 0 : index
    %141 = vector.load %arg8[%c0_65, %c0_66, %c0_67] : memref<1x8x32xf32, #tpu.memory_space<vmem>>, vector<1x8x32xf32>
    %142 = vector.shape_cast %141 : vector<1x8x32xf32> to vector<8x32xf32>
    %143 = vector.shape_cast %140 : vector<8x32xf32> to vector<1x8x32xf32>
    tpu.vector_store %arg8[%c0_65, %c0_66, %c0_67], %143 {strides = array<i32>} : memref<1x8x32xf32, #tpu.memory_space<vmem>>, vector<1x8x32xf32>,
    return
  }
  func.func @transform_0(%arg0: i32, %arg1: i32) -> (i32, i32, i32) {
    %c0_i32 = arith.constant 0 : i32
    %c0_i32_0 = arith.constant 0 : i32
    %c0_i32_1 = arith.constant 0 : i32
    return %arg0, %c0_i32, %c0_i32_0 : i32, i32, i32
  }
  func.func @transform_1(%arg0: i32, %arg1: i32) -> (i32, i32, i32) {
    %c0_i32 = arith.constant 0 : i32
    %c0_i32_0 = arith.constant 0 : i32
    %c0_i32_1 = arith.constant 0 : i32
    return %arg0, %c0_i32, %c0_i32_0 : i32, i32, i32
  }
  func.func @transform_2(%arg0: i32, %arg1: i32) -> (i32, i32) {
    %c0_i32 = arith.constant 0 : i32
    %c0_i32_0 = arith.constant 0 : i32
    %c0_i32_1 = arith.constant 0 : i32
    return %c0_i32, %c0_i32_0 : i32, i32
  }
  func.func @transform_3(%arg0: i32, %arg1: i32) -> (i32, i32) {
    %c0_i32 = arith.constant 0 : i32
    %c0_i32_0 = arith.constant 0 : i32
    %c0_i32_1 = arith.constant 0 : i32
    return %c0_i32, %c0_i32_0 : i32, i32
  }
  func.func @transform_4(%arg0: i32, %arg1: i32) -> (i32, i32) {
    %c0_i32 = arith.constant 0 : i32
    %c0_i32_0 = arith.constant 0 : i32
    %c0_i32_1 = arith.constant 0 : i32
    return %c0_i32, %c0_i32_0 : i32, i32
  }
  func.func @transform_5(%arg0: i32, %arg1: i32) -> (i32, i32) {
    %c0_i32 = arith.constant 0 : i32
    %c0_i32_0 = arith.constant 0 : i32
    %c0_i32_1 = arith.constant 0 : i32
    return %c0_i32, %c0_i32_0 : i32, i32
  }
  func.func @transform_6(%arg0: i32, %arg1: i32) -> (i32, i32, i32) {
    %c0_i32 = arith.constant 0 : i32
    %c0_i32_0 = arith.constant 0 : i32
    return %arg0, %arg1, %c0_i32 : i32, i32, i32
  }
}

module attributes {stable_mosaic.version = 11 : i64} {
  func.func @_mhsa_kernel(%arg0: i32, %arg1: i32, %arg2: memref<1x8x32xf32, #tpu.memory_space<vmem>>, %arg3: memref<1x32x8xf32, #tpu.memory_space<vmem>>, %arg4: memref<32x64xf32, #tpu.memory_space<vmem>>, %arg5: memref<32x32xf32, #tpu.memory_space<vmem>>, %arg6: memref<32x32xf32, #tpu.memory_space<vmem>>, %arg7: memref<1x32xf32, #tpu.memory_space<vmem>>, %arg8: memref<1x8x32xf32, #tpu.memory_space<vmem>>, %arg9: memref<8x64xf32, #tpu.memory_space<vmem>>, %arg10: memref<32x8xf32, #tpu.memory_space<vmem>>, %arg11: memref<8x32xf32, #tpu.memory_space<vmem>>) attributes {dimension_semantics = [#tpu.dimension_semantics<parallel>, #tpu.dimension_semantics<arbitrary>], iteration_bounds = array<i64: 2, 1>, scalar_prefetch = 0 : i64, scratch_operands = 3 : i64, tpu.core_type = #tpu.core_type<tc>, window_params = [{transform_indices = @transform_0, window_bounds = array<i64: 1, 8, 32>}, {transform_indices = @transform_1, window_bounds = array<i64: 1, 32, 8>}, {pipeline_mode = #tpu.pipeline_mode<synchronous>, transform_indices = @transform_2, window_bounds = array<i64: 32, 64>}, {pipeline_mode = #tpu.pipeline_mode<synchronous>, transform_indices = @transform_3, window_bounds = array<i64: 32, 32>}, {pipeline_mode = #tpu.pipeline_mode<synchronous>, transform_indices = @transform_4, window_bounds = array<i64: 32, 32>}, {pipeline_mode = #tpu.pipeline_mode<synchronous>, transform_indices = @transform_5, window_bounds = array<i64: 1, 32>}, {transform_indices = @transform_6, window_bounds = array<i64: 1, 8, 32>}]} {
    %c0_i32 = arith.constant 0 : i32
    %0 = arith.cmpi eq, %arg1, %c0_i32 : i32
    %1 = arith.extui %0 : i1 to i32
    %c0_i32_0 = arith.constant 0 : i32
    %2 = arith.cmpi ne, %1, %c0_i32_0 : i32
    scf.if %2 {
      %c0_68 = arith.constant 0 : index
      %c0_69 = arith.constant 0 : index
      %c0_70 = arith.constant 0 : index
      %144 = vector.load %arg2[%c0_68, %c0_69, %c0_70] : memref<1x8x32xf32, #tpu.memory_space<vmem>>, vector<1x8x32xf32>
      %145 = vector.shape_cast %144 : vector<1x8x32xf32> to vector<8x32xf32>
      %c0_71 = arith.constant 0 : index
      %c0_72 = arith.constant 0 : index
      %146 = vector.load %arg4[%c0_71, %c0_72] : memref<32x64xf32, #tpu.memory_space<vmem>>, vector<32x64xf32>
      %cst_73 = arith.constant dense<0.000000e+00> : vector<8x64xf32>
      %147 = tpu.matmul %145, %146, %cst_73 {dimension_numbers = #tpu.dot_dimension_numbers<[1], [0], [0], [1], [0, 0, 1, 1], [], []>} : vector<8x32xf32>, vector<32x64xf32>, vector<8x64xf32> -> vector<8x64xf32>
      %c0_74 = arith.constant 0 : index
      %c0_75 = arith.constant 0 : index
      %148 = vector.load %arg9[%c0_74, %c0_75] : memref<8x64xf32, #tpu.memory_space<vmem>>, vector<8x64xf32>
      tpu.vector_store %arg9[%c0_74, %c0_75], %147 {strides = array<i32>} : memref<8x64xf32, #tpu.memory_space<vmem>>, vector<8x64xf32>,
      %c0_76 = arith.constant 0 : index
      %c0_77 = arith.constant 0 : index
      %c0_78 = arith.constant 0 : index
      %149 = vector.load %arg3[%c0_76, %c0_77, %c0_78] : memref<1x32x8xf32, #tpu.memory_space<vmem>>, vector<1x32x8xf32>
      %150 = vector.shape_cast %149 : vector<1x32x8xf32> to vector<32x8xf32>
      %c0_79 = arith.constant 0 : index
      %c0_80 = arith.constant 0 : index
      %151 = vector.load %arg5[%c0_79, %c0_80] : memref<32x32xf32, #tpu.memory_space<vmem>>, vector<32x32xf32>
      %cst_81 = arith.constant dense<0.000000e+00> : vector<32x8xf32>
      %152 = tpu.matmul %151, %150, %cst_81 {dimension_numbers = #tpu.dot_dimension_numbers<[1], [0], [0], [1], [0, 0, 1, 1], [], []>} : vector<32x32xf32>, vector<32x8xf32>, vector<32x8xf32> -> vector<32x8xf32>
      %c0_82 = arith.constant 0 : index
      %c0_83 = arith.constant 0 : index
      %153 = vector.load %arg10[%c0_82, %c0_83] : memref<32x8xf32, #tpu.memory_space<vmem>>, vector<32x8xf32>
      tpu.vector_store %arg10[%c0_82, %c0_83], %152 {strides = array<i32>} : memref<32x8xf32, #tpu.memory_space<vmem>>, vector<32x8xf32>,
    } else {
    }
    %c8_i32 = arith.constant 8 : i32
    %3 = arith.muli %arg1, %c8_i32 : i32
    %4 = tpu.assume_multiple %3, 8 : i32
    %5 = arith.index_cast %4 : i32 to index
    %c0 = arith.constant 0 : index
    %6 = vector.load %arg9[%5, %c0] : memref<8x64xf32, #tpu.memory_space<vmem>>, vector<8x4xf32>
    %c0_1 = arith.constant 0 : index
    %c0_2 = arith.constant 0 : index
    %7 = vector.load %arg10[%c0_1, %c0_2] : memref<32x8xf32, #tpu.memory_space<vmem>>, vector<4x8xf32>
    %cst = arith.constant dense<0.000000e+00> : vector<8x8xf32>
    %8 = tpu.matmul %6, %7, %cst {dimension_numbers = #tpu.dot_dimension_numbers<[1], [0], [0], [1], [0, 0, 1, 1], [], []>} : vector<8x4xf32>, vector<4x8xf32>, vector<8x8xf32> -> vector<8x8xf32>
    %cst_3 = arith.constant dense<0xFF800000> : vector<8xf32>
    %9 = vector.multi_reduction <maximumf>, %8, %cst_3 [1] : vector<8x8xf32> to vector<8xf32>
    %10 = vector.shape_cast %9 : vector<8xf32> to vector<8x1xf32>
    %11 = vector.broadcast %10 : vector<8x1xf32> to vector<8x8xf32>
    %12 = arith.subf %8, %11 : vector<8x8xf32>
    %13 = math.exp %12 : vector<8x8xf32>
    %cst_4 = arith.constant dense<0.000000e+00> : vector<8xf32>
    %14 = vector.multi_reduction <add>, %13, %cst_4 [1] : vector<8x8xf32> to vector<8xf32>
    %15 = vector.shape_cast %14 : vector<8xf32> to vector<8x1xf32>
    %c0_5 = arith.constant 0 : index
    %c32 = arith.constant 32 : index
    %16 = vector.load %arg9[%c0_5, %c32] : memref<8x64xf32, #tpu.memory_space<vmem>>, vector<8x4xf32>
    %cst_6 = arith.constant dense<0.000000e+00> : vector<8x4xf32>
    %17 = tpu.matmul %13, %16, %cst_6 {dimension_numbers = #tpu.dot_dimension_numbers<[1], [0], [0], [1], [0, 0, 1, 1], [], []>} : vector<8x8xf32>, vector<8x4xf32>, vector<8x4xf32> -> vector<8x4xf32>
    %18 = tpu.reciprocal %15 : vector<8x1xf32> -> vector<8x1xf32>
    %19 = vector.broadcast %18 : vector<8x1xf32> to vector<8x4xf32>
    %20 = arith.mulf %17, %19 : vector<8x4xf32>
    %21 = arith.index_cast %4 : i32 to index
    %c4 = arith.constant 4 : index
    %22 = vector.load %arg9[%21, %c4] : memref<8x64xf32, #tpu.memory_space<vmem>>, vector<8x4xf32>
    %c4_7 = arith.constant 4 : index
    %c0_8 = arith.constant 0 : index
    %23 = vector.load %arg10[%c4_7, %c0_8] : memref<32x8xf32, #tpu.memory_space<vmem>>, vector<4x8xf32>
    %cst_9 = arith.constant dense<0.000000e+00> : vector<8x8xf32>
    %24 = tpu.matmul %22, %23, %cst_9 {dimension_numbers = #tpu.dot_dimension_numbers<[1], [0], [0], [1], [0, 0, 1, 1], [], []>} : vector<8x4xf32>, vector<4x8xf32>, vector<8x8xf32> -> vector<8x8xf32>
    %cst_10 = arith.constant dense<0xFF800000> : vector<8xf32>
    %25 = vector.multi_reduction <maximumf>, %24, %cst_10 [1] : vector<8x8xf32> to vector<8xf32>
    %26 = vector.shape_cast %25 : vector<8xf32> to vector<8x1xf32>
    %27 = vector.broadcast %26 : vector<8x1xf32> to vector<8x8xf32>
    %28 = arith.subf %24, %27 : vector<8x8xf32>
    %29 = math.exp %28 : vector<8x8xf32>
    %cst_11 = arith.constant dense<0.000000e+00> : vector<8xf32>
    %30 = vector.multi_reduction <add>, %29, %cst_11 [1] : vector<8x8xf32> to vector<8xf32>
    %31 = vector.shape_cast %30 : vector<8xf32> to vector<8x1xf32>
    %c0_12 = arith.constant 0 : index
    %c36 = arith.constant 36 : index
    %32 = vector.load %arg9[%c0_12, %c36] : memref<8x64xf32, #tpu.memory_space<vmem>>, vector<8x4xf32>
    %cst_13 = arith.constant dense<0.000000e+00> : vector<8x4xf32>
    %33 = tpu.matmul %29, %32, %cst_13 {dimension_numbers = #tpu.dot_dimension_numbers<[1], [0], [0], [1], [0, 0, 1, 1], [], []>} : vector<8x8xf32>, vector<8x4xf32>, vector<8x4xf32> -> vector<8x4xf32>
    %34 = tpu.reciprocal %31 : vector<8x1xf32> -> vector<8x1xf32>
    %35 = vector.broadcast %34 : vector<8x1xf32> to vector<8x4xf32>
    %36 = arith.mulf %33, %35 : vector<8x4xf32>
    %37 = arith.index_cast %4 : i32 to index
    %c8 = arith.constant 8 : index
    %38 = vector.load %arg9[%37, %c8] : memref<8x64xf32, #tpu.memory_space<vmem>>, vector<8x4xf32>
    %c8_14 = arith.constant 8 : index
    %c0_15 = arith.constant 0 : index
    %39 = vector.load %arg10[%c8_14, %c0_15] : memref<32x8xf32, #tpu.memory_space<vmem>>, vector<4x8xf32>
    %cst_16 = arith.constant dense<0.000000e+00> : vector<8x8xf32>
    %40 = tpu.matmul %38, %39, %cst_16 {dimension_numbers = #tpu.dot_dimension_numbers<[1], [0], [0], [1], [0, 0, 1, 1], [], []>} : vector<8x4xf32>, vector<4x8xf32>, vector<8x8xf32> -> vector<8x8xf32>
    %cst_17 = arith.constant dense<0xFF800000> : vector<8xf32>
    %41 = vector.multi_reduction <maximumf>, %40, %cst_17 [1] : vector<8x8xf32> to vector<8xf32>
    %42 = vector.shape_cast %41 : vector<8xf32> to vector<8x1xf32>
    %43 = vector.broadcast %42 : vector<8x1xf32> to vector<8x8xf32>
    %44 = arith.subf %40, %43 : vector<8x8xf32>
    %45 = math.exp %44 : vector<8x8xf32>
    %cst_18 = arith.constant dense<0.000000e+00> : vector<8xf32>
    %46 = vector.multi_reduction <add>, %45, %cst_18 [1] : vector<8x8xf32> to vector<8xf32>
    %47 = vector.shape_cast %46 : vector<8xf32> to vector<8x1xf32>
    %c0_19 = arith.constant 0 : index
    %c40 = arith.constant 40 : index
    %48 = vector.load %arg9[%c0_19, %c40] : memref<8x64xf32, #tpu.memory_space<vmem>>, vector<8x4xf32>
    %cst_20 = arith.constant dense<0.000000e+00> : vector<8x4xf32>
    %49 = tpu.matmul %45, %48, %cst_20 {dimension_numbers = #tpu.dot_dimension_numbers<[1], [0], [0], [1], [0, 0, 1, 1], [], []>} : vector<8x8xf32>, vector<8x4xf32>, vector<8x4xf32> -> vector<8x4xf32>
    %50 = tpu.reciprocal %47 : vector<8x1xf32> -> vector<8x1xf32>
    %51 = vector.broadcast %50 : vector<8x1xf32> to vector<8x4xf32>
    %52 = arith.mulf %49, %51 : vector<8x4xf32>
    %53 = arith.index_cast %4 : i32 to index
    %c12 = arith.constant 12 : index
    %54 = vector.load %arg9[%53, %c12] : memref<8x64xf32, #tpu.memory_space<vmem>>, vector<8x4xf32>
    %c12_21 = arith.constant 12 : index
    %c0_22 = arith.constant 0 : index
    %55 = vector.load %arg10[%c12_21, %c0_22] : memref<32x8xf32, #tpu.memory_space<vmem>>, vector<4x8xf32>
    %cst_23 = arith.constant dense<0.000000e+00> : vector<8x8xf32>
    %56 = tpu.matmul %54, %55, %cst_23 {dimension_numbers = #tpu.dot_dimension_numbers<[1], [0], [0], [1], [0, 0, 1, 1], [], []>} : vector<8x4xf32>, vector<4x8xf32>, vector<8x8xf32> -> vector<8x8xf32>
    %cst_24 = arith.constant dense<0xFF800000> : vector<8xf32>
    %57 = vector.multi_reduction <maximumf>, %56, %cst_24 [1] : vector<8x8xf32> to vector<8xf32>
    %58 = vector.shape_cast %57 : vector<8xf32> to vector<8x1xf32>
    %59 = vector.broadcast %58 : vector<8x1xf32> to vector<8x8xf32>
    %60 = arith.subf %56, %59 : vector<8x8xf32>
    %61 = math.exp %60 : vector<8x8xf32>
    %cst_25 = arith.constant dense<0.000000e+00> : vector<8xf32>
    %62 = vector.multi_reduction <add>, %61, %cst_25 [1] : vector<8x8xf32> to vector<8xf32>
    %63 = vector.shape_cast %62 : vector<8xf32> to vector<8x1xf32>
    %c0_26 = arith.constant 0 : index
    %c44 = arith.constant 44 : index
    %64 = vector.load %arg9[%c0_26, %c44] : memref<8x64xf32, #tpu.memory_space<vmem>>, vector<8x4xf32>
    %cst_27 = arith.constant dense<0.000000e+00> : vector<8x4xf32>
    %65 = tpu.matmul %61, %64, %cst_27 {dimension_numbers = #tpu.dot_dimension_numbers<[1], [0], [0], [1], [0, 0, 1, 1], [], []>} : vector<8x8xf32>, vector<8x4xf32>, vector<8x4xf32> -> vector<8x4xf32>
    %66 = tpu.reciprocal %63 : vector<8x1xf32> -> vector<8x1xf32>
    %67 = vector.broadcast %66 : vector<8x1xf32> to vector<8x4xf32>
    %68 = arith.mulf %65, %67 : vector<8x4xf32>
    %69 = arith.index_cast %4 : i32 to index
    %c16 = arith.constant 16 : index
    %70 = vector.load %arg9[%69, %c16] : memref<8x64xf32, #tpu.memory_space<vmem>>, vector<8x4xf32>
    %c16_28 = arith.constant 16 : index
    %c0_29 = arith.constant 0 : index
    %71 = vector.load %arg10[%c16_28, %c0_29] : memref<32x8xf32, #tpu.memory_space<vmem>>, vector<4x8xf32>
    %cst_30 = arith.constant dense<0.000000e+00> : vector<8x8xf32>
    %72 = tpu.matmul %70, %71, %cst_30 {dimension_numbers = #tpu.dot_dimension_numbers<[1], [0], [0], [1], [0, 0, 1, 1], [], []>} : vector<8x4xf32>, vector<4x8xf32>, vector<8x8xf32> -> vector<8x8xf32>
    %cst_31 = arith.constant dense<0xFF800000> : vector<8xf32>
    %73 = vector.multi_reduction <maximumf>, %72, %cst_31 [1] : vector<8x8xf32> to vector<8xf32>
    %74 = vector.shape_cast %73 : vector<8xf32> to vector<8x1xf32>
    %75 = vector.broadcast %74 : vector<8x1xf32> to vector<8x8xf32>
    %76 = arith.subf %72, %75 : vector<8x8xf32>
    %77 = math.exp %76 : vector<8x8xf32>
    %cst_32 = arith.constant dense<0.000000e+00> : vector<8xf32>
    %78 = vector.multi_reduction <add>, %77, %cst_32 [1] : vector<8x8xf32> to vector<8xf32>
    %79 = vector.shape_cast %78 : vector<8xf32> to vector<8x1xf32>
    %c0_33 = arith.constant 0 : index
    %c48 = arith.constant 48 : index
    %80 = vector.load %arg9[%c0_33, %c48] : memref<8x64xf32, #tpu.memory_space<vmem>>, vector<8x4xf32>
    %cst_34 = arith.constant dense<0.000000e+00> : vector<8x4xf32>
    %81 = tpu.matmul %77, %80, %cst_34 {dimension_numbers = #tpu.dot_dimension_numbers<[1], [0], [0], [1], [0, 0, 1, 1], [], []>} : vector<8x8xf32>, vector<8x4xf32>, vector<8x4xf32> -> vector<8x4xf32>
    %82 = tpu.reciprocal %79 : vector<8x1xf32> -> vector<8x1xf32>
    %83 = vector.broadcast %82 : vector<8x1xf32> to vector<8x4xf32>
    %84 = arith.mulf %81, %83 : vector<8x4xf32>
    %85 = arith.index_cast %4 : i32 to index
    %c20 = arith.constant 20 : index
    %86 = vector.load %arg9[%85, %c20] : memref<8x64xf32, #tpu.memory_space<vmem>>, vector<8x4xf32>
    %c20_35 = arith.constant 20 : index
    %c0_36 = arith.constant 0 : index
    %87 = vector.load %arg10[%c20_35, %c0_36] : memref<32x8xf32, #tpu.memory_space<vmem>>, vector<4x8xf32>
    %cst_37 = arith.constant dense<0.000000e+00> : vector<8x8xf32>
    %88 = tpu.matmul %86, %87, %cst_37 {dimension_numbers = #tpu.dot_dimension_numbers<[1], [0], [0], [1], [0, 0, 1, 1], [], []>} : vector<8x4xf32>, vector<4x8xf32>, vector<8x8xf32> -> vector<8x8xf32>
    %cst_38 = arith.constant dense<0xFF800000> : vector<8xf32>
    %89 = vector.multi_reduction <maximumf>, %88, %cst_38 [1] : vector<8x8xf32> to vector<8xf32>
    %90 = vector.shape_cast %89 : vector<8xf32> to vector<8x1xf32>
    %91 = vector.broadcast %90 : vector<8x1xf32> to vector<8x8xf32>
    %92 = arith.subf %88, %91 : vector<8x8xf32>
    %93 = math.exp %92 : vector<8x8xf32>
    %cst_39 = arith.constant dense<0.000000e+00> : vector<8xf32>
    %94 = vector.multi_reduction <add>, %93, %cst_39 [1] : vector<8x8xf32> to vector<8xf32>
    %95 = vector.shape_cast %94 : vector<8xf32> to vector<8x1xf32>
    %c0_40 = arith.constant 0 : index
    %c52 = arith.constant 52 : index
    %96 = vector.load %arg9[%c0_40, %c52] : memref<8x64xf32, #tpu.memory_space<vmem>>, vector<8x4xf32>
    %cst_41 = arith.constant dense<0.000000e+00> : vector<8x4xf32>
    %97 = tpu.matmul %93, %96, %cst_41 {dimension_numbers = #tpu.dot_dimension_numbers<[1], [0], [0], [1], [0, 0, 1, 1], [], []>} : vector<8x8xf32>, vector<8x4xf32>, vector<8x4xf32> -> vector<8x4xf32>
    %98 = tpu.reciprocal %95 : vector<8x1xf32> -> vector<8x1xf32>
    %99 = vector.broadcast %98 : vector<8x1xf32> to vector<8x4xf32>
    %100 = arith.mulf %97, %99 : vector<8x4xf32>
    %101 = arith.index_cast %4 : i32 to index
    %c24 = arith.constant 24 : index
    %102 = vector.load %arg9[%101, %c24] : memref<8x64xf32, #tpu.memory_space<vmem>>, vector<8x4xf32>
    %c24_42 = arith.constant 24 : index
    %c0_43 = arith.constant 0 : index
    %103 = vector.load %arg10[%c24_42, %c0_43] : memref<32x8xf32, #tpu.memory_space<vmem>>, vector<4x8xf32>
    %cst_44 = arith.constant dense<0.000000e+00> : vector<8x8xf32>
    %104 = tpu.matmul %102, %103, %cst_44 {dimension_numbers = #tpu.dot_dimension_numbers<[1], [0], [0], [1], [0, 0, 1, 1], [], []>} : vector<8x4xf32>, vector<4x8xf32>, vector<8x8xf32> -> vector<8x8xf32>
    %cst_45 = arith.constant dense<0xFF800000> : vector<8xf32>
    %105 = vector.multi_reduction <maximumf>, %104, %cst_45 [1] : vector<8x8xf32> to vector<8xf32>
    %106 = vector.shape_cast %105 : vector<8xf32> to vector<8x1xf32>
    %107 = vector.broadcast %106 : vector<8x1xf32> to vector<8x8xf32>
    %108 = arith.subf %104, %107 : vector<8x8xf32>
    %109 = math.exp %108 : vector<8x8xf32>
    %cst_46 = arith.constant dense<0.000000e+00> : vector<8xf32>
    %110 = vector.multi_reduction <add>, %109, %cst_46 [1] : vector<8x8xf32> to vector<8xf32>
    %111 = vector.shape_cast %110 : vector<8xf32> to vector<8x1xf32>
    %c0_47 = arith.constant 0 : index
    %c56 = arith.constant 56 : index
    %112 = vector.load %arg9[%c0_47, %c56] : memref<8x64xf32, #tpu.memory_space<vmem>>, vector<8x4xf32>
    %cst_48 = arith.constant dense<0.000000e+00> : vector<8x4xf32>
    %113 = tpu.matmul %109, %112, %cst_48 {dimension_numbers = #tpu.dot_dimension_numbers<[1], [0], [0], [1], [0, 0, 1, 1], [], []>} : vector<8x8xf32>, vector<8x4xf32>, vector<8x4xf32> -> vector<8x4xf32>
    %114 = tpu.reciprocal %111 : vector<8x1xf32> -> vector<8x1xf32>
    %115 = vector.broadcast %114 : vector<8x1xf32> to vector<8x4xf32>
    %116 = arith.mulf %113, %115 : vector<8x4xf32>
    %117 = arith.index_cast %4 : i32 to index
    %c28 = arith.constant 28 : index
    %118 = vector.load %arg9[%117, %c28] : memref<8x64xf32, #tpu.memory_space<vmem>>, vector<8x4xf32>
    %c28_49 = arith.constant 28 : index
    %c0_50 = arith.constant 0 : index
    %119 = vector.load %arg10[%c28_49, %c0_50] : memref<32x8xf32, #tpu.memory_space<vmem>>, vector<4x8xf32>
    %cst_51 = arith.constant dense<0.000000e+00> : vector<8x8xf32>
    %120 = tpu.matmul %118, %119, %cst_51 {dimension_numbers = #tpu.dot_dimension_numbers<[1], [0], [0], [1], [0, 0, 1, 1], [], []>} : vector<8x4xf32>, vector<4x8xf32>, vector<8x8xf32> -> vector<8x8xf32>
    %cst_52 = arith.constant dense<0xFF800000> : vector<8xf32>
    %121 = vector.multi_reduction <maximumf>, %120, %cst_52 [1] : vector<8x8xf32> to vector<8xf32>
    %122 = vector.shape_cast %121 : vector<8xf32> to vector<8x1xf32>
    %123 = vector.broadcast %122 : vector<8x1xf32> to vector<8x8xf32>
    %124 = arith.subf %120, %123 : vector<8x8xf32>
    %125 = math.exp %124 : vector<8x8xf32>
    %cst_53 = arith.constant dense<0.000000e+00> : vector<8xf32>
    %126 = vector.multi_reduction <add>, %125, %cst_53 [1] : vector<8x8xf32> to vector<8xf32>
    %127 = vector.shape_cast %126 : vector<8xf32> to vector<8x1xf32>
    %c0_54 = arith.constant 0 : index
    %c60 = arith.constant 60 : index
    %128 = vector.load %arg9[%c0_54, %c60] : memref<8x64xf32, #tpu.memory_space<vmem>>, vector<8x4xf32>
    %cst_55 = arith.constant dense<0.000000e+00> : vector<8x4xf32>
    %129 = tpu.matmul %125, %128, %cst_55 {dimension_numbers = #tpu.dot_dimension_numbers<[1], [0], [0], [1], [0, 0, 1, 1], [], []>} : vector<8x8xf32>, vector<8x4xf32>, vector<8x4xf32> -> vector<8x4xf32>
    %130 = tpu.reciprocal %127 : vector<8x1xf32> -> vector<8x1xf32>
    %131 = vector.broadcast %130 : vector<8x1xf32> to vector<8x4xf32>
    %132 = arith.mulf %129, %131 : vector<8x4xf32>
    %133 = tpu.concatenate %20, %36, %52, %68, %84, %100, %116, %132 in 1 : vector<8x4xf32>, vector<8x4xf32>, vector<8x4xf32>, vector<8x4xf32>, vector<8x4xf32>, vector<8x4xf32>, vector<8x4xf32>, vector<8x4xf32> -> vector<8x32xf32>
    %c0_56 = arith.constant 0 : index
    %c0_57 = arith.constant 0 : index
    %134 = vector.load %arg11[%c0_56, %c0_57] : memref<8x32xf32, #tpu.memory_space<vmem>>, vector<8x32xf32>
    tpu.vector_store %arg11[%c0_56, %c0_57], %133 {strides = array<i32>} : memref<8x32xf32, #tpu.memory_space<vmem>>, vector<8x32xf32>,
    %c0_58 = arith.constant 0 : index
    %c0_59 = arith.constant 0 : index
    %135 = vector.load %arg11[%c0_58, %c0_59] : memref<8x32xf32, #tpu.memory_space<vmem>>, vector<8x32xf32>
    %c0_60 = arith.constant 0 : index
    %c0_61 = arith.constant 0 : index
    %136 = vector.load %arg6[%c0_60, %c0_61] : memref<32x32xf32, #tpu.memory_space<vmem>>, vector<32x32xf32>
    %cst_62 = arith.constant dense<0.000000e+00> : vector<8x32xf32>
    %137 = tpu.matmul %135, %136, %cst_62 {dimension_numbers = #tpu.dot_dimension_numbers<[1], [0], [0], [1], [0, 0, 1, 1], [], []>} : vector<8x32xf32>, vector<32x32xf32>, vector<8x32xf32> -> vector<8x32xf32>
    %c0_63 = arith.constant 0 : index
    %c0_64 = arith.constant 0 : index
    %138 = vector.load %arg7[%c0_63, %c0_64] : memref<1x32xf32, #tpu.memory_space<vmem>>, vector<1x32xf32>
    %139 = vector.broadcast %138 : vector<1x32xf32> to vector<8x32xf32>
    %140 = arith.addf %137, %139 : vector<8x32xf32>
    %c0_65 = arith.constant 0 : index
    %c0_66 = arith.constant 0 : index
    %c0_67 = arith.constant 0 : index
    %141 = vector.load %arg8[%c0_65, %c0_66, %c0_67] : memref<1x8x32xf32, #tpu.memory_space<vmem>>, vector<1x8x32xf32>
    %142 = vector.shape_cast %141 : vector<1x8x32xf32> to vector<8x32xf32>
    %143 = vector.shape_cast %140 : vector<8x32xf32> to vector<1x8x32xf32>
    tpu.vector_store %arg8[%c0_65, %c0_66, %c0_67], %143 {strides = array<i32>} : memref<1x8x32xf32, #tpu.memory_space<vmem>>, vector<1x8x32xf32>,
    return
  }
  func.func @transform_0(%arg0: i32, %arg1: i32) -> (i32, i32, i32) {
    %c0_i32 = arith.constant 0 : i32
    %c0_i32_0 = arith.constant 0 : i32
    %c0_i32_1 = arith.constant 0 : i32
    return %arg0, %c0_i32, %c0_i32_0 : i32, i32, i32
  }
  func.func @transform_1(%arg0: i32, %arg1: i32) -> (i32, i32, i32) {
    %c0_i32 = arith.constant 0 : i32
    %c0_i32_0 = arith.constant 0 : i32
    %c0_i32_1 = arith.constant 0 : i32
    return %arg0, %c0_i32, %c0_i32_0 : i32, i32, i32
  }
  func.func @transform_2(%arg0: i32, %arg1: i32) -> (i32, i32) {
    %c0_i32 = arith.constant 0 : i32
    %c0_i32_0 = arith.constant 0 : i32
    %c0_i32_1 = arith.constant 0 : i32
    return %c0_i32, %c0_i32_0 : i32, i32
  }
  func.func @transform_3(%arg0: i32, %arg1: i32) -> (i32, i32) {
    %c0_i32 = arith.constant 0 : i32
    %c0_i32_0 = arith.constant 0 : i32
    %c0_i32_1 = arith.constant 0 : i32
    return %c0_i32, %c0_i32_0 : i32, i32
  }
  func.func @transform_4(%arg0: i32, %arg1: i32) -> (i32, i32) {
    %c0_i32 = arith.constant 0 : i32
    %c0_i32_0 = arith.constant 0 : i32
    %c0_i32_1 = arith.constant 0 : i32
    return %c0_i32, %c0_i32_0 : i32, i32
  }
  func.func @transform_5(%arg0: i32, %arg1: i32) -> (i32, i32) {
    %c0_i32 = arith.constant 0 : i32
    %c0_i32_0 = arith.constant 0 : i32
    %c0_i32_1 = arith.constant 0 : i32
    return %c0_i32, %c0_i32_0 : i32, i32
  }
  func.func @transform_6(%arg0: i32, %arg1: i32) -> (i32, i32, i32) {
    %c0_i32 = arith.constant 0 : i32
    %c0_i32_0 = arith.constant 0 : i32
    return %arg0, %arg1, %c0_i32 : i32, i32, i32
  }
}

</mosaic_0001>

<llo_original>
// kernel: tpu_custom_call.1
$region0: #{tpu_custom_call.1}
  #allocation0 [shape = 'u32[]', space=smem, size = 0x4, offset = 0x4, fixed_abs, tag = 'smem constant byte address 0x4 - core index']
  #allocation1 [shape = 'u32[144,128]{1,0:T(1,128)}', space=vmem, size = 0x12000, scoped, tag = 'internal scratch']
  #allocation2 [shape = 'f32[8,64]{1,0:T(8,128)}', space=vmem, size = 0x1000, scoped, tag = 'scratch operand']
  #allocation3 [shape = 'f32[32,8]{1,0:T(8,128)}', space=vmem, size = 0x4000, scoped, tag = 'scratch operand']
  #allocation4 [shape = 'f32[8,32]{1,0:T(8,128)}', space=vmem, size = 0x1000, scoped, tag = 'scratch operand']
  %s0 = inlined_call_operand.vmem [shape: f32[2,8,32], index: 0, kind: input, shape index: {}]
  %s1 = inlined_call_operand.vmem [shape: f32[2,32,8], index: 1, kind: input, shape index: {}]
  %s2 = inlined_call_operand.vmem [shape: f32[32,64], index: 2, kind: input, shape index: {}]
  %s3 = inlined_call_operand.vmem [shape: f32[32,32], index: 3, kind: input, shape index: {}]
  %s4 = inlined_call_operand.hbm [shape: f32[32,32], index: 4, kind: input, shape index: {}]
  %s5 = inlined_call_operand.vmem [shape: f32[1,32], index: 5, kind: input, shape index: {}]
  %s6 = inlined_call_operand.hbm [shape: f32[2,8,32], index: 6, kind: output, shape index: {}]
  %s7 = sld [smem:[#allocation0]]
  $region65: #{tpu_custom_call.1} parent=0
    _
  %s9 = ssub.s32 1, %s7
  %s10 = scalar_select 0, %s9, %s7
  $region1: #{tpu_custom_call.1} parent=0
    #allocation5 [shape = 'u8[16384]{0}', space=vmem, size = 0x4000, scoped, tag = 'input window, operand 4, single buffered']
    #allocation6 [shape = 's32[2]{0}', space=sflag, size = 0x8, scoped, tag = 'scoped memory for tpu_custom_call.1']
    #allocation7 [shape = 's32[2]{0}', space=sflag, size = 0x8, scoped, tag = 'scoped memory for tpu_custom_call.1']
    #allocation8 [shape = 'u8[8192]{0}', space=vmem, size = 0x2000, scoped, tag = 'output window, operand 0']
    %11 = vsyncpa [#allocation6], 0
    %12 = vsyncpa [#allocation7], 0
    %s13 = scalar_lea.sflag [#allocation7], 1
    %14 = vsyncpa %s13, 0
    loop: start=0, step=1, limit=4
    $region2: #{tpu_custom_call.1} parent=1 // loop_pre_header
      _
    $region3: #{tpu_custom_call.1} parent=1 // loop_header
      %s16 = sphi 0, %s20
      %p17 = scmp.ge.s32.totalorder %s16, 4
      %s23 = sphi 0, %s35
      %s24 = sphi 0, %s31
      %s25 = sphi 0, %s23
      %s26 = sphi 0, %s24
      %s27 = sphi 0, %s25
      %s28 = sphi 0, %s26
      %s38 = sphi 0, %s40
      %s41 = sphi 0, %s38
      %s42 = sphi 0, %s41
      %s58 = sphi 0, %s42
      %s64 = sphi 0, %s66
      %s67 = sphi 0, %s64
      %s68 = sphi 0, %s67
      %s84 = sphi 0, %s68
      %s88 = sphi 0, %s88
      %s90 = sphi 0, %s88
      %s91 = sphi 0, %s90
      %s105 = sphi 0, %s91
      %s109 = sphi 0, %s109
      %s111 = sphi 0, %s109
      %s112 = sphi 0, %s111
      %s126 = sphi 0, %s112
      %s130 = sphi 0, %s130
      %s132 = sphi 0, %s130
      %s133 = sphi 0, %s132
      %s147 = sphi 0, %s133
      %s151 = sphi 0, %s151
      %s153 = sphi 0, %s151
      %s154 = sphi 0, %s153
      %s168 = sphi 0, %s154
      %s176 = sphi 0, %s178
      %s179 = sphi 0, %s176
      %s180 = sphi 0, %s179
      %s196 = sphi 0, %s180
    $region4: #{tpu_custom_call.1} parent=1 // loop_header_branch
      %19 = sbr.rel (%p17) target = $region8
    $region5: #{tpu_custom_call.1} parent=1 // loop_body
      %s21 = ssub.s32 %s16, 1
      %s22 = ssub.s32 %s16, 2
      %s29 = sadd.s32 1, %s24
      %p30 = scmp.ge.s32.totalorder %s29, 1
      %s31 = scalar_select %p30, 0, %s29
      %s32 = sadd.s32 1, %s23
      %s33 = scalar_select %p30, %s32, %s23
      %p34 = scmp.ge.s32.totalorder %s33, 2
      %s35 = scalar_select %p34, 0, %s33
      %s36 = ssub.s32 %s23, %s35
      %p37 = scmp.eq.s32.totalorder %s36, 0
      %s39 = sadd.s32 %s38, 1
      %s40 = scalar_select %p37, %s38, %s39
      %p43 = pneg %p37
      %p44 = scmp.eq.s32.totalorder %s16, 1
      %p45 = por %p43, %p44
      %p46 = scmp.ne.s32.totalorder %s38, %s41
      %p47 = scmp.eq.s32.totalorder %s16, 0
      %p48 = por %p46, %p47
      %p49 = scmp.ne.s32.totalorder %s38, %s41
      %p50 = scmp.eq.s32.totalorder %s21, 1
      %p51 = por %p49, %p50
      %p52 = scmp.ne.s32.totalorder %s41, %s42
      %p53 = scmp.eq.s32.totalorder %s21, 0
      %p54 = por %p52, %p53
      %p55 = scmp.ne.s32.totalorder %s41, %s42
      %p56 = scmp.eq.s32.totalorder %s22, 1
      %p57 = por %p55, %p56
      %p59 = scmp.ne.s32.totalorder %s42, %s58
      %p60 = scmp.eq.s32.totalorder %s22, 0
      %p61 = por %p59, %p60
      %s62 = ssub.s32 %s23, %s35
      %p63 = scmp.eq.s32.totalorder %s62, 0
      %s65 = sadd.s32 %s64, 1
      %s66 = scalar_select %p63, %s64, %s65
      %p69 = pneg %p63
      %p70 = scmp.eq.s32.totalorder %s16, 1
      %p71 = por %p69, %p70
      %p72 = scmp.ne.s32.totalorder %s64, %s67
      %p73 = scmp.eq.s32.totalorder %s16, 0
      %p74 = por %p72, %p73
      %p75 = scmp.ne.s32.totalorder %s64, %s67
      %p76 = scmp.eq.s32.totalorder %s21, 1
      %p77 = por %p75, %p76
      %p78 = scmp.ne.s32.totalorder %s67, %s68
      %p79 = scmp.eq.s32.totalorder %s21, 0
      %p80 = por %p78, %p79
      %p81 = scmp.ne.s32.totalorder %s67, %s68
      %p82 = scmp.eq.s32.totalorder %s22, 1
      %p83 = por %p81, %p82
      %p85 = scmp.ne.s32.totalorder %s68, %s84
      %p86 = scmp.eq.s32.totalorder %s22, 0
      %p87 = por %p85, %p86
      %s89 = sadd.s32 %s88, 1
      %p92 = scmp.eq.s32.totalorder %s16, 1
      %p93 = scmp.ne.s32.totalorder %s88, %s90
      %p94 = scmp.eq.s32.totalorder %s16, 0
      %p95 = por %p93, %p94
      %p96 = scmp.ne.s32.totalorder %s88, %s90
      %p97 = scmp.eq.s32.totalorder %s21, 1
      %p98 = por %p96, %p97
      %p99 = scmp.ne.s32.totalorder %s90, %s91
      %p100 = scmp.eq.s32.totalorder %s21, 0
      %p101 = por %p99, %p100
      %p102 = scmp.ne.s32.totalorder %s90, %s91
      %p103 = scmp.eq.s32.totalorder %s22, 1
      %p104 = por %p102, %p103
      %p106 = scmp.ne.s32.totalorder %s91, %s105
      %p107 = scmp.eq.s32.totalorder %s22, 0
      %p108 = por %p106, %p107
      %s110 = sadd.s32 %s109, 1
      %p113 = scmp.eq.s32.totalorder %s16, 1
      %p114 = scmp.ne.s32.totalorder %s109, %s111
      %p115 = scmp.eq.s32.totalorder %s16, 0
      %p116 = por %p114, %p115
      %p117 = scmp.ne.s32.totalorder %s109, %s111
      %p118 = scmp.eq.s32.totalorder %s21, 1
      %p119 = por %p117, %p118
      %p120 = scmp.ne.s32.totalorder %s111, %s112
      %p121 = scmp.eq.s32.totalorder %s21, 0
      %p122 = por %p120, %p121
      %p123 = scmp.ne.s32.totalorder %s111, %s112
      %p124 = scmp.eq.s32.totalorder %s22, 1
      %p125 = por %p123, %p124
      %p127 = scmp.ne.s32.totalorder %s112, %s126
      %p128 = scmp.eq.s32.totalorder %s22, 0
      %p129 = por %p127, %p128
      %s131 = sadd.s32 %s130, 1
      %p134 = scmp.eq.s32.totalorder %s16, 1
      %p135 = scmp.ne.s32.totalorder %s130, %s132
      %p136 = scmp.eq.s32.totalorder %s16, 0
      %p137 = por %p135, %p136
      %p138 = scmp.ne.s32.totalorder %s130, %s132
      %p139 = scmp.eq.s32.totalorder %s21, 1
      %p140 = por %p138, %p139
      %p141 = scmp.ne.s32.totalorder %s132, %s133
      %p142 = scmp.eq.s32.totalorder %s21, 0
      %p143 = por %p141, %p142
      %p144 = scmp.ne.s32.totalorder %s132, %s133
      %p145 = scmp.eq.s32.totalorder %s22, 1
      %p146 = por %p144, %p145
      %p148 = scmp.ne.s32.totalorder %s133, %s147
      %p149 = scmp.eq.s32.totalorder %s22, 0
      %p150 = por %p148, %p149
      %s152 = sadd.s32 %s151, 1
      %p155 = scmp.eq.s32.totalorder %s16, 1
      %p156 = scmp.ne.s32.totalorder %s151, %s153
      %p157 = scmp.eq.s32.totalorder %s16, 0
      %p158 = por %p156, %p157
      %p159 = scmp.ne.s32.totalorder %s151, %s153
      %p160 = scmp.eq.s32.totalorder %s21, 1
      %p161 = por %p159, %p160
      %p162 = scmp.ne.s32.totalorder %s153, %s154
      %p163 = scmp.eq.s32.totalorder %s21, 0
      %p164 = por %p162, %p163
      %p165 = scmp.ne.s32.totalorder %s153, %s154
      %p166 = scmp.eq.s32.totalorder %s22, 1
      %p167 = por %p165, %p166
      %p169 = scmp.ne.s32.totalorder %s154, %s168
      %p170 = scmp.eq.s32.totalorder %s22, 0
      %p171 = por %p169, %p170
      %s172 = ssub.s32 %s23, %s35
      %s173 = ssub.s32 %s24, %s31
      %s174 = sor.u32 %s172, %s173
      %p175 = scmp.eq.s32.totalorder %s174, 0
      %s177 = sadd.s32 %s176, 1
      %s178 = scalar_select %p175, %s176, %s177
      %p181 = pneg %p175
      %p182 = scmp.eq.s32.totalorder %s16, 1
      %p183 = por %p181, %p182
      %p184 = scmp.ne.s32.totalorder %s176, %s179
      %p185 = scmp.eq.s32.totalorder %s16, 0
      %p186 = por %p184, %p185
      %p187 = scmp.ne.s32.totalorder %s176, %s179
      %p188 = scmp.eq.s32.totalorder %s21, 1
      %p189 = por %p187, %p188
      %p190 = scmp.ne.s32.totalorder %s179, %s180
      %p191 = scmp.eq.s32.totalorder %s21, 0
      %p192 = por %p190, %p191
      %p193 = scmp.ne.s32.totalorder %s179, %s180
      %p194 = scmp.eq.s32.totalorder %s22, 1
      %p195 = por %p193, %p194
      %p197 = scmp.ne.s32.totalorder %s180, %s196
      %p198 = scmp.eq.s32.totalorder %s22, 0
      %p199 = por %p197, %p198
      %p200 = scmp.le.s32.totalorder 1, %s16
      %p201 = scmp.lt.s32.totalorder %s16, 3
      %p202 = pnand %p200, %p201
      %p203 = pneg %p202
      // Predicated region
      $region9: #{tpu_custom_call.1} parent=5 // pred_check
        _
      $region10: #{tpu_custom_call.1} parent=5 // pred_check_branch
        %205 = sbr.rel (%p202) target = $region12
      $region11: #{tpu_custom_call.1} parent=5 // pred_region
        %s206 = ssub.s32 %s16, 1
        // Predicated region
        $region13: #{tpu_custom_call.1} parent=11 // pred_check
          %p207 = pneg %p101
        $region14: #{tpu_custom_call.1} parent=11 // pred_check_branch
          %209 = sbr.rel (%p207) target = $region16
        $region15: #{tpu_custom_call.1} parent=11 // pred_region
          _
        $region16: #{tpu_custom_call.1} parent=11 // pred_fallthru
          _
        // Predicated region
        $region17: #{tpu_custom_call.1} parent=11 // pred_check
          %p210 = pneg %p122
        $region18: #{tpu_custom_call.1} parent=11 // pred_check_branch
          %212 = sbr.rel (%p210) target = $region20
        $region19: #{tpu_custom_call.1} parent=11 // pred_region
          _
        $region20: #{tpu_custom_call.1} parent=11 // pred_fallthru
          _
        // Predicated region
        $region21: #{tpu_custom_call.1} parent=11 // pred_check
          %p213 = pneg %p143
        $region22: #{tpu_custom_call.1} parent=11 // pred_check_branch
          %215 = sbr.rel (%p213) target = $region24
        $region23: #{tpu_custom_call.1} parent=11 // pred_region
          %s217 = ssub.s32 512, 512
          %218 = vsyncadd [#allocation6], %s217
          %s219 = sshll.u32 [#allocation5], 4
          %s220 = int_to_ptr.vmem [resolvable:$true] %s219
          %225 = dma.hbm_to_vmem [thread:$0]  %s4, 512, %s220, [#allocation6], 128, 128, 8
        $region24: #{tpu_custom_call.1} parent=11 // pred_fallthru
          _
        // Predicated region
        $region25: #{tpu_custom_call.1} parent=11 // pred_check
          %p226 = pneg %p164
        $region26: #{tpu_custom_call.1} parent=11 // pred_check_branch
          %228 = sbr.rel (%p226) target = $region28
        $region27: #{tpu_custom_call.1} parent=11 // pred_region
          _
        $region28: #{tpu_custom_call.1} parent=11 // pred_fallthru
          _
      $region12: #{tpu_custom_call.1} parent=5 // pred_fallthru
        _
      %p229 = scmp.lt.s32.totalorder %s16, 2
      // Predicated region
      $region29: #{tpu_custom_call.1} parent=5 // pred_check
        %p230 = pneg %p229
      $region30: #{tpu_custom_call.1} parent=5 // pred_check_branch
        %232 = sbr.rel (%p230) target = $region32
      $region31: #{tpu_custom_call.1} parent=5 // pred_region
        // Predicated region
        $region33: #{tpu_custom_call.1} parent=31 // pred_check
          %p233 = pneg %p48
        $region34: #{tpu_custom_call.1} parent=31 // pred_check_branch
          %235 = sbr.rel (%p233) target = $region36
        $region35: #{tpu_custom_call.1} parent=31 // pred_region
          %p236 = scmp.lt.s32.totalorder %s23, 1
          %s237 = scalar_select %p236, %s23, 1
          %s238 = smul.addr %s237, 8
          %s239 = scalar_lea.vmem %s0, %s238
        $region36: #{tpu_custom_call.1} parent=31 // pred_fallthru
          _
        // Predicated region
        $region37: #{tpu_custom_call.1} parent=31 // pred_check
          %p240 = pneg %p74
        $region38: #{tpu_custom_call.1} parent=31 // pred_check_branch
          %242 = sbr.rel (%p240) target = $region40
        $region39: #{tpu_custom_call.1} parent=31 // pred_region
          %p243 = scmp.lt.s32.totalorder %s23, 1
          %s244 = scalar_select %p243, %s23, 1
          %s245 = smul.addr %s244, 4
          %s246 = smul.addr %s245, 8
          %s247 = scalar_lea.vmem %s1, %s246
        $region40: #{tpu_custom_call.1} parent=31 // pred_fallthru
          _
      $region32: #{tpu_custom_call.1} parent=5 // pred_fallthru
        _
      %p248 = scmp.le.s32.totalorder 1, %s16
      %p249 = scmp.lt.s32.totalorder %s16, 3
      %p250 = pnand %p248, %p249
      %p251 = pneg %p250
      // Predicated region
      $region41: #{tpu_custom_call.1} parent=5 // pred_check
        _
      $region42: #{tpu_custom_call.1} parent=5 // pred_check_branch
        %253 = sbr.rel (%p250) target = $region44
      $region43: #{tpu_custom_call.1} parent=5 // pred_region
        %s254 = ssub.s32 %s16, 1
        // Predicated region
        $region45: #{tpu_custom_call.1} parent=43 // pred_check
          %p255 = pneg %p143
        $region46: #{tpu_custom_call.1} parent=43 // pred_check_branch
          %257 = sbr.rel (%p255) target = $region48
        $region47: #{tpu_custom_call.1} parent=43 // pred_region
          %258 = dma.done [#allocation6], 512
        $region48: #{tpu_custom_call.1} parent=43 // pred_fallthru
          _
        %p259 = scmp.lt.s32.totalorder %s25, 1
        %s260 = scalar_select %p259, %s25, 1
        %s261 = smul.addr %s260, 8
        %s262 = scalar_lea.vmem %s0, %s261
        %p263 = pneg %p54
        %p264 = pneg %p51
        %p265 = scmp.lt.s32.totalorder %s25, 1
        %s266 = scalar_select %p265, %s25, 1
        %s267 = smul.addr %s266, 4
        %s268 = smul.addr %s267, 8
        %s269 = scalar_lea.vmem %s1, %s268
        %p270 = pneg %p80
        %p271 = pneg %p77
        %p272 = pneg %p101
        %p273 = pneg %p98
        %p274 = pneg %p122
        %p275 = pneg %p119
        %p276 = pneg %p143
        %p277 = pneg %p140
        %p278 = pneg %p164
        %p279 = pneg %p161
        %p280 = pneg %p192
        %p281 = pneg %p189
        %s282 = sand.u32 %s179, 1
        %s283 = scalar_lea.sflag [#allocation7], %s282
        %s284 = sand.u32 %s179, 1
        %s285 = smul.addr %s284, 8
        %s286 = scalar_lea.vmem [#allocation8], %s285
        %p287 = scmp.lt.s32.totalorder %s25, 1
        %s288 = scalar_select %p287, %s25, 1
        %s289 = smul.addr %s288, 8
        %s290 = scalar_lea.vmem %s0, %s289
        %p291 = scmp.lt.s32.totalorder %s25, 1
        %s292 = scalar_select %p291, %s25, 1
        %s293 = smul.addr %s292, 4
        %s294 = smul.addr %s293, 8
        %s295 = scalar_lea.vmem %s1, %s294
        %p296 = scmp.eq.s32.totalorder %s26, 0
        // Predicated region
        $region49: #{tpu_custom_call.1} parent=43 // pred_check
          %p297 = pneg %p296
        $region50: #{tpu_custom_call.1} parent=43 // pred_check_branch
          %299 = sbr.rel (%p297) target = $region52
        $region51: #{tpu_custom_call.1} parent=43 // pred_region
          %v300 = vld [vmem:[%s290] sm:$0xff]
          %v301 = vld [vmem:[%s2] sm:$0xff]
          %v302 = vld [vmem:[%s2 + $0x8] sm:$0xff]
          %v303 = vld [vmem:[%s2 + $0x10] sm:$0xff]
          %v304 = vld [vmem:[%s2 + $0x18] sm:$0xff]
          %vm305 = vcmask 261120
          %v307 = vsel %vm305, %v300, 0
          %309 = vmatprep.subr.mxu0 0.0
          %310 = vmatpush1.msra.mxu0 0.0
          %311 = vmatprep.subr.mxu0 0.0
          %312 = vmatpush1.msra.mxu0 0.0
          %313 = vmatprep.subr.mxu0 0.0
          %314 = vmatpush1.msra.mxu0 0.0
          %315 = vmatprep.subr.mxu0 0.0
          %316 = vmatpush1.msra.mxu0 0.0
          %317 = vmatprep.subr.mxu0 0.0
          %318 = vmatpush1.msra.mxu0 0.0
          %319 = vmatprep.subr.mxu0 0.0
          %320 = vmatpush1.msra.mxu0 0.0
          %321 = vmatprep.subr.mxu0 0.0
          %322 = vmatpush1.msra.mxu0 0.0
          %323 = vmatprep.subr.mxu0 0.0
          %324 = vmatpush1.msra.mxu0 0.0
          %325 = vmatprep.subr.mxu0 0.0
          %326 = vmatpush1.msra.mxu0 0.0
          %327 = vmatprep.subr.mxu0 0.0
          %328 = vmatpush1.msra.mxu0 0.0
          %329 = vmatprep.subr.mxu0 0.0
          %330 = vmatpush1.msra.mxu0 0.0
          %331 = vmatprep.subr.mxu0 0.0
          %332 = vmatpush1.msra.mxu0 0.0
          %333 = vmatprep.subr.mxu0 0.0
          %334 = vmatpush1.msra.mxu0 %v304
          %335 = vmatprep.subr.mxu0 0.0
          %336 = vmatpush1.msra.mxu0 %v303
          %337 = vmatprep.subr.mxu0 0.0
          %338 = vmatpush1.msra.mxu0 %v302
          %339 = vmatprep.subr.mxu0 0.0
          %340 = vmatpush1.msra.mxu0 %v301
          %341 = vmatprep.subr.mxu0 0.0
          %342 = vmatpush2.msra.mxu0 0.0
          %343 = vmatprep.subr.mxu0 0.0
          %344 = vmatpush2.msra.mxu0 0.0
          %345 = vmatprep.subr.mxu0 0.0
          %346 = vmatpush2.msra.mxu0 0.0
          %347 = vmatprep.subr.mxu0 0.0
          %348 = vmatpush2.msra.mxu0 0.0
          %349 = vmatprep.subr.mxu0 0.0
          %350 = vmatpush2.msra.mxu0 0.0
          %351 = vmatprep.subr.mxu0 0.0
          %352 = vmatpush2.msra.mxu0 0.0
          %353 = vmatprep.subr.mxu0 0.0
          %354 = vmatpush2.msra.mxu0 0.0
          %355 = vmatprep.subr.mxu0 0.0
          %356 = vmatpush2.msra.mxu0 0.0
          %357 = vmatprep.subr.mxu0 0.0
          %358 = vmatpush2.msra.mxu0 0.0
          %359 = vmatprep.subr.mxu0 0.0
          %360 = vmatpush2.msra.mxu0 0.0
          %361 = vmatprep.subr.mxu0 0.0
          %362 = vmatpush2.msra.mxu0 0.0
          %363 = vmatprep.subr.mxu0 0.0
          %364 = vmatpush2.msra.mxu0 0.0
          %365 = vmatprep.subr.mxu0 0.0
          %366 = vmatpush2.msra.mxu0 0.0
          %367 = vmatprep.subr.mxu0 0.0
          %368 = vmatpush2.msra.mxu0 0.0
          %369 = vmatprep.subr.mxu0 0.0
          %370 = vmatpush2.msra.mxu0 0.0
          %371 = vmatprep.subr.mxu0 0.0
          %372 = vmatpush2.msra.mxu0 0.0
          %373 = vmatprep.mubr.f32.mxu0 0.0
          %374 = vmatmul.mubr.f32.gmra.mxu0 %v307
          %v375 = vpop.f32.mrf.mxu0
          %v376 = vadd.f32 0.0, %v375
          %v377 = vpop.f32.mrf.mxu0
          %378 = vdwg.mxu0
          %vm379 = vcmask 523264
          %380 = vst.msk [vmem:[#allocation2] sm:$0xff] %vm379, %v376
          %v381 = vld [vmem:[%s295] sm:$0xff]
          %v382 = vld [vmem:[%s295 + $0x8] sm:$0xff]
          %v383 = vld [vmem:[%s295 + $0x10] sm:$0xff]
          %v384 = vld [vmem:[%s295 + $0x18] sm:$0xff]
          %v385 = vld [vmem:[%s3] sm:$0xff]
          %v386 = vld [vmem:[%s3 + $0x8] sm:$0xff]
          %v387 = vld [vmem:[%s3 + $0x10] sm:$0xff]
          %v388 = vld [vmem:[%s3 + $0x18] sm:$0xff]
          %v390 = vsel %vm305, %v385, 0
          %v393 = vsel %vm305, %v386, 0
          %v396 = vsel %vm305, %v387, 0
          %v399 = vsel %vm305, %v388, 0
          %401 = vmatprep.subr.mxu0 0.0
          %402 = vmatpush1.msra.mxu0 0.0
          %403 = vmatprep.subr.mxu0 0.0
          %404 = vmatpush1.msra.mxu0 0.0
          %405 = vmatprep.subr.mxu0 0.0
          %406 = vmatpush1.msra.mxu0 0.0
          %407 = vmatprep.subr.mxu0 0.0
          %408 = vmatpush1.msra.mxu0 0.0
          %409 = vmatprep.subr.mxu0 0.0
          %410 = vmatpush1.msra.mxu0 0.0
          %411 = vmatprep.subr.mxu0 0.0
          %412 = vmatpush1.msra.mxu0 0.0
          %413 = vmatprep.subr.mxu0 0.0
          %414 = vmatpush1.msra.mxu0 0.0
          %415 = vmatprep.subr.mxu0 0.0
          %416 = vmatpush1.msra.mxu0 0.0
          %417 = vmatprep.subr.mxu0 0.0
          %418 = vmatpush1.msra.mxu0 0.0
          %419 = vmatprep.subr.mxu0 0.0
          %420 = vmatpush1.msra.mxu0 0.0
          %421 = vmatprep.subr.mxu0 0.0
          %422 = vmatpush1.msra.mxu0 0.0
          %423 = vmatprep.subr.mxu0 0.0
          %424 = vmatpush1.msra.mxu0 0.0
          %425 = vmatprep.subr.mxu0 0.0
          %426 = vmatpush1.msra.mxu0 %v384
          %427 = vmatprep.subr.mxu0 0.0
          %428 = vmatpush1.msra.mxu0 %v383
          %429 = vmatprep.subr.mxu0 0.0
          %430 = vmatpush1.msra.mxu0 %v382
          %431 = vmatprep.subr.mxu0 0.0
          %432 = vmatpush1.msra.mxu0 %v381
          %433 = vmatprep.subr.mxu0 0.0
          %434 = vmatpush2.msra.mxu0 0.0
          %435 = vmatprep.subr.mxu0 0.0
          %436 = vmatpush2.msra.mxu0 0.0
          %437 = vmatprep.subr.mxu0 0.0
          %438 = vmatpush2.msra.mxu0 0.0
          %439 = vmatprep.subr.mxu0 0.0
          %440 = vmatpush2.msra.mxu0 0.0
          %441 = vmatprep.subr.mxu0 0.0
          %442 = vmatpush2.msra.mxu0 0.0
          %443 = vmatprep.subr.mxu0 0.0
          %444 = vmatpush2.msra.mxu0 0.0
          %445 = vmatprep.subr.mxu0 0.0
          %446 = vmatpush2.msra.mxu0 0.0
          %447 = vmatprep.subr.mxu0 0.0
          %448 = vmatpush2.msra.mxu0 0.0
          %449 = vmatprep.subr.mxu0 0.0
          %450 = vmatpush2.msra.mxu0 0.0
          %451 = vmatprep.subr.mxu0 0.0
          %452 = vmatpush2.msra.mxu0 0.0
          %453 = vmatprep.subr.mxu0 0.0
          %454 = vmatpush2.msra.mxu0 0.0
          %455 = vmatprep.subr.mxu0 0.0
          %456 = vmatpush2.msra.mxu0 0.0
          %457 = vmatprep.subr.mxu0 0.0
          %458 = vmatpush2.msra.mxu0 0.0
          %459 = vmatprep.subr.mxu0 0.0
          %460 = vmatpush2.msra.mxu0 0.0
          %461 = vmatprep.subr.mxu0 0.0
          %462 = vmatpush2.msra.mxu0 0.0
          %463 = vmatprep.subr.mxu0 0.0
          %464 = vmatpush2.msra.mxu0 0.0
          %465 = vmatprep.mubr.f32.mxu0 0.0
          %466 = vmatmul.mubr.f32.gmra.mxu0 %v390
          %v467 = vpop.f32.mrf.mxu0
          %v468 = vadd.f32 0.0, %v467
          %v469 = vpop.f32.mrf.mxu0
          %470 = vmatprep.mubr.f32.mxu0 0.0
          %471 = vmatmul.mubr.f32.gmra.mxu0 %v393
          %v472 = vpop.f32.mrf.mxu0
          %v473 = vadd.f32 0.0, %v472
          %v474 = vpop.f32.mrf.mxu0
          %475 = vmatprep.mubr.f32.mxu0 0.0
          %476 = vmatmul.mubr.f32.gmra.mxu0 %v396
          %v477 = vpop.f32.mrf.mxu0
          %v478 = vadd.f32 0.0, %v477
          %v479 = vpop.f32.mrf.mxu0
          %480 = vmatprep.mubr.f32.mxu0 0.0
          %481 = vmatmul.mubr.f32.gmra.mxu0 %v399
          %v482 = vpop.f32.mrf.mxu0
          %v483 = vadd.f32 0.0, %v482
          %v484 = vpop.f32.mrf.mxu0
          %485 = vdwg.mxu0
          %vm486 = vcmask 64512
          %487 = vst.msk [vmem:[#allocation3] sm:$0xff] %vm486, %v468
          %488 = vst.msk [vmem:[#allocation3 + $0x8] sm:$0xff] %vm486, %v473
          %489 = vst.msk [vmem:[#allocation3 + $0x10] sm:$0xff] %vm486, %v478
          %490 = vst.msk [vmem:[#allocation3 + $0x18] sm:$0xff] %vm486, %v483
        $region52: #{tpu_custom_call.1} parent=43 // pred_fallthru
          _
        %s491 = smul.u32 %s26, 8
        %s492 = scalar_lea.vmem [#allocation2], %s491
        %v493 = vld [vmem:[%s492] sm:$0xff]
        %v494 = vld [vmem:[#allocation3] sm:$0xf]
        %vm495 = vcmask 31744
        %v497 = vsel %vm495, %v493, 0
        %vm499 = vcmask 1043456
        %v501 = vsel %vm499, %v494, 0
        %503 = vmatprep.subr.mxu0 0.0
        %504 = vmatpush1.msra.mxu0 0.0
        %505 = vmatprep.subr.mxu0 0.0
        %506 = vmatpush1.msra.mxu0 0.0
        %507 = vmatprep.subr.mxu0 0.0
        %508 = vmatpush1.msra.mxu0 0.0
        %509 = vmatprep.subr.mxu0 0.0
        %510 = vmatpush1.msra.mxu0 0.0
        %511 = vmatprep.subr.mxu0 0.0
        %512 = vmatpush1.msra.mxu0 0.0
        %513 = vmatprep.subr.mxu0 0.0
        %514 = vmatpush1.msra.mxu0 0.0
        %515 = vmatprep.subr.mxu0 0.0
        %516 = vmatpush1.msra.mxu0 0.0
        %517 = vmatprep.subr.mxu0 0.0
        %518 = vmatpush1.msra.mxu0 0.0
        %519 = vmatprep.subr.mxu0 0.0
        %520 = vmatpush1.msra.mxu0 0.0
        %521 = vmatprep.subr.mxu0 0.0
        %522 = vmatpush1.msra.mxu0 0.0
        %523 = vmatprep.subr.mxu0 0.0
        %524 = vmatpush1.msra.mxu0 0.0
        %525 = vmatprep.subr.mxu0 0.0
        %526 = vmatpush1.msra.mxu0 0.0
        %527 = vmatprep.subr.mxu0 0.0
        %528 = vmatpush1.msra.mxu0 0.0
        %529 = vmatprep.subr.mxu0 0.0
        %530 = vmatpush1.msra.mxu0 0.0
        %531 = vmatprep.subr.mxu0 0.0
        %532 = vmatpush1.msra.mxu0 0.0
        %533 = vmatprep.subr.mxu0 0.0
        %534 = vmatpush1.msra.mxu0 %v501
        %535 = vmatprep.subr.mxu0 0.0
        %536 = vmatpush2.msra.mxu0 0.0
        %537 = vmatprep.subr.mxu0 0.0
        %538 = vmatpush2.msra.mxu0 0.0
        %539 = vmatprep.subr.mxu0 0.0
        %540 = vmatpush2.msra.mxu0 0.0
        %541 = vmatprep.subr.mxu0 0.0
        %542 = vmatpush2.msra.mxu0 0.0
        %543 = vmatprep.subr.mxu0 0.0
        %544 = vmatpush2.msra.mxu0 0.0
        %545 = vmatprep.subr.mxu0 0.0
        %546 = vmatpush2.msra.mxu0 0.0
        %547 = vmatprep.subr.mxu0 0.0
        %548 = vmatpush2.msra.mxu0 0.0
        %549 = vmatprep.subr.mxu0 0.0
        %550 = vmatpush2.msra.mxu0 0.0
        %551 = vmatprep.subr.mxu0 0.0
        %552 = vmatpush2.msra.mxu0 0.0
        %553 = vmatprep.subr.mxu0 0.0
        %554 = vmatpush2.msra.mxu0 0.0
        %555 = vmatprep.subr.mxu0 0.0
        %556 = vmatpush2.msra.mxu0 0.0
        %557 = vmatprep.subr.mxu0 0.0
        %558 = vmatpush2.msra.mxu0 0.0
        %559 = vmatprep.subr.mxu0 0.0
        %560 = vmatpush2.msra.mxu0 0.0
        %561 = vmatprep.subr.mxu0 0.0
        %562 = vmatpush2.msra.mxu0 0.0
        %563 = vmatprep.subr.mxu0 0.0
        %564 = vmatpush2.msra.mxu0 0.0
        %565 = vmatprep.subr.mxu0 0.0
        %566 = vmatpush2.msra.mxu0 0.0
        %567 = vmatprep.mubr.f32.mxu0 0.0
        %568 = vmatmul.mubr.f32.gmra.mxu0 %v497
        %v569 = vpop.f32.mrf.mxu0
        %v570 = vadd.f32 0.0, %v569
        %v571 = vpop.f32.mrf.mxu0
        %572 = vdwg.mxu0
        %vm573 = vcmask 64512
        %v574 = vsel %vm573, %v570, -inf
        %575 = vmax.xlane.f32.xlu0 %v574
        %v576 = vpop.xlane.xlu0 %575
        %v577 = vsub.f32 %v570, %v576
        %v578 = vmul.f32 %v577, 1.442695
        %v579 = vpow.pop %v578
        %v580 = vsel %vm573, %v579, 0.0
        %581 = vadd.xlane.f32.xlu0 %v580
        %v582 = vpop.xlane.xlu0 %581
        %v583 = vld [vmem:[#allocation2] sm:$0xff]
        %585 = vrot.lane.b32.xlu0 %v583, 96
        %v586 = vpop.permute.xlu0 %585
        %v589 = vsel %vm573, %v579, 0
        %591 = vmatprep.subr.mxu0 0.0
        %592 = vmatpush1.msra.mxu0 0.0
        %593 = vmatprep.subr.mxu0 0.0
        %594 = vmatpush1.msra.mxu0 0.0
        %595 = vmatprep.subr.mxu0 0.0
        %596 = vmatpush1.msra.mxu0 0.0
        %597 = vmatprep.subr.mxu0 0.0
        %598 = vmatpush1.msra.mxu0 0.0
        %599 = vmatprep.subr.mxu0 0.0
        %600 = vmatpush1.msra.mxu0 0.0
        %601 = vmatprep.subr.mxu0 0.0
        %602 = vmatpush1.msra.mxu0 0.0
        %603 = vmatprep.subr.mxu0 0.0
        %604 = vmatpush1.msra.mxu0 0.0
        %605 = vmatprep.subr.mxu0 0.0
        %606 = vmatpush1.msra.mxu0 0.0
        %607 = vmatprep.subr.mxu0 0.0
        %608 = vmatpush1.msra.mxu0 0.0
        %609 = vmatprep.subr.mxu0 0.0
        %610 = vmatpush1.msra.mxu0 0.0
        %611 = vmatprep.subr.mxu0 0.0
        %612 = vmatpush1.msra.mxu0 0.0
        %613 = vmatprep.subr.mxu0 0.0
        %614 = vmatpush1.msra.mxu0 0.0
        %615 = vmatprep.subr.mxu0 0.0
        %616 = vmatpush1.msra.mxu0 0.0
        %617 = vmatprep.subr.mxu0 0.0
        %618 = vmatpush1.msra.mxu0 0.0
        %619 = vmatprep.subr.mxu0 0.0
        %620 = vmatpush1.msra.mxu0 0.0
        %621 = vmatprep.subr.mxu0 0.0
        %622 = vmatpush1.msra.mxu0 %v586
        %623 = vmatprep.subr.mxu0 0.0
        %624 = vmatpush2.msra.mxu0 0.0
        %625 = vmatprep.subr.mxu0 0.0
        %626 = vmatpush2.msra.mxu0 0.0
        %627 = vmatprep.subr.mxu0 0.0
        %628 = vmatpush2.msra.mxu0 0.0
        %629 = vmatprep.subr.mxu0 0.0
        %630 = vmatpush2.msra.mxu0 0.0
        %631 = vmatprep.subr.mxu0 0.0
        %632 = vmatpush2.msra.mxu0 0.0
        %633 = vmatprep.subr.mxu0 0.0
        %634 = vmatpush2.msra.mxu0 0.0
        %635 = vmatprep.subr.mxu0 0.0
        %636 = vmatpush2.msra.mxu0 0.0
        %637 = vmatprep.subr.mxu0 0.0
        %638 = vmatpush2.msra.mxu0 0.0
        %639 = vmatprep.subr.mxu0 0.0
        %640 = vmatpush2.msra.mxu0 0.0
        %641 = vmatprep.subr.mxu0 0.0
        %642 = vmatpush2.msra.mxu0 0.0
        %643 = vmatprep.subr.mxu0 0.0
        %644 = vmatpush2.msra.mxu0 0.0
        %645 = vmatprep.subr.mxu0 0.0
        %646 = vmatpush2.msra.mxu0 0.0
        %647 = vmatprep.subr.mxu0 0.0
        %648 = vmatpush2.msra.mxu0 0.0
        %649 = vmatprep.subr.mxu0 0.0
        %650 = vmatpush2.msra.mxu0 0.0
        %651 = vmatprep.subr.mxu0 0.0
        %652 = vmatpush2.msra.mxu0 0.0
        %653 = vmatprep.subr.mxu0 0.0
        %654 = vmatpush2.msra.mxu0 0.0
        %655 = vmatprep.mubr.f32.mxu0 0.0
        %656 = vmatmul.mubr.f32.gmra.mxu0 %v589
        %v657 = vpop.f32.mrf.mxu0
        %v658 = vadd.f32 0.0, %v657
        %v659 = vpop.f32.mrf.mxu0
        %660 = vdwg.mxu0
        %v661 = vrcp.pop %v582
        %v662 = vmul.f32 %v658, %v661
        %v663 = vld [vmem:[#allocation3 + $0x4] sm:$0xf]
        %664 = vrot.lane.b32.xlu0 %v493, 124
        %v665 = vpop.permute.xlu0 %664
        %v666 = vsel %vm495, %v665, 0
        %v669 = vsel %vm499, %v663, 0
        %671 = vmatprep.subr.mxu0 0.0
        %672 = vmatpush1.msra.mxu0 0.0
        %673 = vmatprep.subr.mxu0 0.0
        %674 = vmatpush1.msra.mxu0 0.0
        %675 = vmatprep.subr.mxu0 0.0
        %676 = vmatpush1.msra.mxu0 0.0
        %677 = vmatprep.subr.mxu0 0.0
        %678 = vmatpush1.msra.mxu0 0.0
        %679 = vmatprep.subr.mxu0 0.0
        %680 = vmatpush1.msra.mxu0 0.0
        %681 = vmatprep.subr.mxu0 0.0
        %682 = vmatpush1.msra.mxu0 0.0
        %683 = vmatprep.subr.mxu0 0.0
        %684 = vmatpush1.msra.mxu0 0.0
        %685 = vmatprep.subr.mxu0 0.0
        %686 = vmatpush1.msra.mxu0 0.0
        %687 = vmatprep.subr.mxu0 0.0
        %688 = vmatpush1.msra.mxu0 0.0
        %689 = vmatprep.subr.mxu0 0.0
        %690 = vmatpush1.msra.mxu0 0.0
        %691 = vmatprep.subr.mxu0 0.0
        %692 = vmatpush1.msra.mxu0 0.0
        %693 = vmatprep.subr.mxu0 0.0
        %694 = vmatpush1.msra.mxu0 0.0
        %695 = vmatprep.subr.mxu0 0.0
        %696 = vmatpush1.msra.mxu0 0.0
        %697 = vmatprep.subr.mxu0 0.0
        %698 = vmatpush1.msra.mxu0 0.0
        %699 = vmatprep.subr.mxu0 0.0
        %700 = vmatpush1.msra.mxu0 0.0
        %701 = vmatprep.subr.mxu0 0.0
        %702 = vmatpush1.msra.mxu0 %v669
        %703 = vmatprep.subr.mxu0 0.0
        %704 = vmatpush2.msra.mxu0 0.0
        %705 = vmatprep.subr.mxu0 0.0
        %706 = vmatpush2.msra.mxu0 0.0
        %707 = vmatprep.subr.mxu0 0.0
        %708 = vmatpush2.msra.mxu0 0.0
        %709 = vmatprep.subr.mxu0 0.0
        %710 = vmatpush2.msra.mxu0 0.0
        %711 = vmatprep.subr.mxu0 0.0
        %712 = vmatpush2.msra.mxu0 0.0
        %713 = vmatprep.subr.mxu0 0.0
        %714 = vmatpush2.msra.mxu0 0.0
        %715 = vmatprep.subr.mxu0 0.0
        %716 = vmatpush2.msra.mxu0 0.0
        %717 = vmatprep.subr.mxu0 0.0
        %718 = vmatpush2.msra.mxu0 0.0
        %719 = vmatprep.subr.mxu0 0.0
        %720 = vmatpush2.msra.mxu0 0.0
        %721 = vmatprep.subr.mxu0 0.0
        %722 = vmatpush2.msra.mxu0 0.0
        %723 = vmatprep.subr.mxu0 0.0
        %724 = vmatpush2.msra.mxu0 0.0
        %725 = vmatprep.subr.mxu0 0.0
        %726 = vmatpush2.msra.mxu0 0.0
        %727 = vmatprep.subr.mxu0 0.0
        %728 = vmatpush2.msra.mxu0 0.0
        %729 = vmatprep.subr.mxu0 0.0
        %730 = vmatpush2.msra.mxu0 0.0
        %731 = vmatprep.subr.mxu0 0.0
        %732 = vmatpush2.msra.mxu0 0.0
        %733 = vmatprep.subr.mxu0 0.0
        %734 = vmatpush2.msra.mxu0 0.0
        %735 = vmatprep.mubr.f32.mxu0 0.0
        %736 = vmatmul.mubr.f32.gmra.mxu0 %v666
        %v737 = vpop.f32.mrf.mxu0
        %v738 = vadd.f32 0.0, %v737
        %v739 = vpop.f32.mrf.mxu0
        %740 = vdwg.mxu0
        %v741 = vsel %vm573, %v738, -inf
        %742 = vmax.xlane.f32.xlu0 %v741
        %v743 = vpop.xlane.xlu0 %742
        %v744 = vsub.f32 %v738, %v743
        %v745 = vmul.f32 %v744, 1.442695
        %v746 = vpow.pop %v745
        %v747 = vsel %vm573, %v746, 0.0
        %748 = vadd.xlane.f32.xlu0 %v747
        %v749 = vpop.xlane.xlu0 %748
        %750 = vrot.lane.b32.xlu0 %v583, 92
        %v751 = vpop.permute.xlu0 %750
        %v754 = vsel %vm573, %v746, 0
        %756 = vmatprep.subr.mxu0 0.0
        %757 = vmatpush1.msra.mxu0 0.0
        %758 = vmatprep.subr.mxu0 0.0
        %759 = vmatpush1.msra.mxu0 0.0
        %760 = vmatprep.subr.mxu0 0.0
        %761 = vmatpush1.msra.mxu0 0.0
        %762 = vmatprep.subr.mxu0 0.0
        %763 = vmatpush1.msra.mxu0 0.0
        %764 = vmatprep.subr.mxu0 0.0
        %765 = vmatpush1.msra.mxu0 0.0
        %766 = vmatprep.subr.mxu0 0.0
        %767 = vmatpush1.msra.mxu0 0.0
        %768 = vmatprep.subr.mxu0 0.0
        %769 = vmatpush1.msra.mxu0 0.0
        %770 = vmatprep.subr.mxu0 0.0
        %771 = vmatpush1.msra.mxu0 0.0
        %772 = vmatprep.subr.mxu0 0.0
        %773 = vmatpush1.msra.mxu0 0.0
        %774 = vmatprep.subr.mxu0 0.0
        %775 = vmatpush1.msra.mxu0 0.0
        %776 = vmatprep.subr.mxu0 0.0
        %777 = vmatpush1.msra.mxu0 0.0
        %778 = vmatprep.subr.mxu0 0.0
        %779 = vmatpush1.msra.mxu0 0.0
        %780 = vmatprep.subr.mxu0 0.0
        %781 = vmatpush1.msra.mxu0 0.0
        %782 = vmatprep.subr.mxu0 0.0
        %783 = vmatpush1.msra.mxu0 0.0
        %784 = vmatprep.subr.mxu0 0.0
        %785 = vmatpush1.msra.mxu0 0.0
        %786 = vmatprep.subr.mxu0 0.0
        %787 = vmatpush1.msra.mxu0 %v751
        %788 = vmatprep.subr.mxu0 0.0
        %789 = vmatpush2.msra.mxu0 0.0
        %790 = vmatprep.subr.mxu0 0.0
        %791 = vmatpush2.msra.mxu0 0.0
        %792 = vmatprep.subr.mxu0 0.0
        %793 = vmatpush2.msra.mxu0 0.0
        %794 = vmatprep.subr.mxu0 0.0
        %795 = vmatpush2.msra.mxu0 0.0
        %796 = vmatprep.subr.mxu0 0.0
        %797 = vmatpush2.msra.mxu0 0.0
        %798 = vmatprep.subr.mxu0 0.0
        %799 = vmatpush2.msra.mxu0 0.0
        %800 = vmatprep.subr.mxu0 0.0
        %801 = vmatpush2.msra.mxu0 0.0
        %802 = vmatprep.subr.mxu0 0.0
        %803 = vmatpush2.msra.mxu0 0.0
        %804 = vmatprep.subr.mxu0 0.0
        %805 = vmatpush2.msra.mxu0 0.0
        %806 = vmatprep.subr.mxu0 0.0
        %807 = vmatpush2.msra.mxu0 0.0
        %808 = vmatprep.subr.mxu0 0.0
        %809 = vmatpush2.msra.mxu0 0.0
        %810 = vmatprep.subr.mxu0 0.0
        %811 = vmatpush2.msra.mxu0 0.0
        %812 = vmatprep.subr.mxu0 0.0
        %813 = vmatpush2.msra.mxu0 0.0
        %814 = vmatprep.subr.mxu0 0.0
        %815 = vmatpush2.msra.mxu0 0.0
        %816 = vmatprep.subr.mxu0 0.0
        %817 = vmatpush2.msra.mxu0 0.0
        %818 = vmatprep.subr.mxu0 0.0
        %819 = vmatpush2.msra.mxu0 0.0
        %820 = vmatprep.mubr.f32.mxu0 0.0
        %821 = vmatmul.mubr.f32.gmra.mxu0 %v754
        %v822 = vpop.f32.mrf.mxu0
        %v823 = vadd.f32 0.0, %v822
        %v824 = vpop.f32.mrf.mxu0
        %825 = vdwg.mxu0
        %v826 = vrcp.pop %v749
        %v827 = vmul.f32 %v823, %v826
        %v828 = vld [vmem:[#allocation3 + $0x8] sm:$0xf]
        %829 = vrot.lane.b32.xlu0 %v493, 120
        %v830 = vpop.permute.xlu0 %829
        %v831 = vsel %vm495, %v830, 0
        %v834 = vsel %vm499, %v828, 0
        %836 = vmatprep.subr.mxu0 0.0
        %837 = vmatpush1.msra.mxu0 0.0
        %838 = vmatprep.subr.mxu0 0.0
        %839 = vmatpush1.msra.mxu0 0.0
        %840 = vmatprep.subr.mxu0 0.0
        %841 = vmatpush1.msra.mxu0 0.0
        %842 = vmatprep.subr.mxu0 0.0
        %843 = vmatpush1.msra.mxu0 0.0
        %844 = vmatprep.subr.mxu0 0.0
        %845 = vmatpush1.msra.mxu0 0.0
        %846 = vmatprep.subr.mxu0 0.0
        %847 = vmatpush1.msra.mxu0 0.0
        %848 = vmatprep.subr.mxu0 0.0
        %849 = vmatpush1.msra.mxu0 0.0
        %850 = vmatprep.subr.mxu0 0.0
        %851 = vmatpush1.msra.mxu0 0.0
        %852 = vmatprep.subr.mxu0 0.0
        %853 = vmatpush1.msra.mxu0 0.0
        %854 = vmatprep.subr.mxu0 0.0
        %855 = vmatpush1.msra.mxu0 0.0
        %856 = vmatprep.subr.mxu0 0.0
        %857 = vmatpush1.msra.mxu0 0.0
        %858 = vmatprep.subr.mxu0 0.0
        %859 = vmatpush1.msra.mxu0 0.0
        %860 = vmatprep.subr.mxu0 0.0
        %861 = vmatpush1.msra.mxu0 0.0
        %862 = vmatprep.subr.mxu0 0.0
        %863 = vmatpush1.msra.mxu0 0.0
        %864 = vmatprep.subr.mxu0 0.0
        %865 = vmatpush1.msra.mxu0 0.0
        %866 = vmatprep.subr.mxu0 0.0
        %867 = vmatpush1.msra.mxu0 %v834
        %868 = vmatprep.subr.mxu0 0.0
        %869 = vmatpush2.msra.mxu0 0.0
        %870 = vmatprep.subr.mxu0 0.0
        %871 = vmatpush2.msra.mxu0 0.0
        %872 = vmatprep.subr.mxu0 0.0
        %873 = vmatpush2.msra.mxu0 0.0
        %874 = vmatprep.subr.mxu0 0.0
        %875 = vmatpush2.msra.mxu0 0.0
        %876 = vmatprep.subr.mxu0 0.0
        %877 = vmatpush2.msra.mxu0 0.0
        %878 = vmatprep.subr.mxu0 0.0
        %879 = vmatpush2.msra.mxu0 0.0
        %880 = vmatprep.subr.mxu0 0.0
        %881 = vmatpush2.msra.mxu0 0.0
        %882 = vmatprep.subr.mxu0 0.0
        %883 = vmatpush2.msra.mxu0 0.0
        %884 = vmatprep.subr.mxu0 0.0
        %885 = vmatpush2.msra.mxu0 0.0
        %886 = vmatprep.subr.mxu0 0.0
        %887 = vmatpush2.msra.mxu0 0.0
        %888 = vmatprep.subr.mxu0 0.0
        %889 = vmatpush2.msra.mxu0 0.0
        %890 = vmatprep.subr.mxu0 0.0
        %891 = vmatpush2.msra.mxu0 0.0
        %892 = vmatprep.subr.mxu0 0.0
        %893 = vmatpush2.msra.mxu0 0.0
        %894 = vmatprep.subr.mxu0 0.0
        %895 = vmatpush2.msra.mxu0 0.0
        %896 = vmatprep.subr.mxu0 0.0
        %897 = vmatpush2.msra.mxu0 0.0
        %898 = vmatprep.subr.mxu0 0.0
        %899 = vmatpush2.msra.mxu0 0.0
        %900 = vmatprep.mubr.f32.mxu0 0.0
        %901 = vmatmul.mubr.f32.gmra.mxu0 %v831
        %v902 = vpop.f32.mrf.mxu0
        %v903 = vadd.f32 0.0, %v902
        %v904 = vpop.f32.mrf.mxu0
        %905 = vdwg.mxu0
        %v906 = vsel %vm573, %v903, -inf
        %907 = vmax.xlane.f32.xlu0 %v906
        %v908 = vpop.xlane.xlu0 %907
        %v909 = vsub.f32 %v903, %v908
        %v910 = vmul.f32 %v909, 1.442695
        %v911 = vpow.pop %v910
        %v912 = vsel %vm573, %v911, 0.0
        %913 = vadd.xlane.f32.xlu0 %v912
        %v914 = vpop.xlane.xlu0 %913
        %915 = vrot.lane.b32.xlu0 %v583, 88
        %v916 = vpop.permute.xlu0 %915
        %v919 = vsel %vm573, %v911, 0
        %921 = vmatprep.subr.mxu0 0.0
        %922 = vmatpush1.msra.mxu0 0.0
        %923 = vmatprep.subr.mxu0 0.0
        %924 = vmatpush1.msra.mxu0 0.0
        %925 = vmatprep.subr.mxu0 0.0
        %926 = vmatpush1.msra.mxu0 0.0
        %927 = vmatprep.subr.mxu0 0.0
        %928 = vmatpush1.msra.mxu0 0.0
        %929 = vmatprep.subr.mxu0 0.0
        %930 = vmatpush1.msra.mxu0 0.0
        %931 = vmatprep.subr.mxu0 0.0
        %932 = vmatpush1.msra.mxu0 0.0
        %933 = vmatprep.subr.mxu0 0.0
        %934 = vmatpush1.msra.mxu0 0.0
        %935 = vmatprep.subr.mxu0 0.0
        %936 = vmatpush1.msra.mxu0 0.0
        %937 = vmatprep.subr.mxu0 0.0
        %938 = vmatpush1.msra.mxu0 0.0
        %939 = vmatprep.subr.mxu0 0.0
        %940 = vmatpush1.msra.mxu0 0.0
        %941 = vmatprep.subr.mxu0 0.0
        %942 = vmatpush1.msra.mxu0 0.0
        %943 = vmatprep.subr.mxu0 0.0
        %944 = vmatpush1.msra.mxu0 0.0
        %945 = vmatprep.subr.mxu0 0.0
        %946 = vmatpush1.msra.mxu0 0.0
        %947 = vmatprep.subr.mxu0 0.0
        %948 = vmatpush1.msra.mxu0 0.0
        %949 = vmatprep.subr.mxu0 0.0
        %950 = vmatpush1.msra.mxu0 0.0
        %951 = vmatprep.subr.mxu0 0.0
        %952 = vmatpush1.msra.mxu0 %v916
        %953 = vmatprep.subr.mxu0 0.0
        %954 = vmatpush2.msra.mxu0 0.0
        %955 = vmatprep.subr.mxu0 0.0
        %956 = vmatpush2.msra.mxu0 0.0
        %957 = vmatprep.subr.mxu0 0.0
        %958 = vmatpush2.msra.mxu0 0.0
        %959 = vmatprep.subr.mxu0 0.0
        %960 = vmatpush2.msra.mxu0 0.0
        %961 = vmatprep.subr.mxu0 0.0
        %962 = vmatpush2.msra.mxu0 0.0
        %963 = vmatprep.subr.mxu0 0.0
        %964 = vmatpush2.msra.mxu0 0.0
        %965 = vmatprep.subr.mxu0 0.0
        %966 = vmatpush2.msra.mxu0 0.0
        %967 = vmatprep.subr.mxu0 0.0
        %968 = vmatpush2.msra.mxu0 0.0
        %969 = vmatprep.subr.mxu0 0.0
        %970 = vmatpush2.msra.mxu0 0.0
        %971 = vmatprep.subr.mxu0 0.0
        %972 = vmatpush2.msra.mxu0 0.0
        %973 = vmatprep.subr.mxu0 0.0
        %974 = vmatpush2.msra.mxu0 0.0
        %975 = vmatprep.subr.mxu0 0.0
        %976 = vmatpush2.msra.mxu0 0.0
        %977 = vmatprep.subr.mxu0 0.0
        %978 = vmatpush2.msra.mxu0 0.0
        %979 = vmatprep.subr.mxu0 0.0
        %980 = vmatpush2.msra.mxu0 0.0
        %981 = vmatprep.subr.mxu0 0.0
        %982 = vmatpush2.msra.mxu0 0.0
        %983 = vmatprep.subr.mxu0 0.0
        %984 = vmatpush2.msra.mxu0 0.0
        %985 = vmatprep.mubr.f32.mxu0 0.0
        %986 = vmatmul.mubr.f32.gmra.mxu0 %v919
        %v987 = vpop.f32.mrf.mxu0
        %v988 = vadd.f32 0.0, %v987
        %v989 = vpop.f32.mrf.mxu0
        %990 = vdwg.mxu0
        %v991 = vrcp.pop %v914
        %v992 = vmul.f32 %v988, %v991
        %v993 = vld [vmem:[#allocation3 + $0xc] sm:$0xf]
        %994 = vrot.lane.b32.xlu0 %v493, 116
        %v995 = vpop.permute.xlu0 %994
        %v996 = vsel %vm495, %v995, 0
        %v999 = vsel %vm499, %v993, 0
        %1001 = vmatprep.subr.mxu0 0.0
        %1002 = vmatpush1.msra.mxu0 0.0
        %1003 = vmatprep.subr.mxu0 0.0
        %1004 = vmatpush1.msra.mxu0 0.0
        %1005 = vmatprep.subr.mxu0 0.0
        %1006 = vmatpush1.msra.mxu0 0.0
        %1007 = vmatprep.subr.mxu0 0.0
        %1008 = vmatpush1.msra.mxu0 0.0
        %1009 = vmatprep.subr.mxu0 0.0
        %1010 = vmatpush1.msra.mxu0 0.0
        %1011 = vmatprep.subr.mxu0 0.0
        %1012 = vmatpush1.msra.mxu0 0.0
        %1013 = vmatprep.subr.mxu0 0.0
        %1014 = vmatpush1.msra.mxu0 0.0
        %1015 = vmatprep.subr.mxu0 0.0
        %1016 = vmatpush1.msra.mxu0 0.0
        %1017 = vmatprep.subr.mxu0 0.0
        %1018 = vmatpush1.msra.mxu0 0.0
        %1019 = vmatprep.subr.mxu0 0.0
        %1020 = vmatpush1.msra.mxu0 0.0
        %1021 = vmatprep.subr.mxu0 0.0
        %1022 = vmatpush1.msra.mxu0 0.0
        %1023 = vmatprep.subr.mxu0 0.0
        %1024 = vmatpush1.msra.mxu0 0.0
        %1025 = vmatprep.subr.mxu0 0.0
        %1026 = vmatpush1.msra.mxu0 0.0
        %1027 = vmatprep.subr.mxu0 0.0
        %1028 = vmatpush1.msra.mxu0 0.0
        %1029 = vmatprep.subr.mxu0 0.0
        %1030 = vmatpush1.msra.mxu0 0.0
        %1031 = vmatprep.subr.mxu0 0.0
        %1032 = vmatpush1.msra.mxu0 %v999
        %1033 = vmatprep.subr.mxu0 0.0
        %1034 = vmatpush2.msra.mxu0 0.0
        %1035 = vmatprep.subr.mxu0 0.0
        %1036 = vmatpush2.msra.mxu0 0.0
        %1037 = vmatprep.subr.mxu0 0.0
        %1038 = vmatpush2.msra.mxu0 0.0
        %1039 = vmatprep.subr.mxu0 0.0
        %1040 = vmatpush2.msra.mxu0 0.0
        %1041 = vmatprep.subr.mxu0 0.0
        %1042 = vmatpush2.msra.mxu0 0.0
        %1043 = vmatprep.subr.mxu0 0.0
        %1044 = vmatpush2.msra.mxu0 0.0
        %1045 = vmatprep.subr.mxu0 0.0
        %1046 = vmatpush2.msra.mxu0 0.0
        %1047 = vmatprep.subr.mxu0 0.0
        %1048 = vmatpush2.msra.mxu0 0.0
        %1049 = vmatprep.subr.mxu0 0.0
        %1050 = vmatpush2.msra.mxu0 0.0
        %1051 = vmatprep.subr.mxu0 0.0
        %1052 = vmatpush2.msra.mxu0 0.0
        %1053 = vmatprep.subr.mxu0 0.0
        %1054 = vmatpush2.msra.mxu0 0.0
        %1055 = vmatprep.subr.mxu0 0.0
        %1056 = vmatpush2.msra.mxu0 0.0
        %1057 = vmatprep.subr.mxu0 0.0
        %1058 = vmatpush2.msra.mxu0 0.0
        %1059 = vmatprep.subr.mxu0 0.0
        %1060 = vmatpush2.msra.mxu0 0.0
        %1061 = vmatprep.subr.mxu0 0.0
        %1062 = vmatpush2.msra.mxu0 0.0
        %1063 = vmatprep.subr.mxu0 0.0
        %1064 = vmatpush2.msra.mxu0 0.0
        %1065 = vmatprep.mubr.f32.mxu0 0.0
        %1066 = vmatmul.mubr.f32.gmra.mxu0 %v996
        %v1067 = vpop.f32.mrf.mxu0
        %v1068 = vadd.f32 0.0, %v1067
        %v1069 = vpop.f32.mrf.mxu0
        %1070 = vdwg.mxu0
        %v1071 = vsel %vm573, %v1068, -inf
        %1072 = vmax.xlane.f32.xlu0 %v1071
        %v1073 = vpop.xlane.xlu0 %1072
        %v1074 = vsub.f32 %v1068, %v1073
        %v1075 = vmul.f32 %v1074, 1.442695
        %v1076 = vpow.pop %v1075
        %v1077 = vsel %vm573, %v1076, 0.0
        %1078 = vadd.xlane.f32.xlu0 %v1077
        %v1079 = vpop.xlane.xlu0 %1078
        %1080 = vrot.lane.b32.xlu0 %v583, 84
        %v1081 = vpop.permute.xlu0 %1080
        %v1084 = vsel %vm573, %v1076, 0
        %1086 = vmatprep.subr.mxu0 0.0
        %1087 = vmatpush1.msra.mxu0 0.0
        %1088 = vmatprep.subr.mxu0 0.0
        %1089 = vmatpush1.msra.mxu0 0.0
        %1090 = vmatprep.subr.mxu0 0.0
        %1091 = vmatpush1.msra.mxu0 0.0
        %1092 = vmatprep.subr.mxu0 0.0
        %1093 = vmatpush1.msra.mxu0 0.0
        %1094 = vmatprep.subr.mxu0 0.0
        %1095 = vmatpush1.msra.mxu0 0.0
        %1096 = vmatprep.subr.mxu0 0.0
        %1097 = vmatpush1.msra.mxu0 0.0
        %1098 = vmatprep.subr.mxu0 0.0
        %1099 = vmatpush1.msra.mxu0 0.0
        %1100 = vmatprep.subr.mxu0 0.0
        %1101 = vmatpush1.msra.mxu0 0.0
        %1102 = vmatprep.subr.mxu0 0.0
        %1103 = vmatpush1.msra.mxu0 0.0
        %1104 = vmatprep.subr.mxu0 0.0
        %1105 = vmatpush1.msra.mxu0 0.0
        %1106 = vmatprep.subr.mxu0 0.0
        %1107 = vmatpush1.msra.mxu0 0.0
        %1108 = vmatprep.subr.mxu0 0.0
        %1109 = vmatpush1.msra.mxu0 0.0
        %1110 = vmatprep.subr.mxu0 0.0
        %1111 = vmatpush1.msra.mxu0 0.0
        %1112 = vmatprep.subr.mxu0 0.0
        %1113 = vmatpush1.msra.mxu0 0.0
        %1114 = vmatprep.subr.mxu0 0.0
        %1115 = vmatpush1.msra.mxu0 0.0
        %1116 = vmatprep.subr.mxu0 0.0
        %1117 = vmatpush1.msra.mxu0 %v1081
        %1118 = vmatprep.subr.mxu0 0.0
        %1119 = vmatpush2.msra.mxu0 0.0
        %1120 = vmatprep.subr.mxu0 0.0
        %1121 = vmatpush2.msra.mxu0 0.0
        %1122 = vmatprep.subr.mxu0 0.0
        %1123 = vmatpush2.msra.mxu0 0.0
        %1124 = vmatprep.subr.mxu0 0.0
        %1125 = vmatpush2.msra.mxu0 0.0
        %1126 = vmatprep.subr.mxu0 0.0
        %1127 = vmatpush2.msra.mxu0 0.0
        %1128 = vmatprep.subr.mxu0 0.0
        %1129 = vmatpush2.msra.mxu0 0.0
        %1130 = vmatprep.subr.mxu0 0.0
        %1131 = vmatpush2.msra.mxu0 0.0
        %1132 = vmatprep.subr.mxu0 0.0
        %1133 = vmatpush2.msra.mxu0 0.0
        %1134 = vmatprep.subr.mxu0 0.0
        %1135 = vmatpush2.msra.mxu0 0.0
        %1136 = vmatprep.subr.mxu0 0.0
        %1137 = vmatpush2.msra.mxu0 0.0
        %1138 = vmatprep.subr.mxu0 0.0
        %1139 = vmatpush2.msra.mxu0 0.0
        %1140 = vmatprep.subr.mxu0 0.0
        %1141 = vmatpush2.msra.mxu0 0.0
        %1142 = vmatprep.subr.mxu0 0.0
        %1143 = vmatpush2.msra.mxu0 0.0
        %1144 = vmatprep.subr.mxu0 0.0
        %1145 = vmatpush2.msra.mxu0 0.0
        %1146 = vmatprep.subr.mxu0 0.0
        %1147 = vmatpush2.msra.mxu0 0.0
        %1148 = vmatprep.subr.mxu0 0.0
        %1149 = vmatpush2.msra.mxu0 0.0
        %1150 = vmatprep.mubr.f32.mxu0 0.0
        %1151 = vmatmul.mubr.f32.gmra.mxu0 %v1084
        %v1152 = vpop.f32.mrf.mxu0
        %v1153 = vadd.f32 0.0, %v1152
        %v1154 = vpop.f32.mrf.mxu0
        %1155 = vdwg.mxu0
        %v1156 = vrcp.pop %v1079
        %v1157 = vmul.f32 %v1153, %v1156
        %v1158 = vld [vmem:[#allocation3 + $0x10] sm:$0xf]
        %1159 = vrot.lane.b32.xlu0 %v493, 112
        %v1160 = vpop.permute.xlu0 %1159
        %v1161 = vsel %vm495, %v1160, 0
        %v1164 = vsel %vm499, %v1158, 0
        %1166 = vmatprep.subr.mxu0 0.0
        %1167 = vmatpush1.msra.mxu0 0.0
        %1168 = vmatprep.subr.mxu0 0.0
        %1169 = vmatpush1.msra.mxu0 0.0
        %1170 = vmatprep.subr.mxu0 0.0
        %1171 = vmatpush1.msra.mxu0 0.0
        %1172 = vmatprep.subr.mxu0 0.0
        %1173 = vmatpush1.msra.mxu0 0.0
        %1174 = vmatprep.subr.mxu0 0.0
        %1175 = vmatpush1.msra.mxu0 0.0
        %1176 = vmatprep.subr.mxu0 0.0
        %1177 = vmatpush1.msra.mxu0 0.0
        %1178 = vmatprep.subr.mxu0 0.0
        %1179 = vmatpush1.msra.mxu0 0.0
        %1180 = vmatprep.subr.mxu0 0.0
        %1181 = vmatpush1.msra.mxu0 0.0
        %1182 = vmatprep.subr.mxu0 0.0
        %1183 = vmatpush1.msra.mxu0 0.0
        %1184 = vmatprep.subr.mxu0 0.0
        %1185 = vmatpush1.msra.mxu0 0.0
        %1186 = vmatprep.subr.mxu0 0.0
        %1187 = vmatpush1.msra.mxu0 0.0
        %1188 = vmatprep.subr.mxu0 0.0
        %1189 = vmatpush1.msra.mxu0 0.0
        %1190 = vmatprep.subr.mxu0 0.0
        %1191 = vmatpush1.msra.mxu0 0.0
        %1192 = vmatprep.subr.mxu0 0.0
        %1193 = vmatpush1.msra.mxu0 0.0
        %1194 = vmatprep.subr.mxu0 0.0
        %1195 = vmatpush1.msra.mxu0 0.0
        %1196 = vmatprep.subr.mxu0 0.0
        %1197 = vmatpush1.msra.mxu0 %v1164
        %1198 = vmatprep.subr.mxu0 0.0
        %1199 = vmatpush2.msra.mxu0 0.0
        %1200 = vmatprep.subr.mxu0 0.0
        %1201 = vmatpush2.msra.mxu0 0.0
        %1202 = vmatprep.subr.mxu0 0.0
        %1203 = vmatpush2.msra.mxu0 0.0
        %1204 = vmatprep.subr.mxu0 0.0
        %1205 = vmatpush2.msra.mxu0 0.0
        %1206 = vmatprep.subr.mxu0 0.0
        %1207 = vmatpush2.msra.mxu0 0.0
        %1208 = vmatprep.subr.mxu0 0.0
        %1209 = vmatpush2.msra.mxu0 0.0
        %1210 = vmatprep.subr.mxu0 0.0
        %1211 = vmatpush2.msra.mxu0 0.0
        %1212 = vmatprep.subr.mxu0 0.0
        %1213 = vmatpush2.msra.mxu0 0.0
        %1214 = vmatprep.subr.mxu0 0.0
        %1215 = vmatpush2.msra.mxu0 0.0
        %1216 = vmatprep.subr.mxu0 0.0
        %1217 = vmatpush2.msra.mxu0 0.0
        %1218 = vmatprep.subr.mxu0 0.0
        %1219 = vmatpush2.msra.mxu0 0.0
        %1220 = vmatprep.subr.mxu0 0.0
        %1221 = vmatpush2.msra.mxu0 0.0
        %1222 = vmatprep.subr.mxu0 0.0
        %1223 = vmatpush2.msra.mxu0 0.0
        %1224 = vmatprep.subr.mxu0 0.0
        %1225 = vmatpush2.msra.mxu0 0.0
        %1226 = vmatprep.subr.mxu0 0.0
        %1227 = vmatpush2.msra.mxu0 0.0
        %1228 = vmatprep.subr.mxu0 0.0
        %1229 = vmatpush2.msra.mxu0 0.0
        %1230 = vmatprep.mubr.f32.mxu0 0.0
        %1231 = vmatmul.mubr.f32.gmra.mxu0 %v1161
        %v1232 = vpop.f32.mrf.mxu0
        %v1233 = vadd.f32 0.0, %v1232
        %v1234 = vpop.f32.mrf.mxu0
        %1235 = vdwg.mxu0
        %v1236 = vsel %vm573, %v1233, -inf
        %1237 = vmax.xlane.f32.xlu0 %v1236
        %v1238 = vpop.xlane.xlu0 %1237
        %v1239 = vsub.f32 %v1233, %v1238
        %v1240 = vmul.f32 %v1239, 1.442695
        %v1241 = vpow.pop %v1240
        %v1242 = vsel %vm573, %v1241, 0.0
        %1243 = vadd.xlane.f32.xlu0 %v1242
        %v1244 = vpop.xlane.xlu0 %1243
        %1245 = vrot.lane.b32.xlu0 %v583, 80
        %v1246 = vpop.permute.xlu0 %1245
        %v1249 = vsel %vm573, %v1241, 0
        %1251 = vmatprep.subr.mxu0 0.0
        %1252 = vmatpush1.msra.mxu0 0.0
        %1253 = vmatprep.subr.mxu0 0.0
        %1254 = vmatpush1.msra.mxu0 0.0
        %1255 = vmatprep.subr.mxu0 0.0
        %1256 = vmatpush1.msra.mxu0 0.0
        %1257 = vmatprep.subr.mxu0 0.0
        %1258 = vmatpush1.msra.mxu0 0.0
        %1259 = vmatprep.subr.mxu0 0.0
        %1260 = vmatpush1.msra.mxu0 0.0
        %1261 = vmatprep.subr.mxu0 0.0
        %1262 = vmatpush1.msra.mxu0 0.0
        %1263 = vmatprep.subr.mxu0 0.0
        %1264 = vmatpush1.msra.mxu0 0.0
        %1265 = vmatprep.subr.mxu0 0.0
        %1266 = vmatpush1.msra.mxu0 0.0
        %1267 = vmatprep.subr.mxu0 0.0
        %1268 = vmatpush1.msra.mxu0 0.0
        %1269 = vmatprep.subr.mxu0 0.0
        %1270 = vmatpush1.msra.mxu0 0.0
        %1271 = vmatprep.subr.mxu0 0.0
        %1272 = vmatpush1.msra.mxu0 0.0
        %1273 = vmatprep.subr.mxu0 0.0
        %1274 = vmatpush1.msra.mxu0 0.0
        %1275 = vmatprep.subr.mxu0 0.0
        %1276 = vmatpush1.msra.mxu0 0.0
        %1277 = vmatprep.subr.mxu0 0.0
        %1278 = vmatpush1.msra.mxu0 0.0
        %1279 = vmatprep.subr.mxu0 0.0
        %1280 = vmatpush1.msra.mxu0 0.0
        %1281 = vmatprep.subr.mxu0 0.0
        %1282 = vmatpush1.msra.mxu0 %v1246
        %1283 = vmatprep.subr.mxu0 0.0
        %1284 = vmatpush2.msra.mxu0 0.0
        %1285 = vmatprep.subr.mxu0 0.0
        %1286 = vmatpush2.msra.mxu0 0.0
        %1287 = vmatprep.subr.mxu0 0.0
        %1288 = vmatpush2.msra.mxu0 0.0
        %1289 = vmatprep.subr.mxu0 0.0
        %1290 = vmatpush2.msra.mxu0 0.0
        %1291 = vmatprep.subr.mxu0 0.0
        %1292 = vmatpush2.msra.mxu0 0.0
        %1293 = vmatprep.subr.mxu0 0.0
        %1294 = vmatpush2.msra.mxu0 0.0
        %1295 = vmatprep.subr.mxu0 0.0
        %1296 = vmatpush2.msra.mxu0 0.0
        %1297 = vmatprep.subr.mxu0 0.0
        %1298 = vmatpush2.msra.mxu0 0.0
        %1299 = vmatprep.subr.mxu0 0.0
        %1300 = vmatpush2.msra.mxu0 0.0
        %1301 = vmatprep.subr.mxu0 0.0
        %1302 = vmatpush2.msra.mxu0 0.0
        %1303 = vmatprep.subr.mxu0 0.0
        %1304 = vmatpush2.msra.mxu0 0.0
        %1305 = vmatprep.subr.mxu0 0.0
        %1306 = vmatpush2.msra.mxu0 0.0
        %1307 = vmatprep.subr.mxu0 0.0
        %1308 = vmatpush2.msra.mxu0 0.0
        %1309 = vmatprep.subr.mxu0 0.0
        %1310 = vmatpush2.msra.mxu0 0.0
        %1311 = vmatprep.subr.mxu0 0.0
        %1312 = vmatpush2.msra.mxu0 0.0
        %1313 = vmatprep.subr.mxu0 0.0
        %1314 = vmatpush2.msra.mxu0 0.0
        %1315 = vmatprep.mubr.f32.mxu0 0.0
        %1316 = vmatmul.mubr.f32.gmra.mxu0 %v1249
        %v1317 = vpop.f32.mrf.mxu0
        %v1318 = vadd.f32 0.0, %v1317
        %v1319 = vpop.f32.mrf.mxu0
        %1320 = vdwg.mxu0
        %v1321 = vrcp.pop %v1244
        %v1322 = vmul.f32 %v1318, %v1321
        %v1323 = vld [vmem:[#allocation3 + $0x14] sm:$0xf]
        %1324 = vrot.lane.b32.xlu0 %v493, 108
        %v1325 = vpop.permute.xlu0 %1324
        %v1326 = vsel %vm495, %v1325, 0
        %v1329 = vsel %vm499, %v1323, 0
        %1331 = vmatprep.subr.mxu0 0.0
        %1332 = vmatpush1.msra.mxu0 0.0
        %1333 = vmatprep.subr.mxu0 0.0
        %1334 = vmatpush1.msra.mxu0 0.0
        %1335 = vmatprep.subr.mxu0 0.0
        %1336 = vmatpush1.msra.mxu0 0.0
        %1337 = vmatprep.subr.mxu0 0.0
        %1338 = vmatpush1.msra.mxu0 0.0
        %1339 = vmatprep.subr.mxu0 0.0
        %1340 = vmatpush1.msra.mxu0 0.0
        %1341 = vmatprep.subr.mxu0 0.0
        %1342 = vmatpush1.msra.mxu0 0.0
        %1343 = vmatprep.subr.mxu0 0.0
        %1344 = vmatpush1.msra.mxu0 0.0
        %1345 = vmatprep.subr.mxu0 0.0
        %1346 = vmatpush1.msra.mxu0 0.0
        %1347 = vmatprep.subr.mxu0 0.0
        %1348 = vmatpush1.msra.mxu0 0.0
        %1349 = vmatprep.subr.mxu0 0.0
        %1350 = vmatpush1.msra.mxu0 0.0
        %1351 = vmatprep.subr.mxu0 0.0
        %1352 = vmatpush1.msra.mxu0 0.0
        %1353 = vmatprep.subr.mxu0 0.0
        %1354 = vmatpush1.msra.mxu0 0.0
        %1355 = vmatprep.subr.mxu0 0.0
        %1356 = vmatpush1.msra.mxu0 0.0
        %1357 = vmatprep.subr.mxu0 0.0
        %1358 = vmatpush1.msra.mxu0 0.0
        %1359 = vmatprep.subr.mxu0 0.0
        %1360 = vmatpush1.msra.mxu0 0.0
        %1361 = vmatprep.subr.mxu0 0.0
        %1362 = vmatpush1.msra.mxu0 %v1329
        %1363 = vmatprep.subr.mxu0 0.0
        %1364 = vmatpush2.msra.mxu0 0.0
        %1365 = vmatprep.subr.mxu0 0.0
        %1366 = vmatpush2.msra.mxu0 0.0
        %1367 = vmatprep.subr.mxu0 0.0
        %1368 = vmatpush2.msra.mxu0 0.0
        %1369 = vmatprep.subr.mxu0 0.0
        %1370 = vmatpush2.msra.mxu0 0.0
        %1371 = vmatprep.subr.mxu0 0.0
        %1372 = vmatpush2.msra.mxu0 0.0
        %1373 = vmatprep.subr.mxu0 0.0
        %1374 = vmatpush2.msra.mxu0 0.0
        %1375 = vmatprep.subr.mxu0 0.0
        %1376 = vmatpush2.msra.mxu0 0.0
        %1377 = vmatprep.subr.mxu0 0.0
        %1378 = vmatpush2.msra.mxu0 0.0
        %1379 = vmatprep.subr.mxu0 0.0
        %1380 = vmatpush2.msra.mxu0 0.0
        %1381 = vmatprep.subr.mxu0 0.0
        %1382 = vmatpush2.msra.mxu0 0.0
        %1383 = vmatprep.subr.mxu0 0.0
        %1384 = vmatpush2.msra.mxu0 0.0
        %1385 = vmatprep.subr.mxu0 0.0
        %1386 = vmatpush2.msra.mxu0 0.0
        %1387 = vmatprep.subr.mxu0 0.0
        %1388 = vmatpush2.msra.mxu0 0.0
        %1389 = vmatprep.subr.mxu0 0.0
        %1390 = vmatpush2.msra.mxu0 0.0
        %1391 = vmatprep.subr.mxu0 0.0
        %1392 = vmatpush2.msra.mxu0 0.0
        %1393 = vmatprep.subr.mxu0 0.0
        %1394 = vmatpush2.msra.mxu0 0.0
        %1395 = vmatprep.mubr.f32.mxu0 0.0
        %1396 = vmatmul.mubr.f32.gmra.mxu0 %v1326
        %v1397 = vpop.f32.mrf.mxu0
        %v1398 = vadd.f32 0.0, %v1397
        %v1399 = vpop.f32.mrf.mxu0
        %1400 = vdwg.mxu0
        %v1401 = vsel %vm573, %v1398, -inf
        %1402 = vmax.xlane.f32.xlu0 %v1401
        %v1403 = vpop.xlane.xlu0 %1402
        %v1404 = vsub.f32 %v1398, %v1403
        %v1405 = vmul.f32 %v1404, 1.442695
        %v1406 = vpow.pop %v1405
        %v1407 = vsel %vm573, %v1406, 0.0
        %1408 = vadd.xlane.f32.xlu0 %v1407
        %v1409 = vpop.xlane.xlu0 %1408
        %1410 = vrot.lane.b32.xlu0 %v583, 76
        %v1411 = vpop.permute.xlu0 %1410
        %v1414 = vsel %vm573, %v1406, 0
        %1416 = vmatprep.subr.mxu0 0.0
        %1417 = vmatpush1.msra.mxu0 0.0
        %1418 = vmatprep.subr.mxu0 0.0
        %1419 = vmatpush1.msra.mxu0 0.0
        %1420 = vmatprep.subr.mxu0 0.0
        %1421 = vmatpush1.msra.mxu0 0.0
        %1422 = vmatprep.subr.mxu0 0.0
        %1423 = vmatpush1.msra.mxu0 0.0
        %1424 = vmatprep.subr.mxu0 0.0
        %1425 = vmatpush1.msra.mxu0 0.0
        %1426 = vmatprep.subr.mxu0 0.0
        %1427 = vmatpush1.msra.mxu0 0.0
        %1428 = vmatprep.subr.mxu0 0.0
        %1429 = vmatpush1.msra.mxu0 0.0
        %1430 = vmatprep.subr.mxu0 0.0
        %1431 = vmatpush1.msra.mxu0 0.0
        %1432 = vmatprep.subr.mxu0 0.0
        %1433 = vmatpush1.msra.mxu0 0.0
        %1434 = vmatprep.subr.mxu0 0.0
        %1435 = vmatpush1.msra.mxu0 0.0
        %1436 = vmatprep.subr.mxu0 0.0
        %1437 = vmatpush1.msra.mxu0 0.0
        %1438 = vmatprep.subr.mxu0 0.0
        %1439 = vmatpush1.msra.mxu0 0.0
        %1440 = vmatprep.subr.mxu0 0.0
        %1441 = vmatpush1.msra.mxu0 0.0
        %1442 = vmatprep.subr.mxu0 0.0
        %1443 = vmatpush1.msra.mxu0 0.0
        %1444 = vmatprep.subr.mxu0 0.0
        %1445 = vmatpush1.msra.mxu0 0.0
        %1446 = vmatprep.subr.mxu0 0.0
        %1447 = vmatpush1.msra.mxu0 %v1411
        %1448 = vmatprep.subr.mxu0 0.0
        %1449 = vmatpush2.msra.mxu0 0.0
        %1450 = vmatprep.subr.mxu0 0.0
        %1451 = vmatpush2.msra.mxu0 0.0
        %1452 = vmatprep.subr.mxu0 0.0
        %1453 = vmatpush2.msra.mxu0 0.0
        %1454 = vmatprep.subr.mxu0 0.0
        %1455 = vmatpush2.msra.mxu0 0.0
        %1456 = vmatprep.subr.mxu0 0.0
        %1457 = vmatpush2.msra.mxu0 0.0
        %1458 = vmatprep.subr.mxu0 0.0
        %1459 = vmatpush2.msra.mxu0 0.0
        %1460 = vmatprep.subr.mxu0 0.0
        %1461 = vmatpush2.msra.mxu0 0.0
        %1462 = vmatprep.subr.mxu0 0.0
        %1463 = vmatpush2.msra.mxu0 0.0
        %1464 = vmatprep.subr.mxu0 0.0
        %1465 = vmatpush2.msra.mxu0 0.0
        %1466 = vmatprep.subr.mxu0 0.0
        %1467 = vmatpush2.msra.mxu0 0.0
        %1468 = vmatprep.subr.mxu0 0.0
        %1469 = vmatpush2.msra.mxu0 0.0
        %1470 = vmatprep.subr.mxu0 0.0
        %1471 = vmatpush2.msra.mxu0 0.0
        %1472 = vmatprep.subr.mxu0 0.0
        %1473 = vmatpush2.msra.mxu0 0.0
        %1474 = vmatprep.subr.mxu0 0.0
        %1475 = vmatpush2.msra.mxu0 0.0
        %1476 = vmatprep.subr.mxu0 0.0
        %1477 = vmatpush2.msra.mxu0 0.0
        %1478 = vmatprep.subr.mxu0 0.0
        %1479 = vmatpush2.msra.mxu0 0.0
        %1480 = vmatprep.mubr.f32.mxu0 0.0
        %1481 = vmatmul.mubr.f32.gmra.mxu0 %v1414
        %v1482 = vpop.f32.mrf.mxu0
        %v1483 = vadd.f32 0.0, %v1482
        %v1484 = vpop.f32.mrf.mxu0
        %1485 = vdwg.mxu0
        %v1486 = vrcp.pop %v1409
        %v1487 = vmul.f32 %v1483, %v1486
        %v1488 = vld [vmem:[#allocation3 + $0x18] sm:$0xf]
        %1489 = vrot.lane.b32.xlu0 %v493, 104
        %v1490 = vpop.permute.xlu0 %1489
        %v1491 = vsel %vm495, %v1490, 0
        %v1494 = vsel %vm499, %v1488, 0
        %1496 = vmatprep.subr.mxu0 0.0
        %1497 = vmatpush1.msra.mxu0 0.0
        %1498 = vmatprep.subr.mxu0 0.0
        %1499 = vmatpush1.msra.mxu0 0.0
        %1500 = vmatprep.subr.mxu0 0.0
        %1501 = vmatpush1.msra.mxu0 0.0
        %1502 = vmatprep.subr.mxu0 0.0
        %1503 = vmatpush1.msra.mxu0 0.0
        %1504 = vmatprep.subr.mxu0 0.0
        %1505 = vmatpush1.msra.mxu0 0.0
        %1506 = vmatprep.subr.mxu0 0.0
        %1507 = vmatpush1.msra.mxu0 0.0
        %1508 = vmatprep.subr.mxu0 0.0
        %1509 = vmatpush1.msra.mxu0 0.0
        %1510 = vmatprep.subr.mxu0 0.0
        %1511 = vmatpush1.msra.mxu0 0.0
        %1512 = vmatprep.subr.mxu0 0.0
        %1513 = vmatpush1.msra.mxu0 0.0
        %1514 = vmatprep.subr.mxu0 0.0
        %1515 = vmatpush1.msra.mxu0 0.0
        %1516 = vmatprep.subr.mxu0 0.0
        %1517 = vmatpush1.msra.mxu0 0.0
        %1518 = vmatprep.subr.mxu0 0.0
        %1519 = vmatpush1.msra.mxu0 0.0
        %1520 = vmatprep.subr.mxu0 0.0
        %1521 = vmatpush1.msra.mxu0 0.0
        %1522 = vmatprep.subr.mxu0 0.0
        %1523 = vmatpush1.msra.mxu0 0.0
        %1524 = vmatprep.subr.mxu0 0.0
        %1525 = vmatpush1.msra.mxu0 0.0
        %1526 = vmatprep.subr.mxu0 0.0
        %1527 = vmatpush1.msra.mxu0 %v1494
        %1528 = vmatprep.subr.mxu0 0.0
        %1529 = vmatpush2.msra.mxu0 0.0
        %1530 = vmatprep.subr.mxu0 0.0
        %1531 = vmatpush2.msra.mxu0 0.0
        %1532 = vmatprep.subr.mxu0 0.0
        %1533 = vmatpush2.msra.mxu0 0.0
        %1534 = vmatprep.subr.mxu0 0.0
        %1535 = vmatpush2.msra.mxu0 0.0
        %1536 = vmatprep.subr.mxu0 0.0
        %1537 = vmatpush2.msra.mxu0 0.0
        %1538 = vmatprep.subr.mxu0 0.0
        %1539 = vmatpush2.msra.mxu0 0.0
        %1540 = vmatprep.subr.mxu0 0.0
        %1541 = vmatpush2.msra.mxu0 0.0
        %1542 = vmatprep.subr.mxu0 0.0
        %1543 = vmatpush2.msra.mxu0 0.0
        %1544 = vmatprep.subr.mxu0 0.0
        %1545 = vmatpush2.msra.mxu0 0.0
        %1546 = vmatprep.subr.mxu0 0.0
        %1547 = vmatpush2.msra.mxu0 0.0
        %1548 = vmatprep.subr.mxu0 0.0
        %1549 = vmatpush2.msra.mxu0 0.0
        %1550 = vmatprep.subr.mxu0 0.0
        %1551 = vmatpush2.msra.mxu0 0.0
        %1552 = vmatprep.subr.mxu0 0.0
        %1553 = vmatpush2.msra.mxu0 0.0
        %1554 = vmatprep.subr.mxu0 0.0
        %1555 = vmatpush2.msra.mxu0 0.0
        %1556 = vmatprep.subr.mxu0 0.0
        %1557 = vmatpush2.msra.mxu0 0.0
        %1558 = vmatprep.subr.mxu0 0.0
        %1559 = vmatpush2.msra.mxu0 0.0
        %1560 = vmatprep.mubr.f32.mxu0 0.0
        %1561 = vmatmul.mubr.f32.gmra.mxu0 %v1491
        %v1562 = vpop.f32.mrf.mxu0
        %v1563 = vadd.f32 0.0, %v1562
        %v1564 = vpop.f32.mrf.mxu0
        %1565 = vdwg.mxu0
        %v1566 = vsel %vm573, %v1563, -inf
        %1567 = vmax.xlane.f32.xlu0 %v1566
        %v1568 = vpop.xlane.xlu0 %1567
        %v1569 = vsub.f32 %v1563, %v1568
        %v1570 = vmul.f32 %v1569, 1.442695
        %v1571 = vpow.pop %v1570
        %v1572 = vsel %vm573, %v1571, 0.0
        %1573 = vadd.xlane.f32.xlu0 %v1572
        %v1574 = vpop.xlane.xlu0 %1573
        %1575 = vrot.lane.b32.xlu0 %v583, 72
        %v1576 = vpop.permute.xlu0 %1575
        %v1579 = vsel %vm573, %v1571, 0
        %1581 = vmatprep.subr.mxu0 0.0
        %1582 = vmatpush1.msra.mxu0 0.0
        %1583 = vmatprep.subr.mxu0 0.0
        %1584 = vmatpush1.msra.mxu0 0.0
        %1585 = vmatprep.subr.mxu0 0.0
        %1586 = vmatpush1.msra.mxu0 0.0
        %1587 = vmatprep.subr.mxu0 0.0
        %1588 = vmatpush1.msra.mxu0 0.0
        %1589 = vmatprep.subr.mxu0 0.0
        %1590 = vmatpush1.msra.mxu0 0.0
        %1591 = vmatprep.subr.mxu0 0.0
        %1592 = vmatpush1.msra.mxu0 0.0
        %1593 = vmatprep.subr.mxu0 0.0
        %1594 = vmatpush1.msra.mxu0 0.0
        %1595 = vmatprep.subr.mxu0 0.0
        %1596 = vmatpush1.msra.mxu0 0.0
        %1597 = vmatprep.subr.mxu0 0.0
        %1598 = vmatpush1.msra.mxu0 0.0
        %1599 = vmatprep.subr.mxu0 0.0
        %1600 = vmatpush1.msra.mxu0 0.0
        %1601 = vmatprep.subr.mxu0 0.0
        %1602 = vmatpush1.msra.mxu0 0.0
        %1603 = vmatprep.subr.mxu0 0.0
        %1604 = vmatpush1.msra.mxu0 0.0
        %1605 = vmatprep.subr.mxu0 0.0
        %1606 = vmatpush1.msra.mxu0 0.0
        %1607 = vmatprep.subr.mxu0 0.0
        %1608 = vmatpush1.msra.mxu0 0.0
        %1609 = vmatprep.subr.mxu0 0.0
        %1610 = vmatpush1.msra.mxu0 0.0
        %1611 = vmatprep.subr.mxu0 0.0
        %1612 = vmatpush1.msra.mxu0 %v1576
        %1613 = vmatprep.subr.mxu0 0.0
        %1614 = vmatpush2.msra.mxu0 0.0
        %1615 = vmatprep.subr.mxu0 0.0
        %1616 = vmatpush2.msra.mxu0 0.0
        %1617 = vmatprep.subr.mxu0 0.0
        %1618 = vmatpush2.msra.mxu0 0.0
        %1619 = vmatprep.subr.mxu0 0.0
        %1620 = vmatpush2.msra.mxu0 0.0
        %1621 = vmatprep.subr.mxu0 0.0
        %1622 = vmatpush2.msra.mxu0 0.0
        %1623 = vmatprep.subr.mxu0 0.0
        %1624 = vmatpush2.msra.mxu0 0.0
        %1625 = vmatprep.subr.mxu0 0.0
        %1626 = vmatpush2.msra.mxu0 0.0
        %1627 = vmatprep.subr.mxu0 0.0
        %1628 = vmatpush2.msra.mxu0 0.0
        %1629 = vmatprep.subr.mxu0 0.0
        %1630 = vmatpush2.msra.mxu0 0.0
        %1631 = vmatprep.subr.mxu0 0.0
        %1632 = vmatpush2.msra.mxu0 0.0
        %1633 = vmatprep.subr.mxu0 0.0
        %1634 = vmatpush2.msra.mxu0 0.0
        %1635 = vmatprep.subr.mxu0 0.0
        %1636 = vmatpush2.msra.mxu0 0.0
        %1637 = vmatprep.subr.mxu0 0.0
        %1638 = vmatpush2.msra.mxu0 0.0
        %1639 = vmatprep.subr.mxu0 0.0
        %1640 = vmatpush2.msra.mxu0 0.0
        %1641 = vmatprep.subr.mxu0 0.0
        %1642 = vmatpush2.msra.mxu0 0.0
        %1643 = vmatprep.subr.mxu0 0.0
        %1644 = vmatpush2.msra.mxu0 0.0
        %1645 = vmatprep.mubr.f32.mxu0 0.0
        %1646 = vmatmul.mubr.f32.gmra.mxu0 %v1579
        %v1647 = vpop.f32.mrf.mxu0
        %v1648 = vadd.f32 0.0, %v1647
        %v1649 = vpop.f32.mrf.mxu0
        %1650 = vdwg.mxu0
        %v1651 = vrcp.pop %v1574
        %v1652 = vmul.f32 %v1648, %v1651
        %v1653 = vld [vmem:[#allocation3 + $0x1c] sm:$0xf]
        %1654 = vrot.lane.b32.xlu0 %v493, 100
        %v1655 = vpop.permute.xlu0 %1654
        %v1656 = vsel %vm495, %v1655, 0
        %v1659 = vsel %vm499, %v1653, 0
        %1661 = vmatprep.subr.mxu0 0.0
        %1662 = vmatpush1.msra.mxu0 0.0
        %1663 = vmatprep.subr.mxu0 0.0
        %1664 = vmatpush1.msra.mxu0 0.0
        %1665 = vmatprep.subr.mxu0 0.0
        %1666 = vmatpush1.msra.mxu0 0.0
        %1667 = vmatprep.subr.mxu0 0.0
        %1668 = vmatpush1.msra.mxu0 0.0
        %1669 = vmatprep.subr.mxu0 0.0
        %1670 = vmatpush1.msra.mxu0 0.0
        %1671 = vmatprep.subr.mxu0 0.0
        %1672 = vmatpush1.msra.mxu0 0.0
        %1673 = vmatprep.subr.mxu0 0.0
        %1674 = vmatpush1.msra.mxu0 0.0
        %1675 = vmatprep.subr.mxu0 0.0
        %1676 = vmatpush1.msra.mxu0 0.0
        %1677 = vmatprep.subr.mxu0 0.0
        %1678 = vmatpush1.msra.mxu0 0.0
        %1679 = vmatprep.subr.mxu0 0.0
        %1680 = vmatpush1.msra.mxu0 0.0
        %1681 = vmatprep.subr.mxu0 0.0
        %1682 = vmatpush1.msra.mxu0 0.0
        %1683 = vmatprep.subr.mxu0 0.0
        %1684 = vmatpush1.msra.mxu0 0.0
        %1685 = vmatprep.subr.mxu0 0.0
        %1686 = vmatpush1.msra.mxu0 0.0
        %1687 = vmatprep.subr.mxu0 0.0
        %1688 = vmatpush1.msra.mxu0 0.0
        %1689 = vmatprep.subr.mxu0 0.0
        %1690 = vmatpush1.msra.mxu0 0.0
        %1691 = vmatprep.subr.mxu0 0.0
        %1692 = vmatpush1.msra.mxu0 %v1659
        %1693 = vmatprep.subr.mxu0 0.0
        %1694 = vmatpush2.msra.mxu0 0.0
        %1695 = vmatprep.subr.mxu0 0.0
        %1696 = vmatpush2.msra.mxu0 0.0
        %1697 = vmatprep.subr.mxu0 0.0
        %1698 = vmatpush2.msra.mxu0 0.0
        %1699 = vmatprep.subr.mxu0 0.0
        %1700 = vmatpush2.msra.mxu0 0.0
        %1701 = vmatprep.subr.mxu0 0.0
        %1702 = vmatpush2.msra.mxu0 0.0
        %1703 = vmatprep.subr.mxu0 0.0
        %1704 = vmatpush2.msra.mxu0 0.0
        %1705 = vmatprep.subr.mxu0 0.0
        %1706 = vmatpush2.msra.mxu0 0.0
        %1707 = vmatprep.subr.mxu0 0.0
        %1708 = vmatpush2.msra.mxu0 0.0
        %1709 = vmatprep.subr.mxu0 0.0
        %1710 = vmatpush2.msra.mxu0 0.0
        %1711 = vmatprep.subr.mxu0 0.0
        %1712 = vmatpush2.msra.mxu0 0.0
        %1713 = vmatprep.subr.mxu0 0.0
        %1714 = vmatpush2.msra.mxu0 0.0
        %1715 = vmatprep.subr.mxu0 0.0
        %1716 = vmatpush2.msra.mxu0 0.0
        %1717 = vmatprep.subr.mxu0 0.0
        %1718 = vmatpush2.msra.mxu0 0.0
        %1719 = vmatprep.subr.mxu0 0.0
        %1720 = vmatpush2.msra.mxu0 0.0
        %1721 = vmatprep.subr.mxu0 0.0
        %1722 = vmatpush2.msra.mxu0 0.0
        %1723 = vmatprep.subr.mxu0 0.0
        %1724 = vmatpush2.msra.mxu0 0.0
        %1725 = vmatprep.mubr.f32.mxu0 0.0
        %1726 = vmatmul.mubr.f32.gmra.mxu0 %v1656
        %v1727 = vpop.f32.mrf.mxu0
        %v1728 = vadd.f32 0.0, %v1727
        %v1729 = vpop.f32.mrf.mxu0
        %1730 = vdwg.mxu0
        %v1731 = vsel %vm573, %v1728, -inf
        %1732 = vmax.xlane.f32.xlu0 %v1731
        %v1733 = vpop.xlane.xlu0 %1732
        %v1734 = vsub.f32 %v1728, %v1733
        %v1735 = vmul.f32 %v1734, 1.442695
        %v1736 = vpow.pop %v1735
        %v1737 = vsel %vm573, %v1736, 0.0
        %1738 = vadd.xlane.f32.xlu0 %v1737
        %v1739 = vpop.xlane.xlu0 %1738
        %1740 = vrot.lane.b32.xlu0 %v583, 68
        %v1741 = vpop.permute.xlu0 %1740
        %v1744 = vsel %vm573, %v1736, 0
        %1746 = vmatprep.subr.mxu0 0.0
        %1747 = vmatpush1.msra.mxu0 0.0
        %1748 = vmatprep.subr.mxu0 0.0
        %1749 = vmatpush1.msra.mxu0 0.0
        %1750 = vmatprep.subr.mxu0 0.0
        %1751 = vmatpush1.msra.mxu0 0.0
        %1752 = vmatprep.subr.mxu0 0.0
        %1753 = vmatpush1.msra.mxu0 0.0
        %1754 = vmatprep.subr.mxu0 0.0
        %1755 = vmatpush1.msra.mxu0 0.0
        %1756 = vmatprep.subr.mxu0 0.0
        %1757 = vmatpush1.msra.mxu0 0.0
        %1758 = vmatprep.subr.mxu0 0.0
        %1759 = vmatpush1.msra.mxu0 0.0
        %1760 = vmatprep.subr.mxu0 0.0
        %1761 = vmatpush1.msra.mxu0 0.0
        %1762 = vmatprep.subr.mxu0 0.0
        %1763 = vmatpush1.msra.mxu0 0.0
        %1764 = vmatprep.subr.mxu0 0.0
        %1765 = vmatpush1.msra.mxu0 0.0
        %1766 = vmatprep.subr.mxu0 0.0
        %1767 = vmatpush1.msra.mxu0 0.0
        %1768 = vmatprep.subr.mxu0 0.0
        %1769 = vmatpush1.msra.mxu0 0.0
        %1770 = vmatprep.subr.mxu0 0.0
        %1771 = vmatpush1.msra.mxu0 0.0
        %1772 = vmatprep.subr.mxu0 0.0
        %1773 = vmatpush1.msra.mxu0 0.0
        %1774 = vmatprep.subr.mxu0 0.0
        %1775 = vmatpush1.msra.mxu0 0.0
        %1776 = vmatprep.subr.mxu0 0.0
        %1777 = vmatpush1.msra.mxu0 %v1741
        %1778 = vmatprep.subr.mxu0 0.0
        %1779 = vmatpush2.msra.mxu0 0.0
        %1780 = vmatprep.subr.mxu0 0.0
        %1781 = vmatpush2.msra.mxu0 0.0
        %1782 = vmatprep.subr.mxu0 0.0
        %1783 = vmatpush2.msra.mxu0 0.0
        %1784 = vmatprep.subr.mxu0 0.0
        %1785 = vmatpush2.msra.mxu0 0.0
        %1786 = vmatprep.subr.mxu0 0.0
        %1787 = vmatpush2.msra.mxu0 0.0
        %1788 = vmatprep.subr.mxu0 0.0
        %1789 = vmatpush2.msra.mxu0 0.0
        %1790 = vmatprep.subr.mxu0 0.0
        %1791 = vmatpush2.msra.mxu0 0.0
        %1792 = vmatprep.subr.mxu0 0.0
        %1793 = vmatpush2.msra.mxu0 0.0
        %1794 = vmatprep.subr.mxu0 0.0
        %1795 = vmatpush2.msra.mxu0 0.0
        %1796 = vmatprep.subr.mxu0 0.0
        %1797 = vmatpush2.msra.mxu0 0.0
        %1798 = vmatprep.subr.mxu0 0.0
        %1799 = vmatpush2.msra.mxu0 0.0
        %1800 = vmatprep.subr.mxu0 0.0
        %1801 = vmatpush2.msra.mxu0 0.0
        %1802 = vmatprep.subr.mxu0 0.0
        %1803 = vmatpush2.msra.mxu0 0.0
        %1804 = vmatprep.subr.mxu0 0.0
        %1805 = vmatpush2.msra.mxu0 0.0
        %1806 = vmatprep.subr.mxu0 0.0
        %1807 = vmatpush2.msra.mxu0 0.0
        %1808 = vmatprep.subr.mxu0 0.0
        %1809 = vmatpush2.msra.mxu0 0.0
        %1810 = vmatprep.mubr.f32.mxu0 0.0
        %1811 = vmatmul.mubr.f32.gmra.mxu0 %v1744
        %v1812 = vpop.f32.mrf.mxu0
        %v1813 = vadd.f32 0.0, %v1812
        %v1814 = vpop.f32.mrf.mxu0
        %1815 = vdwg.mxu0
        %v1816 = vrcp.pop %v1739
        %v1817 = vmul.f32 %v1813, %v1816
        %1819 = vrot.lane.b32.xlu0 %v827, 4
        %v1820 = vpop.permute.xlu0 %1819
        %1823 = vrot.lane.b32.xlu0 %v992, 8
        %v1824 = vpop.permute.xlu0 %1823
        %1827 = vrot.lane.b32.xlu0 %v1157, 12
        %v1828 = vpop.permute.xlu0 %1827
        %1831 = vrot.lane.b32.xlu0 %v1322, 16
        %v1832 = vpop.permute.xlu0 %1831
        %1835 = vrot.lane.b32.xlu0 %v1487, 20
        %v1836 = vpop.permute.xlu0 %1835
        %1839 = vrot.lane.b32.xlu0 %v1652, 24
        %v1840 = vpop.permute.xlu0 %1839
        %1843 = vrot.lane.b32.xlu0 %v1817, 28
        %v1844 = vpop.permute.xlu0 %1843
        %v1846 = vsel %vm495, %v662, %v1820
        %v1847 = vsel %vm573, %v1846, %v1824
        %vm1848 = vcmask 97280
        %v1849 = vsel %vm1848, %v1847, %v1828
        %vm1850 = vcmask 130048
        %v1851 = vsel %vm1850, %v1849, %v1832
        %vm1852 = vcmask 162816
        %v1853 = vsel %vm1852, %v1851, %v1836
        %vm1854 = vcmask 195584
        %v1855 = vsel %vm1854, %v1853, %v1840
        %vm1856 = vcmask 228352
        %v1857 = vsel %vm1856, %v1855, %v1844
        %vm1858 = vcmask 261120
        %1859 = vst.msk [vmem:[#allocation4] sm:$0xff] %vm1858, %v1857
        %v1860 = vld [vmem:[#allocation4] sm:$0xff]
        %v1861 = vld [vmem:[#allocation5] sm:$0xff]
        %v1862 = vld [vmem:[#allocation5 + $0x8] sm:$0xff]
        %v1863 = vld [vmem:[#allocation5 + $0x10] sm:$0xff]
        %v1864 = vld [vmem:[#allocation5 + $0x18] sm:$0xff]
        %v1865 = vld [vmem:[%s5] sm:$0x1]
        %v1867 = vlaneseq
        %v1868 = vshrl.u32 %v1867, 7
        %v1869 = vsub.s32 0, %v1868
        %v1870 = vrot.slane %v1865, %v1869
        %v1873 = vsel %vm1858, %v1860, 0
        %1875 = vmatprep.subr.mxu0 0.0
        %1876 = vmatpush1.msra.mxu0 0.0
        %1877 = vmatprep.subr.mxu0 0.0
        %1878 = vmatpush1.msra.mxu0 0.0
        %1879 = vmatprep.subr.mxu0 0.0
        %1880 = vmatpush1.msra.mxu0 0.0
        %1881 = vmatprep.subr.mxu0 0.0
        %1882 = vmatpush1.msra.mxu0 0.0
        %1883 = vmatprep.subr.mxu0 0.0
        %1884 = vmatpush1.msra.mxu0 0.0
        %1885 = vmatprep.subr.mxu0 0.0
        %1886 = vmatpush1.msra.mxu0 0.0
        %1887 = vmatprep.subr.mxu0 0.0
        %1888 = vmatpush1.msra.mxu0 0.0
        %1889 = vmatprep.subr.mxu0 0.0
        %1890 = vmatpush1.msra.mxu0 0.0
        %1891 = vmatprep.subr.mxu0 0.0
        %1892 = vmatpush1.msra.mxu0 0.0
        %1893 = vmatprep.subr.mxu0 0.0
        %1894 = vmatpush1.msra.mxu0 0.0
        %1895 = vmatprep.subr.mxu0 0.0
        %1896 = vmatpush1.msra.mxu0 0.0
        %1897 = vmatprep.subr.mxu0 0.0
        %1898 = vmatpush1.msra.mxu0 0.0
        %1899 = vmatprep.subr.mxu0 0.0
        %1900 = vmatpush1.msra.mxu0 %v1864
        %1901 = vmatprep.subr.mxu0 0.0
        %1902 = vmatpush1.msra.mxu0 %v1863
        %1903 = vmatprep.subr.mxu0 0.0
        %1904 = vmatpush1.msra.mxu0 %v1862
        %1905 = vmatprep.subr.mxu0 0.0
        %1906 = vmatpush1.msra.mxu0 %v1861
        %1907 = vmatprep.subr.mxu0 0.0
        %1908 = vmatpush2.msra.mxu0 0.0
        %1909 = vmatprep.subr.mxu0 0.0
        %1910 = vmatpush2.msra.mxu0 0.0
        %1911 = vmatprep.subr.mxu0 0.0
        %1912 = vmatpush2.msra.mxu0 0.0
        %1913 = vmatprep.subr.mxu0 0.0
        %1914 = vmatpush2.msra.mxu0 0.0
        %1915 = vmatprep.subr.mxu0 0.0
        %1916 = vmatpush2.msra.mxu0 0.0
        %1917 = vmatprep.subr.mxu0 0.0
        %1918 = vmatpush2.msra.mxu0 0.0
        %1919 = vmatprep.subr.mxu0 0.0
        %1920 = vmatpush2.msra.mxu0 0.0
        %1921 = vmatprep.subr.mxu0 0.0
        %1922 = vmatpush2.msra.mxu0 0.0
        %1923 = vmatprep.subr.mxu0 0.0
        %1924 = vmatpush2.msra.mxu0 0.0
        %1925 = vmatprep.subr.mxu0 0.0
        %1926 = vmatpush2.msra.mxu0 0.0
        %1927 = vmatprep.subr.mxu0 0.0
        %1928 = vmatpush2.msra.mxu0 0.0
        %1929 = vmatprep.subr.mxu0 0.0
        %1930 = vmatpush2.msra.mxu0 0.0
        %1931 = vmatprep.subr.mxu0 0.0
        %1932 = vmatpush2.msra.mxu0 0.0
        %1933 = vmatprep.subr.mxu0 0.0
        %1934 = vmatpush2.msra.mxu0 0.0
        %1935 = vmatprep.subr.mxu0 0.0
        %1936 = vmatpush2.msra.mxu0 0.0
        %1937 = vmatprep.subr.mxu0 0.0
        %1938 = vmatpush2.msra.mxu0 0.0
        %1939 = vmatprep.mubr.f32.mxu0 0.0
        %1940 = vmatmul.mubr.f32.gmra.mxu0 %v1873
        %v1941 = vpop.f32.mrf.mxu0
        %v1942 = vadd.f32 %v1870, %v1941
        %v1943 = vpop.f32.mrf.mxu0
        %1944 = vdwg.mxu0
        %1945 = vst.msk [vmem:[%s286] sm:$0xff] %vm1858, %v1942
        %s1946 = sand.u32 %s179, 1
        %s1947 = scalar_lea.sflag [#allocation7], %s1946
        %s1948 = sand.u32 %s179, 1
        %s1949 = smul.addr %s1948, 8
        %s1950 = scalar_lea.vmem [#allocation8], %s1949
        // Predicated region
        $region53: #{tpu_custom_call.1} parent=43 // pred_check
          %p1951 = pneg %p189
        $region54: #{tpu_custom_call.1} parent=43 // pred_check_branch
          %1953 = sbr.rel (%p1951) target = $region56
        $region55: #{tpu_custom_call.1} parent=43 // pred_region
          %s1955 = ssub.s32 128, 128
          %1956 = vsyncadd %s1947, %s1955
          %s1957 = sadd.s32 %s26, %s25
          %s1958 = smul.addr %s1957, 128
          %s1959 = scalar_lea.hbm %s6, %s1958
          %s1961 = sshll.u32 %s1950, 4
          %s1962 = int_to_ptr.vmem [resolvable:$true] %s1961
          %1964 = dma.vmem_to_hbm [thread:$0]  %s1962, 128, %s1959, %s1947
        $region56: #{tpu_custom_call.1} parent=43 // pred_fallthru
          _
      $region44: #{tpu_custom_call.1} parent=5 // pred_fallthru
        _
      %p1965 = scmp.le.s32.totalorder 2, %s16
      // Predicated region
      $region57: #{tpu_custom_call.1} parent=5 // pred_check
        %p1966 = pneg %p1965
      $region58: #{tpu_custom_call.1} parent=5 // pred_check_branch
        %1968 = sbr.rel (%p1966) target = $region60
      $region59: #{tpu_custom_call.1} parent=5 // pred_region
        %s1969 = ssub.s32 %s16, 2
        // Predicated region
        $region61: #{tpu_custom_call.1} parent=59 // pred_check
          %p1970 = pneg %p195
        $region62: #{tpu_custom_call.1} parent=59 // pred_check_branch
          %1972 = sbr.rel (%p1970) target = $region64
        $region63: #{tpu_custom_call.1} parent=59 // pred_region
          %s1973 = sand.u32 %s180, 1
          %s1974 = scalar_lea.sflag [#allocation7], %s1973
          %s1975 = sand.u32 %s180, 1
          %s1976 = smul.addr %s1975, 8
          %s1977 = scalar_lea.vmem [#allocation8], %s1976
          %1978 = dma.done %s1974, 128
        $region64: #{tpu_custom_call.1} parent=59 // pred_fallthru
          _
      $region60: #{tpu_custom_call.1} parent=5 // pred_fallthru
        _
    $region6: #{tpu_custom_call.1} parent=1 // loop_footer
      %s20 = sadd.s32 1, %s16
    $region7: #{tpu_custom_call.1} parent=1 // loop_footer_branch
      %15 = sbr.rel target = $region3
    $region8: #{tpu_custom_call.1} parent=1 // loop_exit
      _
    %1979 = vsyncpa [#allocation6], 1
    %s1980 = scalar_lea.sflag [#allocation6], 1
    %1981 = vsyncpa %s1980, 1
    %1982 = vsyncpa [#allocation7], 1
    %s1983 = scalar_lea.sflag [#allocation7], 1
    %1984 = vsyncpa %s1983, 1

// kernel: tpu_custom_call.1
$region0: #{tpu_custom_call.1}
  #allocation0 [shape = 'u32[]', space=smem, size = 0x4, offset = 0x4, fixed_abs, tag = 'smem constant byte address 0x4 - core index']
  #allocation1 [shape = 'u32[144,128]{1,0:T(1,128)}', space=vmem, size = 0x12000, scoped, tag = 'internal scratch']
  #allocation2 [shape = 'f32[8,64]{1,0:T(8,128)}', space=vmem, size = 0x1000, scoped, tag = 'scratch operand']
  #allocation3 [shape = 'f32[32,8]{1,0:T(8,128)}', space=vmem, size = 0x4000, scoped, tag = 'scratch operand']
  #allocation4 [shape = 'f32[8,32]{1,0:T(8,128)}', space=vmem, size = 0x1000, scoped, tag = 'scratch operand']
  %s0 = inlined_call_operand.vmem [shape: f32[2,8,32], index: 0, kind: input, shape index: {}]
  %s1 = inlined_call_operand.vmem [shape: f32[2,32,8], index: 1, kind: input, shape index: {}]
  %s2 = inlined_call_operand.vmem [shape: f32[32,64], index: 2, kind: input, shape index: {}]
  %s3 = inlined_call_operand.vmem [shape: f32[32,32], index: 3, kind: input, shape index: {}]
  %s4 = inlined_call_operand.hbm [shape: f32[32,32], index: 4, kind: input, shape index: {}]
  %s5 = inlined_call_operand.vmem [shape: f32[1,32], index: 5, kind: input, shape index: {}]
  %s6 = inlined_call_operand.hbm [shape: f32[2,8,32], index: 6, kind: output, shape index: {}]
  %s7 = sld [smem:[#allocation0]]
  $region65: #{tpu_custom_call.1} parent=0
    _
  %s9 = ssub.s32 1, %s7
  %s10 = scalar_select 0, %s9, %s7
  $region1: #{tpu_custom_call.1} parent=0
    #allocation5 [shape = 'u8[16384]{0}', space=vmem, size = 0x4000, scoped, tag = 'input window, operand 4, single buffered']
    #allocation6 [shape = 's32[2]{0}', space=sflag, size = 0x8, scoped, tag = 'scoped memory for tpu_custom_call.1']
    #allocation7 [shape = 's32[2]{0}', space=sflag, size = 0x8, scoped, tag = 'scoped memory for tpu_custom_call.1']
    #allocation8 [shape = 'u8[8192]{0}', space=vmem, size = 0x2000, scoped, tag = 'output window, operand 0']
    %11 = vsyncpa [#allocation6], 0
    %12 = vsyncpa [#allocation7], 0
    %s13 = scalar_lea.sflag [#allocation7], 1
    %14 = vsyncpa %s13, 0
    loop: start=0, step=1, limit=4
    $region2: #{tpu_custom_call.1} parent=1 // loop_pre_header
      _
    $region3: #{tpu_custom_call.1} parent=1 // loop_header
      %s16 = sphi 0, %s20
      %p17 = scmp.ge.s32.totalorder %s16, 4
      %s23 = sphi 0, %s35
      %s24 = sphi 0, %s31
      %s25 = sphi 0, %s23
      %s26 = sphi 0, %s24
      %s27 = sphi 0, %s25
      %s28 = sphi 0, %s26
      %s38 = sphi 0, %s40
      %s41 = sphi 0, %s38
      %s42 = sphi 0, %s41
      %s58 = sphi 0, %s42
      %s64 = sphi 0, %s66
      %s67 = sphi 0, %s64
      %s68 = sphi 0, %s67
      %s84 = sphi 0, %s68
      %s88 = sphi 0, %s88
      %s90 = sphi 0, %s88
      %s91 = sphi 0, %s90
      %s105 = sphi 0, %s91
      %s109 = sphi 0, %s109
      %s111 = sphi 0, %s109
      %s112 = sphi 0, %s111
      %s126 = sphi 0, %s112
      %s130 = sphi 0, %s130
      %s132 = sphi 0, %s130
      %s133 = sphi 0, %s132
      %s147 = sphi 0, %s133
      %s151 = sphi 0, %s151
      %s153 = sphi 0, %s151
      %s154 = sphi 0, %s153
      %s168 = sphi 0, %s154
      %s176 = sphi 0, %s178
      %s179 = sphi 0, %s176
      %s180 = sphi 0, %s179
      %s196 = sphi 0, %s180
    $region4: #{tpu_custom_call.1} parent=1 // loop_header_branch
      %19 = sbr.rel (%p17) target = $region8
    $region5: #{tpu_custom_call.1} parent=1 // loop_body
      %s21 = ssub.s32 %s16, 1
      %s22 = ssub.s32 %s16, 2
      %s29 = sadd.s32 1, %s24
      %p30 = scmp.ge.s32.totalorder %s29, 1
      %s31 = scalar_select %p30, 0, %s29
      %s32 = sadd.s32 1, %s23
      %s33 = scalar_select %p30, %s32, %s23
      %p34 = scmp.ge.s32.totalorder %s33, 2
      %s35 = scalar_select %p34, 0, %s33
      %s36 = ssub.s32 %s23, %s35
      %p37 = scmp.eq.s32.totalorder %s36, 0
      %s39 = sadd.s32 %s38, 1
      %s40 = scalar_select %p37, %s38, %s39
      %p43 = pneg %p37
      %p44 = scmp.eq.s32.totalorder %s16, 1
      %p45 = por %p43, %p44
      %p46 = scmp.ne.s32.totalorder %s38, %s41
      %p47 = scmp.eq.s32.totalorder %s16, 0
      %p48 = por %p46, %p47
      %p49 = scmp.ne.s32.totalorder %s38, %s41
      %p50 = scmp.eq.s32.totalorder %s21, 1
      %p51 = por %p49, %p50
      %p52 = scmp.ne.s32.totalorder %s41, %s42
      %p53 = scmp.eq.s32.totalorder %s21, 0
      %p54 = por %p52, %p53
      %p55 = scmp.ne.s32.totalorder %s41, %s42
      %p56 = scmp.eq.s32.totalorder %s22, 1
      %p57 = por %p55, %p56
      %p59 = scmp.ne.s32.totalorder %s42, %s58
      %p60 = scmp.eq.s32.totalorder %s22, 0
      %p61 = por %p59, %p60
      %s62 = ssub.s32 %s23, %s35
      %p63 = scmp.eq.s32.totalorder %s62, 0
      %s65 = sadd.s32 %s64, 1
      %s66 = scalar_select %p63, %s64, %s65
      %p69 = pneg %p63
      %p70 = scmp.eq.s32.totalorder %s16, 1
      %p71 = por %p69, %p70
      %p72 = scmp.ne.s32.totalorder %s64, %s67
      %p73 = scmp.eq.s32.totalorder %s16, 0
      %p74 = por %p72, %p73
      %p75 = scmp.ne.s32.totalorder %s64, %s67
      %p76 = scmp.eq.s32.totalorder %s21, 1
      %p77 = por %p75, %p76
      %p78 = scmp.ne.s32.totalorder %s67, %s68
      %p79 = scmp.eq.s32.totalorder %s21, 0
      %p80 = por %p78, %p79
      %p81 = scmp.ne.s32.totalorder %s67, %s68
      %p82 = scmp.eq.s32.totalorder %s22, 1
      %p83 = por %p81, %p82
      %p85 = scmp.ne.s32.totalorder %s68, %s84
      %p86 = scmp.eq.s32.totalorder %s22, 0
      %p87 = por %p85, %p86
      %s89 = sadd.s32 %s88, 1
      %p92 = scmp.eq.s32.totalorder %s16, 1
      %p93 = scmp.ne.s32.totalorder %s88, %s90
      %p94 = scmp.eq.s32.totalorder %s16, 0
      %p95 = por %p93, %p94
      %p96 = scmp.ne.s32.totalorder %s88, %s90
      %p97 = scmp.eq.s32.totalorder %s21, 1
      %p98 = por %p96, %p97
      %p99 = scmp.ne.s32.totalorder %s90, %s91
      %p100 = scmp.eq.s32.totalorder %s21, 0
      %p101 = por %p99, %p100
      %p102 = scmp.ne.s32.totalorder %s90, %s91
      %p103 = scmp.eq.s32.totalorder %s22, 1
      %p104 = por %p102, %p103
      %p106 = scmp.ne.s32.totalorder %s91, %s105
      %p107 = scmp.eq.s32.totalorder %s22, 0
      %p108 = por %p106, %p107
      %s110 = sadd.s32 %s109, 1
      %p113 = scmp.eq.s32.totalorder %s16, 1
      %p114 = scmp.ne.s32.totalorder %s109, %s111
      %p115 = scmp.eq.s32.totalorder %s16, 0
      %p116 = por %p114, %p115
      %p117 = scmp.ne.s32.totalorder %s109, %s111
      %p118 = scmp.eq.s32.totalorder %s21, 1
      %p119 = por %p117, %p118
      %p120 = scmp.ne.s32.totalorder %s111, %s112
      %p121 = scmp.eq.s32.totalorder %s21, 0
      %p122 = por %p120, %p121
      %p123 = scmp.ne.s32.totalorder %s111, %s112
      %p124 = scmp.eq.s32.totalorder %s22, 1
      %p125 = por %p123, %p124
      %p127 = scmp.ne.s32.totalorder %s112, %s126
      %p128 = scmp.eq.s32.totalorder %s22, 0
      %p129 = por %p127, %p128
      %s131 = sadd.s32 %s130, 1
      %p134 = scmp.eq.s32.totalorder %s16, 1
      %p135 = scmp.ne.s32.totalorder %s130, %s132
      %p136 = scmp.eq.s32.totalorder %s16, 0
      %p137 = por %p135, %p136
      %p138 = scmp.ne.s32.totalorder %s130, %s132
      %p139 = scmp.eq.s32.totalorder %s21, 1
      %p140 = por %p138, %p139
      %p141 = scmp.ne.s32.totalorder %s132, %s133
      %p142 = scmp.eq.s32.totalorder %s21, 0
      %p143 = por %p141, %p142
      %p144 = scmp.ne.s32.totalorder %s132, %s133
      %p145 = scmp.eq.s32.totalorder %s22, 1
      %p146 = por %p144, %p145
      %p148 = scmp.ne.s32.totalorder %s133, %s147
      %p149 = scmp.eq.s32.totalorder %s22, 0
      %p150 = por %p148, %p149
      %s152 = sadd.s32 %s151, 1
      %p155 = scmp.eq.s32.totalorder %s16, 1
      %p156 = scmp.ne.s32.totalorder %s151, %s153
      %p157 = scmp.eq.s32.totalorder %s16, 0
      %p158 = por %p156, %p157
      %p159 = scmp.ne.s32.totalorder %s151, %s153
      %p160 = scmp.eq.s32.totalorder %s21, 1
      %p161 = por %p159, %p160
      %p162 = scmp.ne.s32.totalorder %s153, %s154
      %p163 = scmp.eq.s32.totalorder %s21, 0
      %p164 = por %p162, %p163
      %p165 = scmp.ne.s32.totalorder %s153, %s154
      %p166 = scmp.eq.s32.totalorder %s22, 1
      %p167 = por %p165, %p166
      %p169 = scmp.ne.s32.totalorder %s154, %s168
      %p170 = scmp.eq.s32.totalorder %s22, 0
      %p171 = por %p169, %p170
      %s172 = ssub.s32 %s23, %s35
      %s173 = ssub.s32 %s24, %s31
      %s174 = sor.u32 %s172, %s173
      %p175 = scmp.eq.s32.totalorder %s174, 0
      %s177 = sadd.s32 %s176, 1
      %s178 = scalar_select %p175, %s176, %s177
      %p181 = pneg %p175
      %p182 = scmp.eq.s32.totalorder %s16, 1
      %p183 = por %p181, %p182
      %p184 = scmp.ne.s32.totalorder %s176, %s179
      %p185 = scmp.eq.s32.totalorder %s16, 0
      %p186 = por %p184, %p185
      %p187 = scmp.ne.s32.totalorder %s176, %s179
      %p188 = scmp.eq.s32.totalorder %s21, 1
      %p189 = por %p187, %p188
      %p190 = scmp.ne.s32.totalorder %s179, %s180
      %p191 = scmp.eq.s32.totalorder %s21, 0
      %p192 = por %p190, %p191
      %p193 = scmp.ne.s32.totalorder %s179, %s180
      %p194 = scmp.eq.s32.totalorder %s22, 1
      %p195 = por %p193, %p194
      %p197 = scmp.ne.s32.totalorder %s180, %s196
      %p198 = scmp.eq.s32.totalorder %s22, 0
      %p199 = por %p197, %p198
      %p200 = scmp.le.s32.totalorder 1, %s16
      %p201 = scmp.lt.s32.totalorder %s16, 3
      %p202 = pnand %p200, %p201
      %p203 = pneg %p202
      // Predicated region
      $region9: #{tpu_custom_call.1} parent=5 // pred_check
        _
      $region10: #{tpu_custom_call.1} parent=5 // pred_check_branch
        %205 = sbr.rel (%p202) target = $region12
      $region11: #{tpu_custom_call.1} parent=5 // pred_region
        %s206 = ssub.s32 %s16, 1
        // Predicated region
        $region13: #{tpu_custom_call.1} parent=11 // pred_check
          %p207 = pneg %p101
        $region14: #{tpu_custom_call.1} parent=11 // pred_check_branch
          %209 = sbr.rel (%p207) target = $region16
        $region15: #{tpu_custom_call.1} parent=11 // pred_region
          _
        $region16: #{tpu_custom_call.1} parent=11 // pred_fallthru
          _
        // Predicated region
        $region17: #{tpu_custom_call.1} parent=11 // pred_check
          %p210 = pneg %p122
        $region18: #{tpu_custom_call.1} parent=11 // pred_check_branch
          %212 = sbr.rel (%p210) target = $region20
        $region19: #{tpu_custom_call.1} parent=11 // pred_region
          _
        $region20: #{tpu_custom_call.1} parent=11 // pred_fallthru
          _
        // Predicated region
        $region21: #{tpu_custom_call.1} parent=11 // pred_check
          %p213 = pneg %p143
        $region22: #{tpu_custom_call.1} parent=11 // pred_check_branch
          %215 = sbr.rel (%p213) target = $region24
        $region23: #{tpu_custom_call.1} parent=11 // pred_region
          %s217 = ssub.s32 512, 512
          %218 = vsyncadd [#allocation6], %s217
          %s219 = sshll.u32 [#allocation5], 4
          %s220 = int_to_ptr.vmem [resolvable:$true] %s219
          %225 = dma.hbm_to_vmem [thread:$0]  %s4, 512, %s220, [#allocation6], 128, 128, 8
        $region24: #{tpu_custom_call.1} parent=11 // pred_fallthru
          _
        // Predicated region
        $region25: #{tpu_custom_call.1} parent=11 // pred_check
          %p226 = pneg %p164
        $region26: #{tpu_custom_call.1} parent=11 // pred_check_branch
          %228 = sbr.rel (%p226) target = $region28
        $region27: #{tpu_custom_call.1} parent=11 // pred_region
          _
        $region28: #{tpu_custom_call.1} parent=11 // pred_fallthru
          _
      $region12: #{tpu_custom_call.1} parent=5 // pred_fallthru
        _
      %p229 = scmp.lt.s32.totalorder %s16, 2
      // Predicated region
      $region29: #{tpu_custom_call.1} parent=5 // pred_check
        %p230 = pneg %p229
      $region30: #{tpu_custom_call.1} parent=5 // pred_check_branch
        %232 = sbr.rel (%p230) target = $region32
      $region31: #{tpu_custom_call.1} parent=5 // pred_region
        // Predicated region
        $region33: #{tpu_custom_call.1} parent=31 // pred_check
          %p233 = pneg %p48
        $region34: #{tpu_custom_call.1} parent=31 // pred_check_branch
          %235 = sbr.rel (%p233) target = $region36
        $region35: #{tpu_custom_call.1} parent=31 // pred_region
          %p236 = scmp.lt.s32.totalorder %s23, 1
          %s237 = scalar_select %p236, %s23, 1
          %s238 = smul.addr %s237, 8
          %s239 = scalar_lea.vmem %s0, %s238
        $region36: #{tpu_custom_call.1} parent=31 // pred_fallthru
          _
        // Predicated region
        $region37: #{tpu_custom_call.1} parent=31 // pred_check
          %p240 = pneg %p74
        $region38: #{tpu_custom_call.1} parent=31 // pred_check_branch
          %242 = sbr.rel (%p240) target = $region40
        $region39: #{tpu_custom_call.1} parent=31 // pred_region
          %p243 = scmp.lt.s32.totalorder %s23, 1
          %s244 = scalar_select %p243, %s23, 1
          %s245 = smul.addr %s244, 4
          %s246 = smul.addr %s245, 8
          %s247 = scalar_lea.vmem %s1, %s246
        $region40: #{tpu_custom_call.1} parent=31 // pred_fallthru
          _
      $region32: #{tpu_custom_call.1} parent=5 // pred_fallthru
        _
      %p248 = scmp.le.s32.totalorder 1, %s16
      %p249 = scmp.lt.s32.totalorder %s16, 3
      %p250 = pnand %p248, %p249
      %p251 = pneg %p250
      // Predicated region
      $region41: #{tpu_custom_call.1} parent=5 // pred_check
        _
      $region42: #{tpu_custom_call.1} parent=5 // pred_check_branch
        %253 = sbr.rel (%p250) target = $region44
      $region43: #{tpu_custom_call.1} parent=5 // pred_region
        %s254 = ssub.s32 %s16, 1
        // Predicated region
        $region45: #{tpu_custom_call.1} parent=43 // pred_check
          %p255 = pneg %p143
        $region46: #{tpu_custom_call.1} parent=43 // pred_check_branch
          %257 = sbr.rel (%p255) target = $region48
        $region47: #{tpu_custom_call.1} parent=43 // pred_region
          %258 = dma.done [#allocation6], 512
        $region48: #{tpu_custom_call.1} parent=43 // pred_fallthru
          _
        %p259 = scmp.lt.s32.totalorder %s25, 1
        %s260 = scalar_select %p259, %s25, 1
        %s261 = smul.addr %s260, 8
        %s262 = scalar_lea.vmem %s0, %s261
        %p263 = pneg %p54
        %p264 = pneg %p51
        %p265 = scmp.lt.s32.totalorder %s25, 1
        %s266 = scalar_select %p265, %s25, 1
        %s267 = smul.addr %s266, 4
        %s268 = smul.addr %s267, 8
        %s269 = scalar_lea.vmem %s1, %s268
        %p270 = pneg %p80
        %p271 = pneg %p77
        %p272 = pneg %p101
        %p273 = pneg %p98
        %p274 = pneg %p122
        %p275 = pneg %p119
        %p276 = pneg %p143
        %p277 = pneg %p140
        %p278 = pneg %p164
        %p279 = pneg %p161
        %p280 = pneg %p192
        %p281 = pneg %p189
        %s282 = sand.u32 %s179, 1
        %s283 = scalar_lea.sflag [#allocation7], %s282
        %s284 = sand.u32 %s179, 1
        %s285 = smul.addr %s284, 8
        %s286 = scalar_lea.vmem [#allocation8], %s285
        %p287 = scmp.lt.s32.totalorder %s25, 1
        %s288 = scalar_select %p287, %s25, 1
        %s289 = smul.addr %s288, 8
        %s290 = scalar_lea.vmem %s0, %s289
        %p291 = scmp.lt.s32.totalorder %s25, 1
        %s292 = scalar_select %p291, %s25, 1
        %s293 = smul.addr %s292, 4
        %s294 = smul.addr %s293, 8
        %s295 = scalar_lea.vmem %s1, %s294
        %p296 = scmp.eq.s32.totalorder %s26, 0
        // Predicated region
        $region49: #{tpu_custom_call.1} parent=43 // pred_check
          %p297 = pneg %p296
        $region50: #{tpu_custom_call.1} parent=43 // pred_check_branch
          %299 = sbr.rel (%p297) target = $region52
        $region51: #{tpu_custom_call.1} parent=43 // pred_region
          %v300 = vld [vmem:[%s290] sm:$0xff]
          %v301 = vld [vmem:[%s2] sm:$0xff]
          %v302 = vld [vmem:[%s2 + $0x8] sm:$0xff]
          %v303 = vld [vmem:[%s2 + $0x10] sm:$0xff]
          %v304 = vld [vmem:[%s2 + $0x18] sm:$0xff]
          %vm305 = vcmask 261120
          %v307 = vsel %vm305, %v300, 0
          %309 = vmatprep.subr.mxu0 0.0
          %310 = vmatpush1.msra.mxu0 0.0
          %311 = vmatprep.subr.mxu0 0.0
          %312 = vmatpush1.msra.mxu0 0.0
          %313 = vmatprep.subr.mxu0 0.0
          %314 = vmatpush1.msra.mxu0 0.0
          %315 = vmatprep.subr.mxu0 0.0
          %316 = vmatpush1.msra.mxu0 0.0
          %317 = vmatprep.subr.mxu0 0.0
          %318 = vmatpush1.msra.mxu0 0.0
          %319 = vmatprep.subr.mxu0 0.0
          %320 = vmatpush1.msra.mxu0 0.0
          %321 = vmatprep.subr.mxu0 0.0
          %322 = vmatpush1.msra.mxu0 0.0
          %323 = vmatprep.subr.mxu0 0.0
          %324 = vmatpush1.msra.mxu0 0.0
          %325 = vmatprep.subr.mxu0 0.0
          %326 = vmatpush1.msra.mxu0 0.0
          %327 = vmatprep.subr.mxu0 0.0
          %328 = vmatpush1.msra.mxu0 0.0
          %329 = vmatprep.subr.mxu0 0.0
          %330 = vmatpush1.msra.mxu0 0.0
          %331 = vmatprep.subr.mxu0 0.0
          %332 = vmatpush1.msra.mxu0 0.0
          %333 = vmatprep.subr.mxu0 0.0
          %334 = vmatpush1.msra.mxu0 %v304
          %335 = vmatprep.subr.mxu0 0.0
          %336 = vmatpush1.msra.mxu0 %v303
          %337 = vmatprep.subr.mxu0 0.0
          %338 = vmatpush1.msra.mxu0 %v302
          %339 = vmatprep.subr.mxu0 0.0
          %340 = vmatpush1.msra.mxu0 %v301
          %341 = vmatprep.subr.mxu0 0.0
          %342 = vmatpush2.msra.mxu0 0.0
          %343 = vmatprep.subr.mxu0 0.0
          %344 = vmatpush2.msra.mxu0 0.0
          %345 = vmatprep.subr.mxu0 0.0
          %346 = vmatpush2.msra.mxu0 0.0
          %347 = vmatprep.subr.mxu0 0.0
          %348 = vmatpush2.msra.mxu0 0.0
          %349 = vmatprep.subr.mxu0 0.0
          %350 = vmatpush2.msra.mxu0 0.0
          %351 = vmatprep.subr.mxu0 0.0
          %352 = vmatpush2.msra.mxu0 0.0
          %353 = vmatprep.subr.mxu0 0.0
          %354 = vmatpush2.msra.mxu0 0.0
          %355 = vmatprep.subr.mxu0 0.0
          %356 = vmatpush2.msra.mxu0 0.0
          %357 = vmatprep.subr.mxu0 0.0
          %358 = vmatpush2.msra.mxu0 0.0
          %359 = vmatprep.subr.mxu0 0.0
          %360 = vmatpush2.msra.mxu0 0.0
          %361 = vmatprep.subr.mxu0 0.0
          %362 = vmatpush2.msra.mxu0 0.0
          %363 = vmatprep.subr.mxu0 0.0
          %364 = vmatpush2.msra.mxu0 0.0
          %365 = vmatprep.subr.mxu0 0.0
          %366 = vmatpush2.msra.mxu0 0.0
          %367 = vmatprep.subr.mxu0 0.0
          %368 = vmatpush2.msra.mxu0 0.0
          %369 = vmatprep.subr.mxu0 0.0
          %370 = vmatpush2.msra.mxu0 0.0
          %371 = vmatprep.subr.mxu0 0.0
          %372 = vmatpush2.msra.mxu0 0.0
          %373 = vmatprep.mubr.f32.mxu0 0.0
          %374 = vmatmul.mubr.f32.gmra.mxu0 %v307
          %v375 = vpop.f32.mrf.mxu0
          %v376 = vadd.f32 0.0, %v375
          %v377 = vpop.f32.mrf.mxu0
          %378 = vdwg.mxu0
          %vm379 = vcmask 523264
          %380 = vst.msk [vmem:[#allocation2] sm:$0xff] %vm379, %v376
          %v381 = vld [vmem:[%s295] sm:$0xff]
          %v382 = vld [vmem:[%s295 + $0x8] sm:$0xff]
          %v383 = vld [vmem:[%s295 + $0x10] sm:$0xff]
          %v384 = vld [vmem:[%s295 + $0x18] sm:$0xff]
          %v385 = vld [vmem:[%s3] sm:$0xff]
          %v386 = vld [vmem:[%s3 + $0x8] sm:$0xff]
          %v387 = vld [vmem:[%s3 + $0x10] sm:$0xff]
          %v388 = vld [vmem:[%s3 + $0x18] sm:$0xff]
          %v390 = vsel %vm305, %v385, 0
          %v393 = vsel %vm305, %v386, 0
          %v396 = vsel %vm305, %v387, 0
          %v399 = vsel %vm305, %v388, 0
          %401 = vmatprep.subr.mxu0 0.0
          %402 = vmatpush1.msra.mxu0 0.0
          %403 = vmatprep.subr.mxu0 0.0
          %404 = vmatpush1.msra.mxu0 0.0
          %405 = vmatprep.subr.mxu0 0.0
          %406 = vmatpush1.msra.mxu0 0.0
          %407 = vmatprep.subr.mxu0 0.0
          %408 = vmatpush1.msra.mxu0 0.0
          %409 = vmatprep.subr.mxu0 0.0
          %410 = vmatpush1.msra.mxu0 0.0
          %411 = vmatprep.subr.mxu0 0.0
          %412 = vmatpush1.msra.mxu0 0.0
          %413 = vmatprep.subr.mxu0 0.0
          %414 = vmatpush1.msra.mxu0 0.0
          %415 = vmatprep.subr.mxu0 0.0
          %416 = vmatpush1.msra.mxu0 0.0
          %417 = vmatprep.subr.mxu0 0.0
          %418 = vmatpush1.msra.mxu0 0.0
          %419 = vmatprep.subr.mxu0 0.0
          %420 = vmatpush1.msra.mxu0 0.0
          %421 = vmatprep.subr.mxu0 0.0
          %422 = vmatpush1.msra.mxu0 0.0
          %423 = vmatprep.subr.mxu0 0.0
          %424 = vmatpush1.msra.mxu0 0.0
          %425 = vmatprep.subr.mxu0 0.0
          %426 = vmatpush1.msra.mxu0 %v384
          %427 = vmatprep.subr.mxu0 0.0
          %428 = vmatpush1.msra.mxu0 %v383
          %429 = vmatprep.subr.mxu0 0.0
          %430 = vmatpush1.msra.mxu0 %v382
          %431 = vmatprep.subr.mxu0 0.0
          %432 = vmatpush1.msra.mxu0 %v381
          %433 = vmatprep.subr.mxu0 0.0
          %434 = vmatpush2.msra.mxu0 0.0
          %435 = vmatprep.subr.mxu0 0.0
          %436 = vmatpush2.msra.mxu0 0.0
          %437 = vmatprep.subr.mxu0 0.0
          %438 = vmatpush2.msra.mxu0 0.0
          %439 = vmatprep.subr.mxu0 0.0
          %440 = vmatpush2.msra.mxu0 0.0
          %441 = vmatprep.subr.mxu0 0.0
          %442 = vmatpush2.msra.mxu0 0.0
          %443 = vmatprep.subr.mxu0 0.0
          %444 = vmatpush2.msra.mxu0 0.0
          %445 = vmatprep.subr.mxu0 0.0
          %446 = vmatpush2.msra.mxu0 0.0
          %447 = vmatprep.subr.mxu0 0.0
          %448 = vmatpush2.msra.mxu0 0.0
          %449 = vmatprep.subr.mxu0 0.0
          %450 = vmatpush2.msra.mxu0 0.0
          %451 = vmatprep.subr.mxu0 0.0
          %452 = vmatpush2.msra.mxu0 0.0
          %453 = vmatprep.subr.mxu0 0.0
          %454 = vmatpush2.msra.mxu0 0.0
          %455 = vmatprep.subr.mxu0 0.0
          %456 = vmatpush2.msra.mxu0 0.0
          %457 = vmatprep.subr.mxu0 0.0
          %458 = vmatpush2.msra.mxu0 0.0
          %459 = vmatprep.subr.mxu0 0.0
          %460 = vmatpush2.msra.mxu0 0.0
          %461 = vmatprep.subr.mxu0 0.0
          %462 = vmatpush2.msra.mxu0 0.0
          %463 = vmatprep.subr.mxu0 0.0
          %464 = vmatpush2.msra.mxu0 0.0
          %465 = vmatprep.mubr.f32.mxu0 0.0
          %466 = vmatmul.mubr.f32.gmra.mxu0 %v390
          %v467 = vpop.f32.mrf.mxu0
          %v468 = vadd.f32 0.0, %v467
          %v469 = vpop.f32.mrf.mxu0
          %470 = vmatprep.mubr.f32.mxu0 0.0
          %471 = vmatmul.mubr.f32.gmra.mxu0 %v393
          %v472 = vpop.f32.mrf.mxu0
          %v473 = vadd.f32 0.0, %v472
          %v474 = vpop.f32.mrf.mxu0
          %475 = vmatprep.mubr.f32.mxu0 0.0
          %476 = vmatmul.mubr.f32.gmra.mxu0 %v396
          %v477 = vpop.f32.mrf.mxu0
          %v478 = vadd.f32 0.0, %v477
          %v479 = vpop.f32.mrf.mxu0
          %480 = vmatprep.mubr.f32.mxu0 0.0
          %481 = vmatmul.mubr.f32.gmra.mxu0 %v399
          %v482 = vpop.f32.mrf.mxu0
          %v483 = vadd.f32 0.0, %v482
          %v484 = vpop.f32.mrf.mxu0
          %485 = vdwg.mxu0
          %vm486 = vcmask 64512
          %487 = vst.msk [vmem:[#allocation3] sm:$0xff] %vm486, %v468
          %488 = vst.msk [vmem:[#allocation3 + $0x8] sm:$0xff] %vm486, %v473
          %489 = vst.msk [vmem:[#allocation3 + $0x10] sm:$0xff] %vm486, %v478
          %490 = vst.msk [vmem:[#allocation3 + $0x18] sm:$0xff] %vm486, %v483
        $region52: #{tpu_custom_call.1} parent=43 // pred_fallthru
          _
        %s491 = smul.u32 %s26, 8
        %s492 = scalar_lea.vmem [#allocation2], %s491
        %v493 = vld [vmem:[%s492] sm:$0xff]
        %v494 = vld [vmem:[#allocation3] sm:$0xf]
        %vm495 = vcmask 31744
        %v497 = vsel %vm495, %v493, 0
        %vm499 = vcmask 1043456
        %v501 = vsel %vm499, %v494, 0
        %503 = vmatprep.subr.mxu0 0.0
        %504 = vmatpush1.msra.mxu0 0.0
        %505 = vmatprep.subr.mxu0 0.0
        %506 = vmatpush1.msra.mxu0 0.0
        %507 = vmatprep.subr.mxu0 0.0
        %508 = vmatpush1.msra.mxu0 0.0
        %509 = vmatprep.subr.mxu0 0.0
        %510 = vmatpush1.msra.mxu0 0.0
        %511 = vmatprep.subr.mxu0 0.0
        %512 = vmatpush1.msra.mxu0 0.0
        %513 = vmatprep.subr.mxu0 0.0
        %514 = vmatpush1.msra.mxu0 0.0
        %515 = vmatprep.subr.mxu0 0.0
        %516 = vmatpush1.msra.mxu0 0.0
        %517 = vmatprep.subr.mxu0 0.0
        %518 = vmatpush1.msra.mxu0 0.0
        %519 = vmatprep.subr.mxu0 0.0
        %520 = vmatpush1.msra.mxu0 0.0
        %521 = vmatprep.subr.mxu0 0.0
        %522 = vmatpush1.msra.mxu0 0.0
        %523 = vmatprep.subr.mxu0 0.0
        %524 = vmatpush1.msra.mxu0 0.0
        %525 = vmatprep.subr.mxu0 0.0
        %526 = vmatpush1.msra.mxu0 0.0
        %527 = vmatprep.subr.mxu0 0.0
        %528 = vmatpush1.msra.mxu0 0.0
        %529 = vmatprep.subr.mxu0 0.0
        %530 = vmatpush1.msra.mxu0 0.0
        %531 = vmatprep.subr.mxu0 0.0
        %532 = vmatpush1.msra.mxu0 0.0
        %533 = vmatprep.subr.mxu0 0.0
        %534 = vmatpush1.msra.mxu0 %v501
        %535 = vmatprep.subr.mxu0 0.0
        %536 = vmatpush2.msra.mxu0 0.0
        %537 = vmatprep.subr.mxu0 0.0
        %538 = vmatpush2.msra.mxu0 0.0
        %539 = vmatprep.subr.mxu0 0.0
        %540 = vmatpush2.msra.mxu0 0.0
        %541 = vmatprep.subr.mxu0 0.0
        %542 = vmatpush2.msra.mxu0 0.0
        %543 = vmatprep.subr.mxu0 0.0
        %544 = vmatpush2.msra.mxu0 0.0
        %545 = vmatprep.subr.mxu0 0.0
        %546 = vmatpush2.msra.mxu0 0.0
        %547 = vmatprep.subr.mxu0 0.0
        %548 = vmatpush2.msra.mxu0 0.0
        %549 = vmatprep.subr.mxu0 0.0
        %550 = vmatpush2.msra.mxu0 0.0
        %551 = vmatprep.subr.mxu0 0.0
        %552 = vmatpush2.msra.mxu0 0.0
        %553 = vmatprep.subr.mxu0 0.0
        %554 = vmatpush2.msra.mxu0 0.0
        %555 = vmatprep.subr.mxu0 0.0
        %556 = vmatpush2.msra.mxu0 0.0
        %557 = vmatprep.subr.mxu0 0.0
        %558 = vmatpush2.msra.mxu0 0.0
        %559 = vmatprep.subr.mxu0 0.0
        %560 = vmatpush2.msra.mxu0 0.0
        %561 = vmatprep.subr.mxu0 0.0
        %562 = vmatpush2.msra.mxu0 0.0
        %563 = vmatprep.subr.mxu0 0.0
        %564 = vmatpush2.msra.mxu0 0.0
        %565 = vmatprep.subr.mxu0 0.0
        %566 = vmatpush2.msra.mxu0 0.0
        %567 = vmatprep.mubr.f32.mxu0 0.0
        %568 = vmatmul.mubr.f32.gmra.mxu0 %v497
        %v569 = vpop.f32.mrf.mxu0
        %v570 = vadd.f32 0.0, %v569
        %v571 = vpop.f32.mrf.mxu0
        %572 = vdwg.mxu0
        %vm573 = vcmask 64512
        %v574 = vsel %vm573, %v570, -inf
        %575 = vmax.xlane.f32.xlu0 %v574
        %v576 = vpop.xlane.xlu0 %575
        %v577 = vsub.f32 %v570, %v576
        %v578 = vmul.f32 %v577, 1.442695
        %v579 = vpow.pop %v578
        %v580 = vsel %vm573, %v579, 0.0
        %581 = vadd.xlane.f32.xlu0 %v580
        %v582 = vpop.xlane.xlu0 %581
        %v583 = vld [vmem:[#allocation2] sm:$0xff]
        %585 = vrot.lane.b32.xlu0 %v583, 96
        %v586 = vpop.permute.xlu0 %585
        %v589 = vsel %vm573, %v579, 0
        %591 = vmatprep.subr.mxu0 0.0
        %592 = vmatpush1.msra.mxu0 0.0
        %593 = vmatprep.subr.mxu0 0.0
        %594 = vmatpush1.msra.mxu0 0.0
        %595 = vmatprep.subr.mxu0 0.0
        %596 = vmatpush1.msra.mxu0 0.0
        %597 = vmatprep.subr.mxu0 0.0
        %598 = vmatpush1.msra.mxu0 0.0
        %599 = vmatprep.subr.mxu0 0.0
        %600 = vmatpush1.msra.mxu0 0.0
        %601 = vmatprep.subr.mxu0 0.0
        %602 = vmatpush1.msra.mxu0 0.0
        %603 = vmatprep.subr.mxu0 0.0
        %604 = vmatpush1.msra.mxu0 0.0
        %605 = vmatprep.subr.mxu0 0.0
        %606 = vmatpush1.msra.mxu0 0.0
        %607 = vmatprep.subr.mxu0 0.0
        %608 = vmatpush1.msra.mxu0 0.0
        %609 = vmatprep.subr.mxu0 0.0
        %610 = vmatpush1.msra.mxu0 0.0
        %611 = vmatprep.subr.mxu0 0.0
        %612 = vmatpush1.msra.mxu0 0.0
        %613 = vmatprep.subr.mxu0 0.0
        %614 = vmatpush1.msra.mxu0 0.0
        %615 = vmatprep.subr.mxu0 0.0
        %616 = vmatpush1.msra.mxu0 0.0
        %617 = vmatprep.subr.mxu0 0.0
        %618 = vmatpush1.msra.mxu0 0.0
        %619 = vmatprep.subr.mxu0 0.0
        %620 = vmatpush1.msra.mxu0 0.0
        %621 = vmatprep.subr.mxu0 0.0
        %622 = vmatpush1.msra.mxu0 %v586
        %623 = vmatprep.subr.mxu0 0.0
        %624 = vmatpush2.msra.mxu0 0.0
        %625 = vmatprep.subr.mxu0 0.0
        %626 = vmatpush2.msra.mxu0 0.0
        %627 = vmatprep.subr.mxu0 0.0
        %628 = vmatpush2.msra.mxu0 0.0
        %629 = vmatprep.subr.mxu0 0.0
        %630 = vmatpush2.msra.mxu0 0.0
        %631 = vmatprep.subr.mxu0 0.0
        %632 = vmatpush2.msra.mxu0 0.0
        %633 = vmatprep.subr.mxu0 0.0
        %634 = vmatpush2.msra.mxu0 0.0
        %635 = vmatprep.subr.mxu0 0.0
        %636 = vmatpush2.msra.mxu0 0.0
        %637 = vmatprep.subr.mxu0 0.0
        %638 = vmatpush2.msra.mxu0 0.0
        %639 = vmatprep.subr.mxu0 0.0
        %640 = vmatpush2.msra.mxu0 0.0
        %641 = vmatprep.subr.mxu0 0.0
        %642 = vmatpush2.msra.mxu0 0.0
        %643 = vmatprep.subr.mxu0 0.0
        %644 = vmatpush2.msra.mxu0 0.0
        %645 = vmatprep.subr.mxu0 0.0
        %646 = vmatpush2.msra.mxu0 0.0
        %647 = vmatprep.subr.mxu0 0.0
        %648 = vmatpush2.msra.mxu0 0.0
        %649 = vmatprep.subr.mxu0 0.0
        %650 = vmatpush2.msra.mxu0 0.0
        %651 = vmatprep.subr.mxu0 0.0
        %652 = vmatpush2.msra.mxu0 0.0
        %653 = vmatprep.subr.mxu0 0.0
        %654 = vmatpush2.msra.mxu0 0.0
        %655 = vmatprep.mubr.f32.mxu0 0.0
        %656 = vmatmul.mubr.f32.gmra.mxu0 %v589
        %v657 = vpop.f32.mrf.mxu0
        %v658 = vadd.f32 0.0, %v657
        %v659 = vpop.f32.mrf.mxu0
        %660 = vdwg.mxu0
        %v661 = vrcp.pop %v582
        %v662 = vmul.f32 %v658, %v661
        %v663 = vld [vmem:[#allocation3 + $0x4] sm:$0xf]
        %664 = vrot.lane.b32.xlu0 %v493, 124
        %v665 = vpop.permute.xlu0 %664
        %v666 = vsel %vm495, %v665, 0
        %v669 = vsel %vm499, %v663, 0
        %671 = vmatprep.subr.mxu0 0.0
        %672 = vmatpush1.msra.mxu0 0.0
        %673 = vmatprep.subr.mxu0 0.0
        %674 = vmatpush1.msra.mxu0 0.0
        %675 = vmatprep.subr.mxu0 0.0
        %676 = vmatpush1.msra.mxu0 0.0
        %677 = vmatprep.subr.mxu0 0.0
        %678 = vmatpush1.msra.mxu0 0.0
        %679 = vmatprep.subr.mxu0 0.0
        %680 = vmatpush1.msra.mxu0 0.0
        %681 = vmatprep.subr.mxu0 0.0
        %682 = vmatpush1.msra.mxu0 0.0
        %683 = vmatprep.subr.mxu0 0.0
        %684 = vmatpush1.msra.mxu0 0.0
        %685 = vmatprep.subr.mxu0 0.0
        %686 = vmatpush1.msra.mxu0 0.0
        %687 = vmatprep.subr.mxu0 0.0
        %688 = vmatpush1.msra.mxu0 0.0
        %689 = vmatprep.subr.mxu0 0.0
        %690 = vmatpush1.msra.mxu0 0.0
        %691 = vmatprep.subr.mxu0 0.0
        %692 = vmatpush1.msra.mxu0 0.0
        %693 = vmatprep.subr.mxu0 0.0
        %694 = vmatpush1.msra.mxu0 0.0
        %695 = vmatprep.subr.mxu0 0.0
        %696 = vmatpush1.msra.mxu0 0.0
        %697 = vmatprep.subr.mxu0 0.0
        %698 = vmatpush1.msra.mxu0 0.0
        %699 = vmatprep.subr.mxu0 0.0
        %700 = vmatpush1.msra.mxu0 0.0
        %701 = vmatprep.subr.mxu0 0.0
        %702 = vmatpush1.msra.mxu0 %v669
        %703 = vmatprep.subr.mxu0 0.0
        %704 = vmatpush2.msra.mxu0 0.0
        %705 = vmatprep.subr.mxu0 0.0
        %706 = vmatpush2.msra.mxu0 0.0
        %707 = vmatprep.subr.mxu0 0.0
        %708 = vmatpush2.msra.mxu0 0.0
        %709 = vmatprep.subr.mxu0 0.0
        %710 = vmatpush2.msra.mxu0 0.0
        %711 = vmatprep.subr.mxu0 0.0
        %712 = vmatpush2.msra.mxu0 0.0
        %713 = vmatprep.subr.mxu0 0.0
        %714 = vmatpush2.msra.mxu0 0.0
        %715 = vmatprep.subr.mxu0 0.0
        %716 = vmatpush2.msra.mxu0 0.0
        %717 = vmatprep.subr.mxu0 0.0
        %718 = vmatpush2.msra.mxu0 0.0
        %719 = vmatprep.subr.mxu0 0.0
        %720 = vmatpush2.msra.mxu0 0.0
        %721 = vmatprep.subr.mxu0 0.0
        %722 = vmatpush2.msra.mxu0 0.0
        %723 = vmatprep.subr.mxu0 0.0
        %724 = vmatpush2.msra.mxu0 0.0
        %725 = vmatprep.subr.mxu0 0.0
        %726 = vmatpush2.msra.mxu0 0.0
        %727 = vmatprep.subr.mxu0 0.0
        %728 = vmatpush2.msra.mxu0 0.0
        %729 = vmatprep.subr.mxu0 0.0
        %730 = vmatpush2.msra.mxu0 0.0
        %731 = vmatprep.subr.mxu0 0.0
        %732 = vmatpush2.msra.mxu0 0.0
        %733 = vmatprep.subr.mxu0 0.0
        %734 = vmatpush2.msra.mxu0 0.0
        %735 = vmatprep.mubr.f32.mxu0 0.0
        %736 = vmatmul.mubr.f32.gmra.mxu0 %v666
        %v737 = vpop.f32.mrf.mxu0
        %v738 = vadd.f32 0.0, %v737
        %v739 = vpop.f32.mrf.mxu0
        %740 = vdwg.mxu0
        %v741 = vsel %vm573, %v738, -inf
        %742 = vmax.xlane.f32.xlu0 %v741
        %v743 = vpop.xlane.xlu0 %742
        %v744 = vsub.f32 %v738, %v743
        %v745 = vmul.f32 %v744, 1.442695
        %v746 = vpow.pop %v745
        %v747 = vsel %vm573, %v746, 0.0
        %748 = vadd.xlane.f32.xlu0 %v747
        %v749 = vpop.xlane.xlu0 %748
        %750 = vrot.lane.b32.xlu0 %v583, 92
        %v751 = vpop.permute.xlu0 %750
        %v754 = vsel %vm573, %v746, 0
        %756 = vmatprep.subr.mxu0 0.0
        %757 = vmatpush1.msra.mxu0 0.0
        %758 = vmatprep.subr.mxu0 0.0
        %759 = vmatpush1.msra.mxu0 0.0
        %760 = vmatprep.subr.mxu0 0.0
        %761 = vmatpush1.msra.mxu0 0.0
        %762 = vmatprep.subr.mxu0 0.0
        %763 = vmatpush1.msra.mxu0 0.0
        %764 = vmatprep.subr.mxu0 0.0
        %765 = vmatpush1.msra.mxu0 0.0
        %766 = vmatprep.subr.mxu0 0.0
        %767 = vmatpush1.msra.mxu0 0.0
        %768 = vmatprep.subr.mxu0 0.0
        %769 = vmatpush1.msra.mxu0 0.0
        %770 = vmatprep.subr.mxu0 0.0
        %771 = vmatpush1.msra.mxu0 0.0
        %772 = vmatprep.subr.mxu0 0.0
        %773 = vmatpush1.msra.mxu0 0.0
        %774 = vmatprep.subr.mxu0 0.0
        %775 = vmatpush1.msra.mxu0 0.0
        %776 = vmatprep.subr.mxu0 0.0
        %777 = vmatpush1.msra.mxu0 0.0
        %778 = vmatprep.subr.mxu0 0.0
        %779 = vmatpush1.msra.mxu0 0.0
        %780 = vmatprep.subr.mxu0 0.0
        %781 = vmatpush1.msra.mxu0 0.0
        %782 = vmatprep.subr.mxu0 0.0
        %783 = vmatpush1.msra.mxu0 0.0
        %784 = vmatprep.subr.mxu0 0.0
        %785 = vmatpush1.msra.mxu0 0.0
        %786 = vmatprep.subr.mxu0 0.0
        %787 = vmatpush1.msra.mxu0 %v751
        %788 = vmatprep.subr.mxu0 0.0
        %789 = vmatpush2.msra.mxu0 0.0
        %790 = vmatprep.subr.mxu0 0.0
        %791 = vmatpush2.msra.mxu0 0.0
        %792 = vmatprep.subr.mxu0 0.0
        %793 = vmatpush2.msra.mxu0 0.0
        %794 = vmatprep.subr.mxu0 0.0
        %795 = vmatpush2.msra.mxu0 0.0
        %796 = vmatprep.subr.mxu0 0.0
        %797 = vmatpush2.msra.mxu0 0.0
        %798 = vmatprep.subr.mxu0 0.0
        %799 = vmatpush2.msra.mxu0 0.0
        %800 = vmatprep.subr.mxu0 0.0
        %801 = vmatpush2.msra.mxu0 0.0
        %802 = vmatprep.subr.mxu0 0.0
        %803 = vmatpush2.msra.mxu0 0.0
        %804 = vmatprep.subr.mxu0 0.0
        %805 = vmatpush2.msra.mxu0 0.0
        %806 = vmatprep.subr.mxu0 0.0
        %807 = vmatpush2.msra.mxu0 0.0
        %808 = vmatprep.subr.mxu0 0.0
        %809 = vmatpush2.msra.mxu0 0.0
        %810 = vmatprep.subr.mxu0 0.0
        %811 = vmatpush2.msra.mxu0 0.0
        %812 = vmatprep.subr.mxu0 0.0
        %813 = vmatpush2.msra.mxu0 0.0
        %814 = vmatprep.subr.mxu0 0.0
        %815 = vmatpush2.msra.mxu0 0.0
        %816 = vmatprep.subr.mxu0 0.0
        %817 = vmatpush2.msra.mxu0 0.0
        %818 = vmatprep.subr.mxu0 0.0
        %819 = vmatpush2.msra.mxu0 0.0
        %820 = vmatprep.mubr.f32.mxu0 0.0
        %821 = vmatmul.mubr.f32.gmra.mxu0 %v754
        %v822 = vpop.f32.mrf.mxu0
        %v823 = vadd.f32 0.0, %v822
        %v824 = vpop.f32.mrf.mxu0
        %825 = vdwg.mxu0
        %v826 = vrcp.pop %v749
        %v827 = vmul.f32 %v823, %v826
        %v828 = vld [vmem:[#allocation3 + $0x8] sm:$0xf]
        %829 = vrot.lane.b32.xlu0 %v493, 120
        %v830 = vpop.permute.xlu0 %829
        %v831 = vsel %vm495, %v830, 0
        %v834 = vsel %vm499, %v828, 0
        %836 = vmatprep.subr.mxu0 0.0
        %837 = vmatpush1.msra.mxu0 0.0
        %838 = vmatprep.subr.mxu0 0.0
        %839 = vmatpush1.msra.mxu0 0.0
        %840 = vmatprep.subr.mxu0 0.0
        %841 = vmatpush1.msra.mxu0 0.0
        %842 = vmatprep.subr.mxu0 0.0
        %843 = vmatpush1.msra.mxu0 0.0
        %844 = vmatprep.subr.mxu0 0.0
        %845 = vmatpush1.msra.mxu0 0.0
        %846 = vmatprep.subr.mxu0 0.0
        %847 = vmatpush1.msra.mxu0 0.0
        %848 = vmatprep.subr.mxu0 0.0
        %849 = vmatpush1.msra.mxu0 0.0
        %850 = vmatprep.subr.mxu0 0.0
        %851 = vmatpush1.msra.mxu0 0.0
        %852 = vmatprep.subr.mxu0 0.0
        %853 = vmatpush1.msra.mxu0 0.0
        %854 = vmatprep.subr.mxu0 0.0
        %855 = vmatpush1.msra.mxu0 0.0
        %856 = vmatprep.subr.mxu0 0.0
        %857 = vmatpush1.msra.mxu0 0.0
        %858 = vmatprep.subr.mxu0 0.0
        %859 = vmatpush1.msra.mxu0 0.0
        %860 = vmatprep.subr.mxu0 0.0
        %861 = vmatpush1.msra.mxu0 0.0
        %862 = vmatprep.subr.mxu0 0.0
        %863 = vmatpush1.msra.mxu0 0.0
        %864 = vmatprep.subr.mxu0 0.0
        %865 = vmatpush1.msra.mxu0 0.0
        %866 = vmatprep.subr.mxu0 0.0
        %867 = vmatpush1.msra.mxu0 %v834
        %868 = vmatprep.subr.mxu0 0.0
        %869 = vmatpush2.msra.mxu0 0.0
        %870 = vmatprep.subr.mxu0 0.0
        %871 = vmatpush2.msra.mxu0 0.0
        %872 = vmatprep.subr.mxu0 0.0
        %873 = vmatpush2.msra.mxu0 0.0
        %874 = vmatprep.subr.mxu0 0.0
        %875 = vmatpush2.msra.mxu0 0.0
        %876 = vmatprep.subr.mxu0 0.0
        %877 = vmatpush2.msra.mxu0 0.0
        %878 = vmatprep.subr.mxu0 0.0
        %879 = vmatpush2.msra.mxu0 0.0
        %880 = vmatprep.subr.mxu0 0.0
        %881 = vmatpush2.msra.mxu0 0.0
        %882 = vmatprep.subr.mxu0 0.0
        %883 = vmatpush2.msra.mxu0 0.0
        %884 = vmatprep.subr.mxu0 0.0
        %885 = vmatpush2.msra.mxu0 0.0
        %886 = vmatprep.subr.mxu0 0.0
        %887 = vmatpush2.msra.mxu0 0.0
        %888 = vmatprep.subr.mxu0 0.0
        %889 = vmatpush2.msra.mxu0 0.0
        %890 = vmatprep.subr.mxu0 0.0
        %891 = vmatpush2.msra.mxu0 0.0
        %892 = vmatprep.subr.mxu0 0.0
        %893 = vmatpush2.msra.mxu0 0.0
        %894 = vmatprep.subr.mxu0 0.0
        %895 = vmatpush2.msra.mxu0 0.0
        %896 = vmatprep.subr.mxu0 0.0
        %897 = vmatpush2.msra.mxu0 0.0
        %898 = vmatprep.subr.mxu0 0.0
        %899 = vmatpush2.msra.mxu0 0.0
        %900 = vmatprep.mubr.f32.mxu0 0.0
        %901 = vmatmul.mubr.f32.gmra.mxu0 %v831
        %v902 = vpop.f32.mrf.mxu0
        %v903 = vadd.f32 0.0, %v902
        %v904 = vpop.f32.mrf.mxu0
        %905 = vdwg.mxu0
        %v906 = vsel %vm573, %v903, -inf
        %907 = vmax.xlane.f32.xlu0 %v906
        %v908 = vpop.xlane.xlu0 %907
        %v909 = vsub.f32 %v903, %v908
        %v910 = vmul.f32 %v909, 1.442695
        %v911 = vpow.pop %v910
        %v912 = vsel %vm573, %v911, 0.0
        %913 = vadd.xlane.f32.xlu0 %v912
        %v914 = vpop.xlane.xlu0 %913
        %915 = vrot.lane.b32.xlu0 %v583, 88
        %v916 = vpop.permute.xlu0 %915
        %v919 = vsel %vm573, %v911, 0
        %921 = vmatprep.subr.mxu0 0.0
        %922 = vmatpush1.msra.mxu0 0.0
        %923 = vmatprep.subr.mxu0 0.0
        %924 = vmatpush1.msra.mxu0 0.0
        %925 = vmatprep.subr.mxu0 0.0
        %926 = vmatpush1.msra.mxu0 0.0
        %927 = vmatprep.subr.mxu0 0.0
        %928 = vmatpush1.msra.mxu0 0.0
        %929 = vmatprep.subr.mxu0 0.0
        %930 = vmatpush1.msra.mxu0 0.0
        %931 = vmatprep.subr.mxu0 0.0
        %932 = vmatpush1.msra.mxu0 0.0
        %933 = vmatprep.subr.mxu0 0.0
        %934 = vmatpush1.msra.mxu0 0.0
        %935 = vmatprep.subr.mxu0 0.0
        %936 = vmatpush1.msra.mxu0 0.0
        %937 = vmatprep.subr.mxu0 0.0
        %938 = vmatpush1.msra.mxu0 0.0
        %939 = vmatprep.subr.mxu0 0.0
        %940 = vmatpush1.msra.mxu0 0.0
        %941 = vmatprep.subr.mxu0 0.0
        %942 = vmatpush1.msra.mxu0 0.0
        %943 = vmatprep.subr.mxu0 0.0
        %944 = vmatpush1.msra.mxu0 0.0
        %945 = vmatprep.subr.mxu0 0.0
        %946 = vmatpush1.msra.mxu0 0.0
        %947 = vmatprep.subr.mxu0 0.0
        %948 = vmatpush1.msra.mxu0 0.0
        %949 = vmatprep.subr.mxu0 0.0
        %950 = vmatpush1.msra.mxu0 0.0
        %951 = vmatprep.subr.mxu0 0.0
        %952 = vmatpush1.msra.mxu0 %v916
        %953 = vmatprep.subr.mxu0 0.0
        %954 = vmatpush2.msra.mxu0 0.0
        %955 = vmatprep.subr.mxu0 0.0
        %956 = vmatpush2.msra.mxu0 0.0
        %957 = vmatprep.subr.mxu0 0.0
        %958 = vmatpush2.msra.mxu0 0.0
        %959 = vmatprep.subr.mxu0 0.0
        %960 = vmatpush2.msra.mxu0 0.0
        %961 = vmatprep.subr.mxu0 0.0
        %962 = vmatpush2.msra.mxu0 0.0
        %963 = vmatprep.subr.mxu0 0.0
        %964 = vmatpush2.msra.mxu0 0.0
        %965 = vmatprep.subr.mxu0 0.0
        %966 = vmatpush2.msra.mxu0 0.0
        %967 = vmatprep.subr.mxu0 0.0
        %968 = vmatpush2.msra.mxu0 0.0
        %969 = vmatprep.subr.mxu0 0.0
        %970 = vmatpush2.msra.mxu0 0.0
        %971 = vmatprep.subr.mxu0 0.0
        %972 = vmatpush2.msra.mxu0 0.0
        %973 = vmatprep.subr.mxu0 0.0
        %974 = vmatpush2.msra.mxu0 0.0
        %975 = vmatprep.subr.mxu0 0.0
        %976 = vmatpush2.msra.mxu0 0.0
        %977 = vmatprep.subr.mxu0 0.0
        %978 = vmatpush2.msra.mxu0 0.0
        %979 = vmatprep.subr.mxu0 0.0
        %980 = vmatpush2.msra.mxu0 0.0
        %981 = vmatprep.subr.mxu0 0.0
        %982 = vmatpush2.msra.mxu0 0.0
        %983 = vmatprep.subr.mxu0 0.0
        %984 = vmatpush2.msra.mxu0 0.0
        %985 = vmatprep.mubr.f32.mxu0 0.0
        %986 = vmatmul.mubr.f32.gmra.mxu0 %v919
        %v987 = vpop.f32.mrf.mxu0
        %v988 = vadd.f32 0.0, %v987
        %v989 = vpop.f32.mrf.mxu0
        %990 = vdwg.mxu0
        %v991 = vrcp.pop %v914
        %v992 = vmul.f32 %v988, %v991
        %v993 = vld [vmem:[#allocation3 + $0xc] sm:$0xf]
        %994 = vrot.lane.b32.xlu0 %v493, 116
        %v995 = vpop.permute.xlu0 %994
        %v996 = vsel %vm495, %v995, 0
        %v999 = vsel %vm499, %v993, 0
        %1001 = vmatprep.subr.mxu0 0.0
        %1002 = vmatpush1.msra.mxu0 0.0
        %1003 = vmatprep.subr.mxu0 0.0
        %1004 = vmatpush1.msra.mxu0 0.0
        %1005 = vmatprep.subr.mxu0 0.0
        %1006 = vmatpush1.msra.mxu0 0.0
        %1007 = vmatprep.subr.mxu0 0.0
        %1008 = vmatpush1.msra.mxu0 0.0
        %1009 = vmatprep.subr.mxu0 0.0
        %1010 = vmatpush1.msra.mxu0 0.0
        %1011 = vmatprep.subr.mxu0 0.0
        %1012 = vmatpush1.msra.mxu0 0.0
        %1013 = vmatprep.subr.mxu0 0.0
        %1014 = vmatpush1.msra.mxu0 0.0
        %1015 = vmatprep.subr.mxu0 0.0
        %1016 = vmatpush1.msra.mxu0 0.0
        %1017 = vmatprep.subr.mxu0 0.0
        %1018 = vmatpush1.msra.mxu0 0.0
        %1019 = vmatprep.subr.mxu0 0.0
        %1020 = vmatpush1.msra.mxu0 0.0
        %1021 = vmatprep.subr.mxu0 0.0
        %1022 = vmatpush1.msra.mxu0 0.0
        %1023 = vmatprep.subr.mxu0 0.0
        %1024 = vmatpush1.msra.mxu0 0.0
        %1025 = vmatprep.subr.mxu0 0.0
        %1026 = vmatpush1.msra.mxu0 0.0
        %1027 = vmatprep.subr.mxu0 0.0
        %1028 = vmatpush1.msra.mxu0 0.0
        %1029 = vmatprep.subr.mxu0 0.0
        %1030 = vmatpush1.msra.mxu0 0.0
        %1031 = vmatprep.subr.mxu0 0.0
        %1032 = vmatpush1.msra.mxu0 %v999
        %1033 = vmatprep.subr.mxu0 0.0
        %1034 = vmatpush2.msra.mxu0 0.0
        %1035 = vmatprep.subr.mxu0 0.0
        %1036 = vmatpush2.msra.mxu0 0.0
        %1037 = vmatprep.subr.mxu0 0.0
        %1038 = vmatpush2.msra.mxu0 0.0
        %1039 = vmatprep.subr.mxu0 0.0
        %1040 = vmatpush2.msra.mxu0 0.0
        %1041 = vmatprep.subr.mxu0 0.0
        %1042 = vmatpush2.msra.mxu0 0.0
        %1043 = vmatprep.subr.mxu0 0.0
        %1044 = vmatpush2.msra.mxu0 0.0
        %1045 = vmatprep.subr.mxu0 0.0
        %1046 = vmatpush2.msra.mxu0 0.0
        %1047 = vmatprep.subr.mxu0 0.0
        %1048 = vmatpush2.msra.mxu0 0.0
        %1049 = vmatprep.subr.mxu0 0.0
        %1050 = vmatpush2.msra.mxu0 0.0
        %1051 = vmatprep.subr.mxu0 0.0
        %1052 = vmatpush2.msra.mxu0 0.0
        %1053 = vmatprep.subr.mxu0 0.0
        %1054 = vmatpush2.msra.mxu0 0.0
        %1055 = vmatprep.subr.mxu0 0.0
        %1056 = vmatpush2.msra.mxu0 0.0
        %1057 = vmatprep.subr.mxu0 0.0
        %1058 = vmatpush2.msra.mxu0 0.0
        %1059 = vmatprep.subr.mxu0 0.0
        %1060 = vmatpush2.msra.mxu0 0.0
        %1061 = vmatprep.subr.mxu0 0.0
        %1062 = vmatpush2.msra.mxu0 0.0
        %1063 = vmatprep.subr.mxu0 0.0
        %1064 = vmatpush2.msra.mxu0 0.0
        %1065 = vmatprep.mubr.f32.mxu0 0.0
        %1066 = vmatmul.mubr.f32.gmra.mxu0 %v996
        %v1067 = vpop.f32.mrf.mxu0
        %v1068 = vadd.f32 0.0, %v1067
        %v1069 = vpop.f32.mrf.mxu0
        %1070 = vdwg.mxu0
        %v1071 = vsel %vm573, %v1068, -inf
        %1072 = vmax.xlane.f32.xlu0 %v1071
        %v1073 = vpop.xlane.xlu0 %1072
        %v1074 = vsub.f32 %v1068, %v1073
        %v1075 = vmul.f32 %v1074, 1.442695
        %v1076 = vpow.pop %v1075
        %v1077 = vsel %vm573, %v1076, 0.0
        %1078 = vadd.xlane.f32.xlu0 %v1077
        %v1079 = vpop.xlane.xlu0 %1078
        %1080 = vrot.lane.b32.xlu0 %v583, 84
        %v1081 = vpop.permute.xlu0 %1080
        %v1084 = vsel %vm573, %v1076, 0
        %1086 = vmatprep.subr.mxu0 0.0
        %1087 = vmatpush1.msra.mxu0 0.0
        %1088 = vmatprep.subr.mxu0 0.0
        %1089 = vmatpush1.msra.mxu0 0.0
        %1090 = vmatprep.subr.mxu0 0.0
        %1091 = vmatpush1.msra.mxu0 0.0
        %1092 = vmatprep.subr.mxu0 0.0
        %1093 = vmatpush1.msra.mxu0 0.0
        %1094 = vmatprep.subr.mxu0 0.0
        %1095 = vmatpush1.msra.mxu0 0.0
        %1096 = vmatprep.subr.mxu0 0.0
        %1097 = vmatpush1.msra.mxu0 0.0
        %1098 = vmatprep.subr.mxu0 0.0
        %1099 = vmatpush1.msra.mxu0 0.0
        %1100 = vmatprep.subr.mxu0 0.0
        %1101 = vmatpush1.msra.mxu0 0.0
        %1102 = vmatprep.subr.mxu0 0.0
        %1103 = vmatpush1.msra.mxu0 0.0
        %1104 = vmatprep.subr.mxu0 0.0
        %1105 = vmatpush1.msra.mxu0 0.0
        %1106 = vmatprep.subr.mxu0 0.0
        %1107 = vmatpush1.msra.mxu0 0.0
        %1108 = vmatprep.subr.mxu0 0.0
        %1109 = vmatpush1.msra.mxu0 0.0
        %1110 = vmatprep.subr.mxu0 0.0
        %1111 = vmatpush1.msra.mxu0 0.0
        %1112 = vmatprep.subr.mxu0 0.0
        %1113 = vmatpush1.msra.mxu0 0.0
        %1114 = vmatprep.subr.mxu0 0.0
        %1115 = vmatpush1.msra.mxu0 0.0
        %1116 = vmatprep.subr.mxu0 0.0
        %1117 = vmatpush1.msra.mxu0 %v1081
        %1118 = vmatprep.subr.mxu0 0.0
        %1119 = vmatpush2.msra.mxu0 0.0
        %1120 = vmatprep.subr.mxu0 0.0
        %1121 = vmatpush2.msra.mxu0 0.0
        %1122 = vmatprep.subr.mxu0 0.0
        %1123 = vmatpush2.msra.mxu0 0.0
        %1124 = vmatprep.subr.mxu0 0.0
        %1125 = vmatpush2.msra.mxu0 0.0
        %1126 = vmatprep.subr.mxu0 0.0
        %1127 = vmatpush2.msra.mxu0 0.0
        %1128 = vmatprep.subr.mxu0 0.0
        %1129 = vmatpush2.msra.mxu0 0.0
        %1130 = vmatprep.subr.mxu0 0.0
        %1131 = vmatpush2.msra.mxu0 0.0
        %1132 = vmatprep.subr.mxu0 0.0
        %1133 = vmatpush2.msra.mxu0 0.0
        %1134 = vmatprep.subr.mxu0 0.0
        %1135 = vmatpush2.msra.mxu0 0.0
        %1136 = vmatprep.subr.mxu0 0.0
        %1137 = vmatpush2.msra.mxu0 0.0
        %1138 = vmatprep.subr.mxu0 0.0
        %1139 = vmatpush2.msra.mxu0 0.0
        %1140 = vmatprep.subr.mxu0 0.0
        %1141 = vmatpush2.msra.mxu0 0.0
        %1142 = vmatprep.subr.mxu0 0.0
        %1143 = vmatpush2.msra.mxu0 0.0
        %1144 = vmatprep.subr.mxu0 0.0
        %1145 = vmatpush2.msra.mxu0 0.0
        %1146 = vmatprep.subr.mxu0 0.0
        %1147 = vmatpush2.msra.mxu0 0.0
        %1148 = vmatprep.subr.mxu0 0.0
        %1149 = vmatpush2.msra.mxu0 0.0
        %1150 = vmatprep.mubr.f32.mxu0 0.0
        %1151 = vmatmul.mubr.f32.gmra.mxu0 %v1084
        %v1152 = vpop.f32.mrf.mxu0
        %v1153 = vadd.f32 0.0, %v1152
        %v1154 = vpop.f32.mrf.mxu0
        %1155 = vdwg.mxu0
        %v1156 = vrcp.pop %v1079
        %v1157 = vmul.f32 %v1153, %v1156
        %v1158 = vld [vmem:[#allocation3 + $0x10] sm:$0xf]
        %1159 = vrot.lane.b32.xlu0 %v493, 112
        %v1160 = vpop.permute.xlu0 %1159
        %v1161 = vsel %vm495, %v1160, 0
        %v1164 = vsel %vm499, %v1158, 0
        %1166 = vmatprep.subr.mxu0 0.0
        %1167 = vmatpush1.msra.mxu0 0.0
        %1168 = vmatprep.subr.mxu0 0.0
        %1169 = vmatpush1.msra.mxu0 0.0
        %1170 = vmatprep.subr.mxu0 0.0
        %1171 = vmatpush1.msra.mxu0 0.0
        %1172 = vmatprep.subr.mxu0 0.0
        %1173 = vmatpush1.msra.mxu0 0.0
        %1174 = vmatprep.subr.mxu0 0.0
        %1175 = vmatpush1.msra.mxu0 0.0
        %1176 = vmatprep.subr.mxu0 0.0
        %1177 = vmatpush1.msra.mxu0 0.0
        %1178 = vmatprep.subr.mxu0 0.0
        %1179 = vmatpush1.msra.mxu0 0.0
        %1180 = vmatprep.subr.mxu0 0.0
        %1181 = vmatpush1.msra.mxu0 0.0
        %1182 = vmatprep.subr.mxu0 0.0
        %1183 = vmatpush1.msra.mxu0 0.0
        %1184 = vmatprep.subr.mxu0 0.0
        %1185 = vmatpush1.msra.mxu0 0.0
        %1186 = vmatprep.subr.mxu0 0.0
        %1187 = vmatpush1.msra.mxu0 0.0
        %1188 = vmatprep.subr.mxu0 0.0
        %1189 = vmatpush1.msra.mxu0 0.0
        %1190 = vmatprep.subr.mxu0 0.0
        %1191 = vmatpush1.msra.mxu0 0.0
        %1192 = vmatprep.subr.mxu0 0.0
        %1193 = vmatpush1.msra.mxu0 0.0
        %1194 = vmatprep.subr.mxu0 0.0
        %1195 = vmatpush1.msra.mxu0 0.0
        %1196 = vmatprep.subr.mxu0 0.0
        %1197 = vmatpush1.msra.mxu0 %v1164
        %1198 = vmatprep.subr.mxu0 0.0
        %1199 = vmatpush2.msra.mxu0 0.0
        %1200 = vmatprep.subr.mxu0 0.0
        %1201 = vmatpush2.msra.mxu0 0.0
        %1202 = vmatprep.subr.mxu0 0.0
        %1203 = vmatpush2.msra.mxu0 0.0
        %1204 = vmatprep.subr.mxu0 0.0
        %1205 = vmatpush2.msra.mxu0 0.0
        %1206 = vmatprep.subr.mxu0 0.0
        %1207 = vmatpush2.msra.mxu0 0.0
        %1208 = vmatprep.subr.mxu0 0.0
        %1209 = vmatpush2.msra.mxu0 0.0
        %1210 = vmatprep.subr.mxu0 0.0
        %1211 = vmatpush2.msra.mxu0 0.0
        %1212 = vmatprep.subr.mxu0 0.0
        %1213 = vmatpush2.msra.mxu0 0.0
        %1214 = vmatprep.subr.mxu0 0.0
        %1215 = vmatpush2.msra.mxu0 0.0
        %1216 = vmatprep.subr.mxu0 0.0
        %1217 = vmatpush2.msra.mxu0 0.0
        %1218 = vmatprep.subr.mxu0 0.0
        %1219 = vmatpush2.msra.mxu0 0.0
        %1220 = vmatprep.subr.mxu0 0.0
        %1221 = vmatpush2.msra.mxu0 0.0
        %1222 = vmatprep.subr.mxu0 0.0
        %1223 = vmatpush2.msra.mxu0 0.0
        %1224 = vmatprep.subr.mxu0 0.0
        %1225 = vmatpush2.msra.mxu0 0.0
        %1226 = vmatprep.subr.mxu0 0.0
        %1227 = vmatpush2.msra.mxu0 0.0
        %1228 = vmatprep.subr.mxu0 0.0
        %1229 = vmatpush2.msra.mxu0 0.0
        %1230 = vmatprep.mubr.f32.mxu0 0.0
        %1231 = vmatmul.mubr.f32.gmra.mxu0 %v1161
        %v1232 = vpop.f32.mrf.mxu0
        %v1233 = vadd.f32 0.0, %v1232
        %v1234 = vpop.f32.mrf.mxu0
        %1235 = vdwg.mxu0
        %v1236 = vsel %vm573, %v1233, -inf
        %1237 = vmax.xlane.f32.xlu0 %v1236
        %v1238 = vpop.xlane.xlu0 %1237
        %v1239 = vsub.f32 %v1233, %v1238
        %v1240 = vmul.f32 %v1239, 1.442695
        %v1241 = vpow.pop %v1240
        %v1242 = vsel %vm573, %v1241, 0.0
        %1243 = vadd.xlane.f32.xlu0 %v1242
        %v1244 = vpop.xlane.xlu0 %1243
        %1245 = vrot.lane.b32.xlu0 %v583, 80
        %v1246 = vpop.permute.xlu0 %1245
        %v1249 = vsel %vm573, %v1241, 0
        %1251 = vmatprep.subr.mxu0 0.0
        %1252 = vmatpush1.msra.mxu0 0.0
        %1253 = vmatprep.subr.mxu0 0.0
        %1254 = vmatpush1.msra.mxu0 0.0
        %1255 = vmatprep.subr.mxu0 0.0
        %1256 = vmatpush1.msra.mxu0 0.0
        %1257 = vmatprep.subr.mxu0 0.0
        %1258 = vmatpush1.msra.mxu0 0.0
        %1259 = vmatprep.subr.mxu0 0.0
        %1260 = vmatpush1.msra.mxu0 0.0
        %1261 = vmatprep.subr.mxu0 0.0
        %1262 = vmatpush1.msra.mxu0 0.0
        %1263 = vmatprep.subr.mxu0 0.0
        %1264 = vmatpush1.msra.mxu0 0.0
        %1265 = vmatprep.subr.mxu0 0.0
        %1266 = vmatpush1.msra.mxu0 0.0
        %1267 = vmatprep.subr.mxu0 0.0
        %1268 = vmatpush1.msra.mxu0 0.0
        %1269 = vmatprep.subr.mxu0 0.0
        %1270 = vmatpush1.msra.mxu0 0.0
        %1271 = vmatprep.subr.mxu0 0.0
        %1272 = vmatpush1.msra.mxu0 0.0
        %1273 = vmatprep.subr.mxu0 0.0
        %1274 = vmatpush1.msra.mxu0 0.0
        %1275 = vmatprep.subr.mxu0 0.0
        %1276 = vmatpush1.msra.mxu0 0.0
        %1277 = vmatprep.subr.mxu0 0.0
        %1278 = vmatpush1.msra.mxu0 0.0
        %1279 = vmatprep.subr.mxu0 0.0
        %1280 = vmatpush1.msra.mxu0 0.0
        %1281 = vmatprep.subr.mxu0 0.0
        %1282 = vmatpush1.msra.mxu0 %v1246
        %1283 = vmatprep.subr.mxu0 0.0
        %1284 = vmatpush2.msra.mxu0 0.0
        %1285 = vmatprep.subr.mxu0 0.0
        %1286 = vmatpush2.msra.mxu0 0.0
        %1287 = vmatprep.subr.mxu0 0.0
        %1288 = vmatpush2.msra.mxu0 0.0
        %1289 = vmatprep.subr.mxu0 0.0
        %1290 = vmatpush2.msra.mxu0 0.0
        %1291 = vmatprep.subr.mxu0 0.0
        %1292 = vmatpush2.msra.mxu0 0.0
        %1293 = vmatprep.subr.mxu0 0.0
        %1294 = vmatpush2.msra.mxu0 0.0
        %1295 = vmatprep.subr.mxu0 0.0
        %1296 = vmatpush2.msra.mxu0 0.0
        %1297 = vmatprep.subr.mxu0 0.0
        %1298 = vmatpush2.msra.mxu0 0.0
        %1299 = vmatprep.subr.mxu0 0.0
        %1300 = vmatpush2.msra.mxu0 0.0
        %1301 = vmatprep.subr.mxu0 0.0
        %1302 = vmatpush2.msra.mxu0 0.0
        %1303 = vmatprep.subr.mxu0 0.0
        %1304 = vmatpush2.msra.mxu0 0.0
        %1305 = vmatprep.subr.mxu0 0.0
        %1306 = vmatpush2.msra.mxu0 0.0
        %1307 = vmatprep.subr.mxu0 0.0
        %1308 = vmatpush2.msra.mxu0 0.0
        %1309 = vmatprep.subr.mxu0 0.0
        %1310 = vmatpush2.msra.mxu0 0.0
        %1311 = vmatprep.subr.mxu0 0.0
        %1312 = vmatpush2.msra.mxu0 0.0
        %1313 = vmatprep.subr.mxu0 0.0
        %1314 = vmatpush2.msra.mxu0 0.0
        %1315 = vmatprep.mubr.f32.mxu0 0.0
        %1316 = vmatmul.mubr.f32.gmra.mxu0 %v1249
        %v1317 = vpop.f32.mrf.mxu0
        %v1318 = vadd.f32 0.0, %v1317
        %v1319 = vpop.f32.mrf.mxu0
        %1320 = vdwg.mxu0
        %v1321 = vrcp.pop %v1244
        %v1322 = vmul.f32 %v1318, %v1321
        %v1323 = vld [vmem:[#allocation3 + $0x14] sm:$0xf]
        %1324 = vrot.lane.b32.xlu0 %v493, 108
        %v1325 = vpop.permute.xlu0 %1324
        %v1326 = vsel %vm495, %v1325, 0
        %v1329 = vsel %vm499, %v1323, 0
        %1331 = vmatprep.subr.mxu0 0.0
        %1332 = vmatpush1.msra.mxu0 0.0
        %1333 = vmatprep.subr.mxu0 0.0
        %1334 = vmatpush1.msra.mxu0 0.0
        %1335 = vmatprep.subr.mxu0 0.0
        %1336 = vmatpush1.msra.mxu0 0.0
        %1337 = vmatprep.subr.mxu0 0.0
        %1338 = vmatpush1.msra.mxu0 0.0
        %1339 = vmatprep.subr.mxu0 0.0
        %1340 = vmatpush1.msra.mxu0 0.0
        %1341 = vmatprep.subr.mxu0 0.0
        %1342 = vmatpush1.msra.mxu0 0.0
        %1343 = vmatprep.subr.mxu0 0.0
        %1344 = vmatpush1.msra.mxu0 0.0
        %1345 = vmatprep.subr.mxu0 0.0
        %1346 = vmatpush1.msra.mxu0 0.0
        %1347 = vmatprep.subr.mxu0 0.0
        %1348 = vmatpush1.msra.mxu0 0.0
        %1349 = vmatprep.subr.mxu0 0.0
        %1350 = vmatpush1.msra.mxu0 0.0
        %1351 = vmatprep.subr.mxu0 0.0
        %1352 = vmatpush1.msra.mxu0 0.0
        %1353 = vmatprep.subr.mxu0 0.0
        %1354 = vmatpush1.msra.mxu0 0.0
        %1355 = vmatprep.subr.mxu0 0.0
        %1356 = vmatpush1.msra.mxu0 0.0
        %1357 = vmatprep.subr.mxu0 0.0
        %1358 = vmatpush1.msra.mxu0 0.0
        %1359 = vmatprep.subr.mxu0 0.0
        %1360 = vmatpush1.msra.mxu0 0.0
        %1361 = vmatprep.subr.mxu0 0.0
        %1362 = vmatpush1.msra.mxu0 %v1329
        %1363 = vmatprep.subr.mxu0 0.0
        %1364 = vmatpush2.msra.mxu0 0.0
        %1365 = vmatprep.subr.mxu0 0.0
        %1366 = vmatpush2.msra.mxu0 0.0
        %1367 = vmatprep.subr.mxu0 0.0
        %1368 = vmatpush2.msra.mxu0 0.0
        %1369 = vmatprep.subr.mxu0 0.0
        %1370 = vmatpush2.msra.mxu0 0.0
        %1371 = vmatprep.subr.mxu0 0.0
        %1372 = vmatpush2.msra.mxu0 0.0
        %1373 = vmatprep.subr.mxu0 0.0
        %1374 = vmatpush2.msra.mxu0 0.0
        %1375 = vmatprep.subr.mxu0 0.0
        %1376 = vmatpush2.msra.mxu0 0.0
        %1377 = vmatprep.subr.mxu0 0.0
        %1378 = vmatpush2.msra.mxu0 0.0
        %1379 = vmatprep.subr.mxu0 0.0
        %1380 = vmatpush2.msra.mxu0 0.0
        %1381 = vmatprep.subr.mxu0 0.0
        %1382 = vmatpush2.msra.mxu0 0.0
        %1383 = vmatprep.subr.mxu0 0.0
        %1384 = vmatpush2.msra.mxu0 0.0
        %1385 = vmatprep.subr.mxu0 0.0
        %1386 = vmatpush2.msra.mxu0 0.0
        %1387 = vmatprep.subr.mxu0 0.0
        %1388 = vmatpush2.msra.mxu0 0.0
        %1389 = vmatprep.subr.mxu0 0.0
        %1390 = vmatpush2.msra.mxu0 0.0
        %1391 = vmatprep.subr.mxu0 0.0
        %1392 = vmatpush2.msra.mxu0 0.0
        %1393 = vmatprep.subr.mxu0 0.0
        %1394 = vmatpush2.msra.mxu0 0.0
        %1395 = vmatprep.mubr.f32.mxu0 0.0
        %1396 = vmatmul.mubr.f32.gmra.mxu0 %v1326
        %v1397 = vpop.f32.mrf.mxu0
        %v1398 = vadd.f32 0.0, %v1397
        %v1399 = vpop.f32.mrf.mxu0
        %1400 = vdwg.mxu0
        %v1401 = vsel %vm573, %v1398, -inf
        %1402 = vmax.xlane.f32.xlu0 %v1401
        %v1403 = vpop.xlane.xlu0 %1402
        %v1404 = vsub.f32 %v1398, %v1403
        %v1405 = vmul.f32 %v1404, 1.442695
        %v1406 = vpow.pop %v1405
        %v1407 = vsel %vm573, %v1406, 0.0
        %1408 = vadd.xlane.f32.xlu0 %v1407
        %v1409 = vpop.xlane.xlu0 %1408
        %1410 = vrot.lane.b32.xlu0 %v583, 76
        %v1411 = vpop.permute.xlu0 %1410
        %v1414 = vsel %vm573, %v1406, 0
        %1416 = vmatprep.subr.mxu0 0.0
        %1417 = vmatpush1.msra.mxu0 0.0
        %1418 = vmatprep.subr.mxu0 0.0
        %1419 = vmatpush1.msra.mxu0 0.0
        %1420 = vmatprep.subr.mxu0 0.0
        %1421 = vmatpush1.msra.mxu0 0.0
        %1422 = vmatprep.subr.mxu0 0.0
        %1423 = vmatpush1.msra.mxu0 0.0
        %1424 = vmatprep.subr.mxu0 0.0
        %1425 = vmatpush1.msra.mxu0 0.0
        %1426 = vmatprep.subr.mxu0 0.0
        %1427 = vmatpush1.msra.mxu0 0.0
        %1428 = vmatprep.subr.mxu0 0.0
        %1429 = vmatpush1.msra.mxu0 0.0
        %1430 = vmatprep.subr.mxu0 0.0
        %1431 = vmatpush1.msra.mxu0 0.0
        %1432 = vmatprep.subr.mxu0 0.0
        %1433 = vmatpush1.msra.mxu0 0.0
        %1434 = vmatprep.subr.mxu0 0.0
        %1435 = vmatpush1.msra.mxu0 0.0
        %1436 = vmatprep.subr.mxu0 0.0
        %1437 = vmatpush1.msra.mxu0 0.0
        %1438 = vmatprep.subr.mxu0 0.0
        %1439 = vmatpush1.msra.mxu0 0.0
        %1440 = vmatprep.subr.mxu0 0.0
        %1441 = vmatpush1.msra.mxu0 0.0
        %1442 = vmatprep.subr.mxu0 0.0
        %1443 = vmatpush1.msra.mxu0 0.0
        %1444 = vmatprep.subr.mxu0 0.0
        %1445 = vmatpush1.msra.mxu0 0.0
        %1446 = vmatprep.subr.mxu0 0.0
        %1447 = vmatpush1.msra.mxu0 %v1411
        %1448 = vmatprep.subr.mxu0 0.0
        %1449 = vmatpush2.msra.mxu0 0.0
        %1450 = vmatprep.subr.mxu0 0.0
        %1451 = vmatpush2.msra.mxu0 0.0
        %1452 = vmatprep.subr.mxu0 0.0
        %1453 = vmatpush2.msra.mxu0 0.0
        %1454 = vmatprep.subr.mxu0 0.0
        %1455 = vmatpush2.msra.mxu0 0.0
        %1456 = vmatprep.subr.mxu0 0.0
        %1457 = vmatpush2.msra.mxu0 0.0
        %1458 = vmatprep.subr.mxu0 0.0
        %1459 = vmatpush2.msra.mxu0 0.0
        %1460 = vmatprep.subr.mxu0 0.0
        %1461 = vmatpush2.msra.mxu0 0.0
        %1462 = vmatprep.subr.mxu0 0.0
        %1463 = vmatpush2.msra.mxu0 0.0
        %1464 = vmatprep.subr.mxu0 0.0
        %1465 = vmatpush2.msra.mxu0 0.0
        %1466 = vmatprep.subr.mxu0 0.0
        %1467 = vmatpush2.msra.mxu0 0.0
        %1468 = vmatprep.subr.mxu0 0.0
        %1469 = vmatpush2.msra.mxu0 0.0
        %1470 = vmatprep.subr.mxu0 0.0
        %1471 = vmatpush2.msra.mxu0 0.0
        %1472 = vmatprep.subr.mxu0 0.0
        %1473 = vmatpush2.msra.mxu0 0.0
        %1474 = vmatprep.subr.mxu0 0.0
        %1475 = vmatpush2.msra.mxu0 0.0
        %1476 = vmatprep.subr.mxu0 0.0
        %1477 = vmatpush2.msra.mxu0 0.0
        %1478 = vmatprep.subr.mxu0 0.0
        %1479 = vmatpush2.msra.mxu0 0.0
        %1480 = vmatprep.mubr.f32.mxu0 0.0
        %1481 = vmatmul.mubr.f32.gmra.mxu0 %v1414
        %v1482 = vpop.f32.mrf.mxu0
        %v1483 = vadd.f32 0.0, %v1482
        %v1484 = vpop.f32.mrf.mxu0
        %1485 = vdwg.mxu0
        %v1486 = vrcp.pop %v1409
        %v1487 = vmul.f32 %v1483, %v1486
        %v1488 = vld [vmem:[#allocation3 + $0x18] sm:$0xf]
        %1489 = vrot.lane.b32.xlu0 %v493, 104
        %v1490 = vpop.permute.xlu0 %1489
        %v1491 = vsel %vm495, %v1490, 0
        %v1494 = vsel %vm499, %v1488, 0
        %1496 = vmatprep.subr.mxu0 0.0
        %1497 = vmatpush1.msra.mxu0 0.0
        %1498 = vmatprep.subr.mxu0 0.0
        %1499 = vmatpush1.msra.mxu0 0.0
        %1500 = vmatprep.subr.mxu0 0.0
        %1501 = vmatpush1.msra.mxu0 0.0
        %1502 = vmatprep.subr.mxu0 0.0
        %1503 = vmatpush1.msra.mxu0 0.0
        %1504 = vmatprep.subr.mxu0 0.0
        %1505 = vmatpush1.msra.mxu0 0.0
        %1506 = vmatprep.subr.mxu0 0.0
        %1507 = vmatpush1.msra.mxu0 0.0
        %1508 = vmatprep.subr.mxu0 0.0
        %1509 = vmatpush1.msra.mxu0 0.0
        %1510 = vmatprep.subr.mxu0 0.0
        %1511 = vmatpush1.msra.mxu0 0.0
        %1512 = vmatprep.subr.mxu0 0.0
        %1513 = vmatpush1.msra.mxu0 0.0
        %1514 = vmatprep.subr.mxu0 0.0
        %1515 = vmatpush1.msra.mxu0 0.0
        %1516 = vmatprep.subr.mxu0 0.0
        %1517 = vmatpush1.msra.mxu0 0.0
        %1518 = vmatprep.subr.mxu0 0.0
        %1519 = vmatpush1.msra.mxu0 0.0
        %1520 = vmatprep.subr.mxu0 0.0
        %1521 = vmatpush1.msra.mxu0 0.0
        %1522 = vmatprep.subr.mxu0 0.0
        %1523 = vmatpush1.msra.mxu0 0.0
        %1524 = vmatprep.subr.mxu0 0.0
        %1525 = vmatpush1.msra.mxu0 0.0
        %1526 = vmatprep.subr.mxu0 0.0
        %1527 = vmatpush1.msra.mxu0 %v1494
        %1528 = vmatprep.subr.mxu0 0.0
        %1529 = vmatpush2.msra.mxu0 0.0
        %1530 = vmatprep.subr.mxu0 0.0
        %1531 = vmatpush2.msra.mxu0 0.0
        %1532 = vmatprep.subr.mxu0 0.0
        %1533 = vmatpush2.msra.mxu0 0.0
        %1534 = vmatprep.subr.mxu0 0.0
        %1535 = vmatpush2.msra.mxu0 0.0
        %1536 = vmatprep.subr.mxu0 0.0
        %1537 = vmatpush2.msra.mxu0 0.0
        %1538 = vmatprep.subr.mxu0 0.0
        %1539 = vmatpush2.msra.mxu0 0.0
        %1540 = vmatprep.subr.mxu0 0.0
        %1541 = vmatpush2.msra.mxu0 0.0
        %1542 = vmatprep.subr.mxu0 0.0
        %1543 = vmatpush2.msra.mxu0 0.0
        %1544 = vmatprep.subr.mxu0 0.0
        %1545 = vmatpush2.msra.mxu0 0.0
        %1546 = vmatprep.subr.mxu0 0.0
        %1547 = vmatpush2.msra.mxu0 0.0
        %1548 = vmatprep.subr.mxu0 0.0
        %1549 = vmatpush2.msra.mxu0 0.0
        %1550 = vmatprep.subr.mxu0 0.0
        %1551 = vmatpush2.msra.mxu0 0.0
        %1552 = vmatprep.subr.mxu0 0.0
        %1553 = vmatpush2.msra.mxu0 0.0
        %1554 = vmatprep.subr.mxu0 0.0
        %1555 = vmatpush2.msra.mxu0 0.0
        %1556 = vmatprep.subr.mxu0 0.0
        %1557 = vmatpush2.msra.mxu0 0.0
        %1558 = vmatprep.subr.mxu0 0.0
        %1559 = vmatpush2.msra.mxu0 0.0
        %1560 = vmatprep.mubr.f32.mxu0 0.0
        %1561 = vmatmul.mubr.f32.gmra.mxu0 %v1491
        %v1562 = vpop.f32.mrf.mxu0
        %v1563 = vadd.f32 0.0, %v1562
        %v1564 = vpop.f32.mrf.mxu0
        %1565 = vdwg.mxu0
        %v1566 = vsel %vm573, %v1563, -inf
        %1567 = vmax.xlane.f32.xlu0 %v1566
        %v1568 = vpop.xlane.xlu0 %1567
        %v1569 = vsub.f32 %v1563, %v1568
        %v1570 = vmul.f32 %v1569, 1.442695
        %v1571 = vpow.pop %v1570
        %v1572 = vsel %vm573, %v1571, 0.0
        %1573 = vadd.xlane.f32.xlu0 %v1572
        %v1574 = vpop.xlane.xlu0 %1573
        %1575 = vrot.lane.b32.xlu0 %v583, 72
        %v1576 = vpop.permute.xlu0 %1575
        %v1579 = vsel %vm573, %v1571, 0
        %1581 = vmatprep.subr.mxu0 0.0
        %1582 = vmatpush1.msra.mxu0 0.0
        %1583 = vmatprep.subr.mxu0 0.0
        %1584 = vmatpush1.msra.mxu0 0.0
        %1585 = vmatprep.subr.mxu0 0.0
        %1586 = vmatpush1.msra.mxu0 0.0
        %1587 = vmatprep.subr.mxu0 0.0
        %1588 = vmatpush1.msra.mxu0 0.0
        %1589 = vmatprep.subr.mxu0 0.0
        %1590 = vmatpush1.msra.mxu0 0.0
        %1591 = vmatprep.subr.mxu0 0.0
        %1592 = vmatpush1.msra.mxu0 0.0
        %1593 = vmatprep.subr.mxu0 0.0
        %1594 = vmatpush1.msra.mxu0 0.0
        %1595 = vmatprep.subr.mxu0 0.0
        %1596 = vmatpush1.msra.mxu0 0.0
        %1597 = vmatprep.subr.mxu0 0.0
        %1598 = vmatpush1.msra.mxu0 0.0
        %1599 = vmatprep.subr.mxu0 0.0
        %1600 = vmatpush1.msra.mxu0 0.0
        %1601 = vmatprep.subr.mxu0 0.0
        %1602 = vmatpush1.msra.mxu0 0.0
        %1603 = vmatprep.subr.mxu0 0.0
        %1604 = vmatpush1.msra.mxu0 0.0
        %1605 = vmatprep.subr.mxu0 0.0
        %1606 = vmatpush1.msra.mxu0 0.0
        %1607 = vmatprep.subr.mxu0 0.0
        %1608 = vmatpush1.msra.mxu0 0.0
        %1609 = vmatprep.subr.mxu0 0.0
        %1610 = vmatpush1.msra.mxu0 0.0
        %1611 = vmatprep.subr.mxu0 0.0
        %1612 = vmatpush1.msra.mxu0 %v1576
        %1613 = vmatprep.subr.mxu0 0.0
        %1614 = vmatpush2.msra.mxu0 0.0
        %1615 = vmatprep.subr.mxu0 0.0
        %1616 = vmatpush2.msra.mxu0 0.0
        %1617 = vmatprep.subr.mxu0 0.0
        %1618 = vmatpush2.msra.mxu0 0.0
        %1619 = vmatprep.subr.mxu0 0.0
        %1620 = vmatpush2.msra.mxu0 0.0
        %1621 = vmatprep.subr.mxu0 0.0
        %1622 = vmatpush2.msra.mxu0 0.0
        %1623 = vmatprep.subr.mxu0 0.0
        %1624 = vmatpush2.msra.mxu0 0.0
        %1625 = vmatprep.subr.mxu0 0.0
        %1626 = vmatpush2.msra.mxu0 0.0
        %1627 = vmatprep.subr.mxu0 0.0
        %1628 = vmatpush2.msra.mxu0 0.0
        %1629 = vmatprep.subr.mxu0 0.0
        %1630 = vmatpush2.msra.mxu0 0.0
        %1631 = vmatprep.subr.mxu0 0.0
        %1632 = vmatpush2.msra.mxu0 0.0
        %1633 = vmatprep.subr.mxu0 0.0
        %1634 = vmatpush2.msra.mxu0 0.0
        %1635 = vmatprep.subr.mxu0 0.0
        %1636 = vmatpush2.msra.mxu0 0.0
        %1637 = vmatprep.subr.mxu0 0.0
        %1638 = vmatpush2.msra.mxu0 0.0
        %1639 = vmatprep.subr.mxu0 0.0
        %1640 = vmatpush2.msra.mxu0 0.0
        %1641 = vmatprep.subr.mxu0 0.0
        %1642 = vmatpush2.msra.mxu0 0.0
        %1643 = vmatprep.subr.mxu0 0.0
        %1644 = vmatpush2.msra.mxu0 0.0
        %1645 = vmatprep.mubr.f32.mxu0 0.0
        %1646 = vmatmul.mubr.f32.gmra.mxu0 %v1579
        %v1647 = vpop.f32.mrf.mxu0
        %v1648 = vadd.f32 0.0, %v1647
        %v1649 = vpop.f32.mrf.mxu0
        %1650 = vdwg.mxu0
        %v1651 = vrcp.pop %v1574
        %v1652 = vmul.f32 %v1648, %v1651
        %v1653 = vld [vmem:[#allocation3 + $0x1c] sm:$0xf]
        %1654 = vrot.lane.b32.xlu0 %v493, 100
        %v1655 = vpop.permute.xlu0 %1654
        %v1656 = vsel %vm495, %v1655, 0
        %v1659 = vsel %vm499, %v1653, 0
        %1661 = vmatprep.subr.mxu0 0.0
        %1662 = vmatpush1.msra.mxu0 0.0
        %1663 = vmatprep.subr.mxu0 0.0
        %1664 = vmatpush1.msra.mxu0 0.0
        %1665 = vmatprep.subr.mxu0 0.0
        %1666 = vmatpush1.msra.mxu0 0.0
        %1667 = vmatprep.subr.mxu0 0.0
        %1668 = vmatpush1.msra.mxu0 0.0
        %1669 = vmatprep.subr.mxu0 0.0
        %1670 = vmatpush1.msra.mxu0 0.0
        %1671 = vmatprep.subr.mxu0 0.0
        %1672 = vmatpush1.msra.mxu0 0.0
        %1673 = vmatprep.subr.mxu0 0.0
        %1674 = vmatpush1.msra.mxu0 0.0
        %1675 = vmatprep.subr.mxu0 0.0
        %1676 = vmatpush1.msra.mxu0 0.0
        %1677 = vmatprep.subr.mxu0 0.0
        %1678 = vmatpush1.msra.mxu0 0.0
        %1679 = vmatprep.subr.mxu0 0.0
        %1680 = vmatpush1.msra.mxu0 0.0
        %1681 = vmatprep.subr.mxu0 0.0
        %1682 = vmatpush1.msra.mxu0 0.0
        %1683 = vmatprep.subr.mxu0 0.0
        %1684 = vmatpush1.msra.mxu0 0.0
        %1685 = vmatprep.subr.mxu0 0.0
        %1686 = vmatpush1.msra.mxu0 0.0
        %1687 = vmatprep.subr.mxu0 0.0
        %1688 = vmatpush1.msra.mxu0 0.0
        %1689 = vmatprep.subr.mxu0 0.0
        %1690 = vmatpush1.msra.mxu0 0.0
        %1691 = vmatprep.subr.mxu0 0.0
        %1692 = vmatpush1.msra.mxu0 %v1659
        %1693 = vmatprep.subr.mxu0 0.0
        %1694 = vmatpush2.msra.mxu0 0.0
        %1695 = vmatprep.subr.mxu0 0.0
        %1696 = vmatpush2.msra.mxu0 0.0
        %1697 = vmatprep.subr.mxu0 0.0
        %1698 = vmatpush2.msra.mxu0 0.0
        %1699 = vmatprep.subr.mxu0 0.0
        %1700 = vmatpush2.msra.mxu0 0.0
        %1701 = vmatprep.subr.mxu0 0.0
        %1702 = vmatpush2.msra.mxu0 0.0
        %1703 = vmatprep.subr.mxu0 0.0
        %1704 = vmatpush2.msra.mxu0 0.0
        %1705 = vmatprep.subr.mxu0 0.0
        %1706 = vmatpush2.msra.mxu0 0.0
        %1707 = vmatprep.subr.mxu0 0.0
        %1708 = vmatpush2.msra.mxu0 0.0
        %1709 = vmatprep.subr.mxu0 0.0
        %1710 = vmatpush2.msra.mxu0 0.0
        %1711 = vmatprep.subr.mxu0 0.0
        %1712 = vmatpush2.msra.mxu0 0.0
        %1713 = vmatprep.subr.mxu0 0.0
        %1714 = vmatpush2.msra.mxu0 0.0
        %1715 = vmatprep.subr.mxu0 0.0
        %1716 = vmatpush2.msra.mxu0 0.0
        %1717 = vmatprep.subr.mxu0 0.0
        %1718 = vmatpush2.msra.mxu0 0.0
        %1719 = vmatprep.subr.mxu0 0.0
        %1720 = vmatpush2.msra.mxu0 0.0
        %1721 = vmatprep.subr.mxu0 0.0
        %1722 = vmatpush2.msra.mxu0 0.0
        %1723 = vmatprep.subr.mxu0 0.0
        %1724 = vmatpush2.msra.mxu0 0.0
        %1725 = vmatprep.mubr.f32.mxu0 0.0
        %1726 = vmatmul.mubr.f32.gmra.mxu0 %v1656
        %v1727 = vpop.f32.mrf.mxu0
        %v1728 = vadd.f32 0.0, %v1727
        %v1729 = vpop.f32.mrf.mxu0
        %1730 = vdwg.mxu0
        %v1731 = vsel %vm573, %v1728, -inf
        %1732 = vmax.xlane.f32.xlu0 %v1731
        %v1733 = vpop.xlane.xlu0 %1732
        %v1734 = vsub.f32 %v1728, %v1733
        %v1735 = vmul.f32 %v1734, 1.442695
        %v1736 = vpow.pop %v1735
        %v1737 = vsel %vm573, %v1736, 0.0
        %1738 = vadd.xlane.f32.xlu0 %v1737
        %v1739 = vpop.xlane.xlu0 %1738
        %1740 = vrot.lane.b32.xlu0 %v583, 68
        %v1741 = vpop.permute.xlu0 %1740
        %v1744 = vsel %vm573, %v1736, 0
        %1746 = vmatprep.subr.mxu0 0.0
        %1747 = vmatpush1.msra.mxu0 0.0
        %1748 = vmatprep.subr.mxu0 0.0
        %1749 = vmatpush1.msra.mxu0 0.0
        %1750 = vmatprep.subr.mxu0 0.0
        %1751 = vmatpush1.msra.mxu0 0.0
        %1752 = vmatprep.subr.mxu0 0.0
        %1753 = vmatpush1.msra.mxu0 0.0
        %1754 = vmatprep.subr.mxu0 0.0
        %1755 = vmatpush1.msra.mxu0 0.0
        %1756 = vmatprep.subr.mxu0 0.0
        %1757 = vmatpush1.msra.mxu0 0.0
        %1758 = vmatprep.subr.mxu0 0.0
        %1759 = vmatpush1.msra.mxu0 0.0
        %1760 = vmatprep.subr.mxu0 0.0
        %1761 = vmatpush1.msra.mxu0 0.0
        %1762 = vmatprep.subr.mxu0 0.0
        %1763 = vmatpush1.msra.mxu0 0.0
        %1764 = vmatprep.subr.mxu0 0.0
        %1765 = vmatpush1.msra.mxu0 0.0
        %1766 = vmatprep.subr.mxu0 0.0
        %1767 = vmatpush1.msra.mxu0 0.0
        %1768 = vmatprep.subr.mxu0 0.0
        %1769 = vmatpush1.msra.mxu0 0.0
        %1770 = vmatprep.subr.mxu0 0.0
        %1771 = vmatpush1.msra.mxu0 0.0
        %1772 = vmatprep.subr.mxu0 0.0
        %1773 = vmatpush1.msra.mxu0 0.0
        %1774 = vmatprep.subr.mxu0 0.0
        %1775 = vmatpush1.msra.mxu0 0.0
        %1776 = vmatprep.subr.mxu0 0.0
        %1777 = vmatpush1.msra.mxu0 %v1741
        %1778 = vmatprep.subr.mxu0 0.0
        %1779 = vmatpush2.msra.mxu0 0.0
        %1780 = vmatprep.subr.mxu0 0.0
        %1781 = vmatpush2.msra.mxu0 0.0
        %1782 = vmatprep.subr.mxu0 0.0
        %1783 = vmatpush2.msra.mxu0 0.0
        %1784 = vmatprep.subr.mxu0 0.0
        %1785 = vmatpush2.msra.mxu0 0.0
        %1786 = vmatprep.subr.mxu0 0.0
        %1787 = vmatpush2.msra.mxu0 0.0
        %1788 = vmatprep.subr.mxu0 0.0
        %1789 = vmatpush2.msra.mxu0 0.0
        %1790 = vmatprep.subr.mxu0 0.0
        %1791 = vmatpush2.msra.mxu0 0.0
        %1792 = vmatprep.subr.mxu0 0.0
        %1793 = vmatpush2.msra.mxu0 0.0
        %1794 = vmatprep.subr.mxu0 0.0
        %1795 = vmatpush2.msra.mxu0 0.0
        %1796 = vmatprep.subr.mxu0 0.0
        %1797 = vmatpush2.msra.mxu0 0.0
        %1798 = vmatprep.subr.mxu0 0.0
        %1799 = vmatpush2.msra.mxu0 0.0
        %1800 = vmatprep.subr.mxu0 0.0
        %1801 = vmatpush2.msra.mxu0 0.0
        %1802 = vmatprep.subr.mxu0 0.0
        %1803 = vmatpush2.msra.mxu0 0.0
        %1804 = vmatprep.subr.mxu0 0.0
        %1805 = vmatpush2.msra.mxu0 0.0
        %1806 = vmatprep.subr.mxu0 0.0
        %1807 = vmatpush2.msra.mxu0 0.0
        %1808 = vmatprep.subr.mxu0 0.0
        %1809 = vmatpush2.msra.mxu0 0.0
        %1810 = vmatprep.mubr.f32.mxu0 0.0
        %1811 = vmatmul.mubr.f32.gmra.mxu0 %v1744
        %v1812 = vpop.f32.mrf.mxu0
        %v1813 = vadd.f32 0.0, %v1812
        %v1814 = vpop.f32.mrf.mxu0
        %1815 = vdwg.mxu0
        %v1816 = vrcp.pop %v1739
        %v1817 = vmul.f32 %v1813, %v1816
        %1819 = vrot.lane.b32.xlu0 %v827, 4
        %v1820 = vpop.permute.xlu0 %1819
        %1823 = vrot.lane.b32.xlu0 %v992, 8
        %v1824 = vpop.permute.xlu0 %1823
        %1827 = vrot.lane.b32.xlu0 %v1157, 12
        %v1828 = vpop.permute.xlu0 %1827
        %1831 = vrot.lane.b32.xlu0 %v1322, 16
        %v1832 = vpop.permute.xlu0 %1831
        %1835 = vrot.lane.b32.xlu0 %v1487, 20
        %v1836 = vpop.permute.xlu0 %1835
        %1839 = vrot.lane.b32.xlu0 %v1652, 24
        %v1840 = vpop.permute.xlu0 %1839
        %1843 = vrot.lane.b32.xlu0 %v1817, 28
        %v1844 = vpop.permute.xlu0 %1843
        %v1846 = vsel %vm495, %v662, %v1820
        %v1847 = vsel %vm573, %v1846, %v1824
        %vm1848 = vcmask 97280
        %v1849 = vsel %vm1848, %v1847, %v1828
        %vm1850 = vcmask 130048
        %v1851 = vsel %vm1850, %v1849, %v1832
        %vm1852 = vcmask 162816
        %v1853 = vsel %vm1852, %v1851, %v1836
        %vm1854 = vcmask 195584
        %v1855 = vsel %vm1854, %v1853, %v1840
        %vm1856 = vcmask 228352
        %v1857 = vsel %vm1856, %v1855, %v1844
        %vm1858 = vcmask 261120
        %1859 = vst.msk [vmem:[#allocation4] sm:$0xff] %vm1858, %v1857
        %v1860 = vld [vmem:[#allocation4] sm:$0xff]
        %v1861 = vld [vmem:[#allocation5] sm:$0xff]
        %v1862 = vld [vmem:[#allocation5 + $0x8] sm:$0xff]
        %v1863 = vld [vmem:[#allocation5 + $0x10] sm:$0xff]
        %v1864 = vld [vmem:[#allocation5 + $0x18] sm:$0xff]
        %v1865 = vld [vmem:[%s5] sm:$0x1]
        %v1867 = vlaneseq
        %v1868 = vshrl.u32 %v1867, 7
        %v1869 = vsub.s32 0, %v1868
        %v1870 = vrot.slane %v1865, %v1869
        %v1873 = vsel %vm1858, %v1860, 0
        %1875 = vmatprep.subr.mxu0 0.0
        %1876 = vmatpush1.msra.mxu0 0.0
        %1877 = vmatprep.subr.mxu0 0.0
        %1878 = vmatpush1.msra.mxu0 0.0
        %1879 = vmatprep.subr.mxu0 0.0
        %1880 = vmatpush1.msra.mxu0 0.0
        %1881 = vmatprep.subr.mxu0 0.0
        %1882 = vmatpush1.msra.mxu0 0.0
        %1883 = vmatprep.subr.mxu0 0.0
        %1884 = vmatpush1.msra.mxu0 0.0
        %1885 = vmatprep.subr.mxu0 0.0
        %1886 = vmatpush1.msra.mxu0 0.0
        %1887 = vmatprep.subr.mxu0 0.0
        %1888 = vmatpush1.msra.mxu0 0.0
        %1889 = vmatprep.subr.mxu0 0.0
        %1890 = vmatpush1.msra.mxu0 0.0
        %1891 = vmatprep.subr.mxu0 0.0
        %1892 = vmatpush1.msra.mxu0 0.0
        %1893 = vmatprep.subr.mxu0 0.0
        %1894 = vmatpush1.msra.mxu0 0.0
        %1895 = vmatprep.subr.mxu0 0.0
        %1896 = vmatpush1.msra.mxu0 0.0
        %1897 = vmatprep.subr.mxu0 0.0
        %1898 = vmatpush1.msra.mxu0 0.0
        %1899 = vmatprep.subr.mxu0 0.0
        %1900 = vmatpush1.msra.mxu0 %v1864
        %1901 = vmatprep.subr.mxu0 0.0
        %1902 = vmatpush1.msra.mxu0 %v1863
        %1903 = vmatprep.subr.mxu0 0.0
        %1904 = vmatpush1.msra.mxu0 %v1862
        %1905 = vmatprep.subr.mxu0 0.0
        %1906 = vmatpush1.msra.mxu0 %v1861
        %1907 = vmatprep.subr.mxu0 0.0
        %1908 = vmatpush2.msra.mxu0 0.0
        %1909 = vmatprep.subr.mxu0 0.0
        %1910 = vmatpush2.msra.mxu0 0.0
        %1911 = vmatprep.subr.mxu0 0.0
        %1912 = vmatpush2.msra.mxu0 0.0
        %1913 = vmatprep.subr.mxu0 0.0
        %1914 = vmatpush2.msra.mxu0 0.0
        %1915 = vmatprep.subr.mxu0 0.0
        %1916 = vmatpush2.msra.mxu0 0.0
        %1917 = vmatprep.subr.mxu0 0.0
        %1918 = vmatpush2.msra.mxu0 0.0
        %1919 = vmatprep.subr.mxu0 0.0
        %1920 = vmatpush2.msra.mxu0 0.0
        %1921 = vmatprep.subr.mxu0 0.0
        %1922 = vmatpush2.msra.mxu0 0.0
        %1923 = vmatprep.subr.mxu0 0.0
        %1924 = vmatpush2.msra.mxu0 0.0
        %1925 = vmatprep.subr.mxu0 0.0
        %1926 = vmatpush2.msra.mxu0 0.0
        %1927 = vmatprep.subr.mxu0 0.0
        %1928 = vmatpush2.msra.mxu0 0.0
        %1929 = vmatprep.subr.mxu0 0.0
        %1930 = vmatpush2.msra.mxu0 0.0
        %1931 = vmatprep.subr.mxu0 0.0
        %1932 = vmatpush2.msra.mxu0 0.0
        %1933 = vmatprep.subr.mxu0 0.0
        %1934 = vmatpush2.msra.mxu0 0.0
        %1935 = vmatprep.subr.mxu0 0.0
        %1936 = vmatpush2.msra.mxu0 0.0
        %1937 = vmatprep.subr.mxu0 0.0
        %1938 = vmatpush2.msra.mxu0 0.0
        %1939 = vmatprep.mubr.f32.mxu0 0.0
        %1940 = vmatmul.mubr.f32.gmra.mxu0 %v1873
        %v1941 = vpop.f32.mrf.mxu0
        %v1942 = vadd.f32 %v1870, %v1941
        %v1943 = vpop.f32.mrf.mxu0
        %1944 = vdwg.mxu0
        %1945 = vst.msk [vmem:[%s286] sm:$0xff] %vm1858, %v1942
        %s1946 = sand.u32 %s179, 1
        %s1947 = scalar_lea.sflag [#allocation7], %s1946
        %s1948 = sand.u32 %s179, 1
        %s1949 = smul.addr %s1948, 8
        %s1950 = scalar_lea.vmem [#allocation8], %s1949
        // Predicated region
        $region53: #{tpu_custom_call.1} parent=43 // pred_check
          %p1951 = pneg %p189
        $region54: #{tpu_custom_call.1} parent=43 // pred_check_branch
          %1953 = sbr.rel (%p1951) target = $region56
        $region55: #{tpu_custom_call.1} parent=43 // pred_region
          %s1955 = ssub.s32 128, 128
          %1956 = vsyncadd %s1947, %s1955
          %s1957 = sadd.s32 %s26, %s25
          %s1958 = smul.addr %s1957, 128
          %s1959 = scalar_lea.hbm %s6, %s1958
          %s1961 = sshll.u32 %s1950, 4
          %s1962 = int_to_ptr.vmem [resolvable:$true] %s1961
          %1964 = dma.vmem_to_hbm [thread:$0]  %s1962, 128, %s1959, %s1947
        $region56: #{tpu_custom_call.1} parent=43 // pred_fallthru
          _
      $region44: #{tpu_custom_call.1} parent=5 // pred_fallthru
        _
      %p1965 = scmp.le.s32.totalorder 2, %s16
      // Predicated region
      $region57: #{tpu_custom_call.1} parent=5 // pred_check
        %p1966 = pneg %p1965
      $region58: #{tpu_custom_call.1} parent=5 // pred_check_branch
        %1968 = sbr.rel (%p1966) target = $region60
      $region59: #{tpu_custom_call.1} parent=5 // pred_region
        %s1969 = ssub.s32 %s16, 2
        // Predicated region
        $region61: #{tpu_custom_call.1} parent=59 // pred_check
          %p1970 = pneg %p195
        $region62: #{tpu_custom_call.1} parent=59 // pred_check_branch
          %1972 = sbr.rel (%p1970) target = $region64
        $region63: #{tpu_custom_call.1} parent=59 // pred_region
          %s1973 = sand.u32 %s180, 1
          %s1974 = scalar_lea.sflag [#allocation7], %s1973
          %s1975 = sand.u32 %s180, 1
          %s1976 = smul.addr %s1975, 8
          %s1977 = scalar_lea.vmem [#allocation8], %s1976
          %1978 = dma.done %s1974, 128
        $region64: #{tpu_custom_call.1} parent=59 // pred_fallthru
          _
      $region60: #{tpu_custom_call.1} parent=5 // pred_fallthru
        _
    $region6: #{tpu_custom_call.1} parent=1 // loop_footer
      %s20 = sadd.s32 1, %s16
    $region7: #{tpu_custom_call.1} parent=1 // loop_footer_branch
      %15 = sbr.rel target = $region3
    $region8: #{tpu_custom_call.1} parent=1 // loop_exit
      _
    %1979 = vsyncpa [#allocation6], 1
    %s1980 = scalar_lea.sflag [#allocation6], 1
    %1981 = vsyncpa %s1980, 1
    %1982 = vsyncpa [#allocation7], 1
    %s1983 = scalar_lea.sflag [#allocation7], 1
    %1984 = vsyncpa %s1983, 1

</llo_original>
